<compile_context>
chip_gen: v7x
topology: tpu7x:2x2x1
jax: 0.10.0
libtpu: 0.0.40
codegen_flags: <defaults>
</compile_context>

<pallas_src>
import jax
import jax.numpy as jnp
from jax.experimental import pallas as pl
from jax.experimental.pallas import tpu as pltpu


HIDDEN = 64        # LSTM hidden size
N_LAYERS = 4       # LSTM layers
KSIZE = 4          # conv kernel size
BP = 8             # LSTM batch padded to one sublane tile

_VMEM = pltpu.MemorySpace.VMEM


# --------------------------- Fused conv stack --------------------------------

def conv_stack_kernel(x_ref, w1_ref, b1_ref, w2_ref, b2_ref, w3_ref, b3_ref,
                      o_ref):
    # x_ref : (B, 32, T)
    # w*_ref: (64, C_in*K)  -- w[co, k*C_in + c] = pytorch_w[co, c, k]
    # b*_ref: (64, 1)
    # o_ref : (B, 64, T-9)
    K = KSIZE
    B = x_ref.shape[0]

    def layer(h, w2d, bias):
        # h: (C_in, T_in) -> relu(conv) : (64, T_in-K+1), single matmul
        L = h.shape[1] - K + 1
        col = jnp.concatenate([h[:, k:k + L] for k in range(K)], axis=0)
        out = jnp.dot(w2d, col, preferred_element_type=jnp.float32) + bias
        return jnp.maximum(out, 0.0)

    for b in range(B):                               # B is tiny -> unroll
        h = x_ref[b].astype(jnp.float32)
        h = layer(h, w1_ref[...], b1_ref[...])
        h = layer(h, w2_ref[...], b2_ref[...])
        h = layer(h, w3_ref[...], b3_ref[...])
        o_ref[b] = h.astype(o_ref.dtype)


def conv_stack(x_eeg, w1, b1, w2, b2, w3, b3):
    B, _, T = x_eeg.shape
    L_out = T - 3 * (KSIZE - 1)
    return pl.pallas_call(
        conv_stack_kernel,
        out_shape=jax.ShapeDtypeStruct((B, 64, L_out), jnp.float32),
        in_specs=[pl.BlockSpec(memory_space=_VMEM)] * 7,
        out_specs=pl.BlockSpec(memory_space=_VMEM),
    )(x_eeg, w1, b1, w2, b2, w3, b3)


# ------------------------- Fused LSTM + FC + sigmoid --------------------------

def lstm_fc_kernel(seq_ref, wih_ref, whh_ref, b_ref, fcw_ref, fcb_ref,
                   out_ref, seq_scr):
    # seq_ref : (L*BP, H)  timestep-major, lstm-batch padded to BP rows/step
    # wih_ref : (NL, H, 4H)  columns in gate order (i, f, o, g)
    # whh_ref : (NL, H, 4H)  columns in gate order (i, f, o, g)
    # b_ref   : (NL, 1, 4H)  b_ih + b_hh, same column order
    # fcw_ref : (1, H), fcb_ref: (1, 1)
    # out_ref : (B, 1)
    # seq_scr : VMEM (L*BP, H) f32  -- running sequence between layers
    LBP, H = seq_ref.shape
    NL = wih_ref.shape[0]
    L = LBP // BP

    h = jnp.zeros((BP, H), jnp.float32)
    for l in range(NL):                              # static unroll over layers
        src = seq_ref if l == 0 else seq_scr
        # Hoisted input projection + bias for ALL timesteps: one matmul.
        xproj = (jnp.dot(src[...].astype(jnp.float32), wih_ref[l],
                         preferred_element_type=jnp.float32) + b_ref[l])
        whh = whh_ref[l]
        h = jnp.zeros((BP, H), jnp.float32)
        c = jnp.zeros((BP, H), jnp.float32)
        for t in range(L):                           # static unroll over time
            gates = (xproj[t * BP:(t + 1) * BP, :]
                     + jnp.dot(h, whh, preferred_element_type=jnp.float32))
            sig = jax.nn.sigmoid(gates[:, 0:3 * H])  # i, f, o in one EUP region
            i_g = sig[:, 0:H]
            f_g = sig[:, H:2 * H]
            o_g = sig[:, 2 * H:3 * H]
            g_g = jnp.tanh(gates[:, 3 * H:4 * H])
            c = f_g * c + i_g * g_g
            h = o_g * jnp.tanh(c)
            if l < NL - 1:                           # next layer's input
                seq_scr[pl.ds(t * BP, BP), :] = h

    # seq_out[-1] of the top layer == final h (padded rows are garbage).
    # Linear(64,1) as VPU multiply + lane reduction (no 1-lane MXU matmul).
    logits = jnp.sum(h * fcw_ref[...], axis=1, keepdims=True) + fcb_ref[...]
    out_ref[...] = jax.nn.sigmoid(logits[0:out_ref.shape[0], :]).astype(out_ref.dtype)


def lstm_fc(seq2d, batch, wih, whh, bias, fcw, fcb):
    LBP, H = seq2d.shape
    return pl.pallas_call(
        lstm_fc_kernel,
        out_shape=jax.ShapeDtypeStruct((batch, 1), jnp.float32),
        in_specs=[pl.BlockSpec(memory_space=_VMEM)] * 6,
        out_specs=pl.BlockSpec(memory_space=_VMEM),
        scratch_shapes=[pltpu.VMEM((LBP, H), jnp.float32)],
    )(seq2d, wih, whh, bias, fcw, fcb)


# ------------------------------ Model glue ------------------------------------

def _permute_gates(w):
    # PyTorch LSTM packs rows as (i, f, g, o); reorder to (i, f, o, g) so the
    # three sigmoid gates are contiguous in the kernel.
    H = HIDDEN
    return jnp.concatenate([w[0:H], w[H:2 * H], w[3 * H:4 * H], w[2 * H:3 * H]],
                           axis=0)


def init_params(key):
    ks = iter(jax.random.split(key, 32))

    def u(k, shape, fan_in):
        bound = 1.0 / jnp.sqrt(jnp.float32(fan_in))
        return jax.random.uniform(k, shape, jnp.float32, -bound, bound)

    def conv_prep(w, b):
        # w: (C_out, C_in, K) -> (C_out, K*C_in) with index k*C_in + c
        C_out, C_in, K = w.shape
        return jnp.transpose(w, (0, 2, 1)).reshape(C_out, K * C_in), b.reshape(C_out, 1)

    p = {}
    # Conv stack: Conv1d(32,64,4), Conv1d(64,64,4), Conv1d(64,64,4)
    p["w1"], p["b1"] = conv_prep(u(next(ks), (64, 32, KSIZE), 32 * KSIZE),
                                 u(next(ks), (64,), 32 * KSIZE))
    p["w2"], p["b2"] = conv_prep(u(next(ks), (64, 64, KSIZE), 64 * KSIZE),
                                 u(next(ks), (64,), 64 * KSIZE))
    p["w3"], p["b3"] = conv_prep(u(next(ks), (64, 64, KSIZE), 64 * KSIZE),
                                 u(next(ks), (64,), 64 * KSIZE))

    # LSTM(64, 64, 4 layers): weight_ih (4H, H), weight_hh (4H, H) per layer
    wih_t, whh_t, bias = [], [], []
    for _ in range(N_LAYERS):
        w_ih = u(next(ks), (4 * HIDDEN, HIDDEN), HIDDEN)
        w_hh = u(next(ks), (4 * HIDDEN, HIDDEN), HIDDEN)
        b_ih = u(next(ks), (4 * HIDDEN,), HIDDEN)
        b_hh = u(next(ks), (4 * HIDDEN,), HIDDEN)
        wih_t.append(_permute_gates(w_ih).T)                     # (H, 4H)
        whh_t.append(_permute_gates(w_hh).T)                     # (H, 4H)
        bias.append(_permute_gates(b_ih + b_hh).reshape(1, 4 * HIDDEN))
    p["wih_t"] = jnp.stack(wih_t)                                # (NL, H, 4H)
    p["whh_t"] = jnp.stack(whh_t)                                # (NL, H, 4H)
    p["bias"] = jnp.stack(bias)                                  # (NL, 1, 4H)

    # fc_lstm: Linear(64, 1)
    p["fcw"] = u(next(ks), (1, HIDDEN), HIDDEN)                  # (1, H)
    p["fcb"] = u(next(ks), (1,), HIDDEN).reshape(1, 1)
    return p


@jax.jit
def model_forward(x, params):
    # x: (B, C, T) with C >= 32
    B = x.shape[0]
    x_eeg = x[:, 0:32, :]
    conv_out = conv_stack(x_eeg, params["w1"], params["b1"],
                          params["w2"], params["b2"],
                          params["w3"], params["b3"])            # (B, 64, L)
    _, C, L = conv_out.shape
    # PyTorch: x_eeg.view(L, B, C) — flat reinterpretation, NOT a transpose.
    seq = jnp.reshape(conv_out, (L, B, C))
    # Pad the LSTM batch to BP sublanes and flatten timestep-major.
    seq = jnp.pad(seq, ((0, 0), (0, BP - B), (0, 0)))
    seq2d = jnp.reshape(seq, (L * BP, C))
    return lstm_fc(seq2d, B, params["wih_t"], params["whh_t"],
                   params["bias"], params["fcw"], params["fcb"])


if __name__ == "__main__":
    key = jax.random.PRNGKey(0)
    k_x, k_p = jax.random.split(key)

    B, C_IN, T = 2, 34, 16                         # C_IN >= 32; seq L = T - 9 = 7
    assert B <= BP
    x = jax.random.normal(k_x, (B, C_IN, T), jnp.float32)
    params = init_params(k_p)

    out = model_forward(x, params)
    out = jax.block_until_ready(out)

    assert out.shape == (B, 1), out.shape
    assert bool(jnp.all(jnp.isfinite(out)))
    assert bool(jnp.all((out >= 0.0) & (out <= 1.0)))
    print("KERNEL_OK")
</pallas_src>

<mosaic_0001>
module attributes {stable_mosaic.version = 11 : i64} {
  func.func @conv_stack_kernel(%arg0: memref<2x32x16xf32, #tpu.memory_space<vmem>>, %arg1: memref<64x128xf32, #tpu.memory_space<vmem>>, %arg2: memref<64x1xf32, #tpu.memory_space<vmem>>, %arg3: memref<64x256xf32, #tpu.memory_space<vmem>>, %arg4: memref<64x1xf32, #tpu.memory_space<vmem>>, %arg5: memref<64x256xf32, #tpu.memory_space<vmem>>, %arg6: memref<64x1xf32, #tpu.memory_space<vmem>>, %arg7: memref<2x64x7xf32, #tpu.memory_space<vmem>>) attributes {dimension_semantics = [], scalar_prefetch = 0 : i64, scratch_operands = 0 : i64, tpu.core_type = #tpu.core_type<tc>} {
    %c0 = arith.constant 0 : index
    %c0_0 = arith.constant 0 : index
    %c0_1 = arith.constant 0 : index
    %0 = vector.load %arg0[%c0, %c0_0, %c0_1] : memref<2x32x16xf32, #tpu.memory_space<vmem>>, vector<1x32x16xf32>
    %1 = vector.shape_cast %0 : vector<1x32x16xf32> to vector<32x16xf32>
    %c0_2 = arith.constant 0 : index
    %c0_3 = arith.constant 0 : index
    %2 = vector.load %arg1[%c0_2, %c0_3] : memref<64x128xf32, #tpu.memory_space<vmem>>, vector<64x128xf32>
    %c0_4 = arith.constant 0 : index
    %c0_5 = arith.constant 0 : index
    %3 = vector.load %arg2[%c0_4, %c0_5] : memref<64x1xf32, #tpu.memory_space<vmem>>, vector<64x1xf32>
    %4 = vector.extract_strided_slice %1 {offsets = [0, 0], sizes = [32, 13], strides = [1, 1]} : vector<32x16xf32> to vector<32x13xf32>
    %5 = vector.extract_strided_slice %1 {offsets = [0, 1], sizes = [32, 13], strides = [1, 1]} : vector<32x16xf32> to vector<32x13xf32>
    %6 = vector.extract_strided_slice %1 {offsets = [0, 2], sizes = [32, 13], strides = [1, 1]} : vector<32x16xf32> to vector<32x13xf32>
    %7 = vector.extract_strided_slice %1 {offsets = [0, 3], sizes = [32, 13], strides = [1, 1]} : vector<32x16xf32> to vector<32x13xf32>
    %8 = tpu.concatenate %4, %5, %6, %7 in 0 : vector<32x13xf32>, vector<32x13xf32>, vector<32x13xf32>, vector<32x13xf32> -> vector<128x13xf32>
    %cst = arith.constant dense<0.000000e+00> : vector<64x13xf32>
    %9 = tpu.matmul %2, %8, %cst {dimension_numbers = #tpu.dot_dimension_numbers<[1], [0], [0], [1], [0, 0, 1, 1], [], []>} : vector<64x128xf32>, vector<128x13xf32>, vector<64x13xf32> -> vector<64x13xf32>
    %10 = vector.broadcast %3 : vector<64x1xf32> to vector<64x13xf32>
    %11 = arith.addf %9, %10 : vector<64x13xf32>
    %cst_6 = arith.constant 0.000000e+00 : f32
    %12 = vector.broadcast %cst_6 : f32 to vector<64x13xf32>
    %13 = arith.maximumf %11, %12 : vector<64x13xf32>
    %c0_7 = arith.constant 0 : index
    %c0_8 = arith.constant 0 : index
    %14 = vector.load %arg3[%c0_7, %c0_8] : memref<64x256xf32, #tpu.memory_space<vmem>>, vector<64x256xf32>
    %c0_9 = arith.constant 0 : index
    %c0_10 = arith.constant 0 : index
    %15 = vector.load %arg4[%c0_9, %c0_10] : memref<64x1xf32, #tpu.memory_space<vmem>>, vector<64x1xf32>
    %16 = vector.extract_strided_slice %13 {offsets = [0, 0], sizes = [64, 10], strides = [1, 1]} : vector<64x13xf32> to vector<64x10xf32>
    %17 = vector.extract_strided_slice %13 {offsets = [0, 1], sizes = [64, 10], strides = [1, 1]} : vector<64x13xf32> to vector<64x10xf32>
    %18 = vector.extract_strided_slice %13 {offsets = [0, 2], sizes = [64, 10], strides = [1, 1]} : vector<64x13xf32> to vector<64x10xf32>
    %19 = vector.extract_strided_slice %13 {offsets = [0, 3], sizes = [64, 10], strides = [1, 1]} : vector<64x13xf32> to vector<64x10xf32>
    %20 = tpu.concatenate %16, %17, %18, %19 in 0 : vector<64x10xf32>, vector<64x10xf32>, vector<64x10xf32>, vector<64x10xf32> -> vector<256x10xf32>
    %cst_11 = arith.constant dense<0.000000e+00> : vector<64x10xf32>
    %21 = tpu.matmul %14, %20, %cst_11 {dimension_numbers = #tpu.dot_dimension_numbers<[1], [0], [0], [1], [0, 0, 1, 1], [], []>} : vector<64x256xf32>, vector<256x10xf32>, vector<64x10xf32> -> vector<64x10xf32>
    %22 = vector.broadcast %15 : vector<64x1xf32> to vector<64x10xf32>
    %23 = arith.addf %21, %22 : vector<64x10xf32>
    %cst_12 = arith.constant 0.000000e+00 : f32
    %24 = vector.broadcast %cst_12 : f32 to vector<64x10xf32>
    %25 = arith.maximumf %23, %24 : vector<64x10xf32>
    %c0_13 = arith.constant 0 : index
    %c0_14 = arith.constant 0 : index
    %26 = vector.load %arg5[%c0_13, %c0_14] : memref<64x256xf32, #tpu.memory_space<vmem>>, vector<64x256xf32>
    %c0_15 = arith.constant 0 : index
    %c0_16 = arith.constant 0 : index
    %27 = vector.load %arg6[%c0_15, %c0_16] : memref<64x1xf32, #tpu.memory_space<vmem>>, vector<64x1xf32>
    %28 = vector.extract_strided_slice %25 {offsets = [0, 0], sizes = [64, 7], strides = [1, 1]} : vector<64x10xf32> to vector<64x7xf32>
    %29 = vector.extract_strided_slice %25 {offsets = [0, 1], sizes = [64, 7], strides = [1, 1]} : vector<64x10xf32> to vector<64x7xf32>
    %30 = vector.extract_strided_slice %25 {offsets = [0, 2], sizes = [64, 7], strides = [1, 1]} : vector<64x10xf32> to vector<64x7xf32>
    %31 = vector.extract_strided_slice %25 {offsets = [0, 3], sizes = [64, 7], strides = [1, 1]} : vector<64x10xf32> to vector<64x7xf32>
    %32 = tpu.concatenate %28, %29, %30, %31 in 0 : vector<64x7xf32>, vector<64x7xf32>, vector<64x7xf32>, vector<64x7xf32> -> vector<256x7xf32>
    %cst_17 = arith.constant dense<0.000000e+00> : vector<64x7xf32>
    %33 = tpu.matmul %26, %32, %cst_17 {dimension_numbers = #tpu.dot_dimension_numbers<[1], [0], [0], [1], [0, 0, 1, 1], [], []>} : vector<64x256xf32>, vector<256x7xf32>, vector<64x7xf32> -> vector<64x7xf32>
    %34 = vector.broadcast %27 : vector<64x1xf32> to vector<64x7xf32>
    %35 = arith.addf %33, %34 : vector<64x7xf32>
    %cst_18 = arith.constant 0.000000e+00 : f32
    %36 = vector.broadcast %cst_18 : f32 to vector<64x7xf32>
    %37 = arith.maximumf %35, %36 : vector<64x7xf32>
    %c0_19 = arith.constant 0 : index
    %c0_20 = arith.constant 0 : index
    %c0_21 = arith.constant 0 : index
    %38 = vector.load %arg7[%c0_19, %c0_20, %c0_21] : memref<2x64x7xf32, #tpu.memory_space<vmem>>, vector<1x64x7xf32>
    %39 = vector.shape_cast %38 : vector<1x64x7xf32> to vector<64x7xf32>
    %40 = vector.shape_cast %37 : vector<64x7xf32> to vector<1x64x7xf32>
    tpu.vector_store %arg7[%c0_19, %c0_20, %c0_21], %40 {strides = array<i32>} : memref<2x64x7xf32, #tpu.memory_space<vmem>>, vector<1x64x7xf32>,
    %c1 = arith.constant 1 : index
    %c0_22 = arith.constant 0 : index
    %c0_23 = arith.constant 0 : index
    %41 = vector.load %arg0[%c1, %c0_22, %c0_23] : memref<2x32x16xf32, #tpu.memory_space<vmem>>, vector<1x32x16xf32>
    %42 = vector.shape_cast %41 : vector<1x32x16xf32> to vector<32x16xf32>
    %c0_24 = arith.constant 0 : index
    %c0_25 = arith.constant 0 : index
    %43 = vector.load %arg1[%c0_24, %c0_25] : memref<64x128xf32, #tpu.memory_space<vmem>>, vector<64x128xf32>
    %c0_26 = arith.constant 0 : index
    %c0_27 = arith.constant 0 : index
    %44 = vector.load %arg2[%c0_26, %c0_27] : memref<64x1xf32, #tpu.memory_space<vmem>>, vector<64x1xf32>
    %45 = vector.extract_strided_slice %42 {offsets = [0, 0], sizes = [32, 13], strides = [1, 1]} : vector<32x16xf32> to vector<32x13xf32>
    %46 = vector.extract_strided_slice %42 {offsets = [0, 1], sizes = [32, 13], strides = [1, 1]} : vector<32x16xf32> to vector<32x13xf32>
    %47 = vector.extract_strided_slice %42 {offsets = [0, 2], sizes = [32, 13], strides = [1, 1]} : vector<32x16xf32> to vector<32x13xf32>
    %48 = vector.extract_strided_slice %42 {offsets = [0, 3], sizes = [32, 13], strides = [1, 1]} : vector<32x16xf32> to vector<32x13xf32>
    %49 = tpu.concatenate %45, %46, %47, %48 in 0 : vector<32x13xf32>, vector<32x13xf32>, vector<32x13xf32>, vector<32x13xf32> -> vector<128x13xf32>
    %cst_28 = arith.constant dense<0.000000e+00> : vector<64x13xf32>
    %50 = tpu.matmul %43, %49, %cst_28 {dimension_numbers = #tpu.dot_dimension_numbers<[1], [0], [0], [1], [0, 0, 1, 1], [], []>} : vector<64x128xf32>, vector<128x13xf32>, vector<64x13xf32> -> vector<64x13xf32>
    %51 = vector.broadcast %44 : vector<64x1xf32> to vector<64x13xf32>
    %52 = arith.addf %50, %51 : vector<64x13xf32>
    %cst_29 = arith.constant 0.000000e+00 : f32
    %53 = vector.broadcast %cst_29 : f32 to vector<64x13xf32>
    %54 = arith.maximumf %52, %53 : vector<64x13xf32>
    %c0_30 = arith.constant 0 : index
    %c0_31 = arith.constant 0 : index
    %55 = vector.load %arg3[%c0_30, %c0_31] : memref<64x256xf32, #tpu.memory_space<vmem>>, vector<64x256xf32>
    %c0_32 = arith.constant 0 : index
    %c0_33 = arith.constant 0 : index
    %56 = vector.load %arg4[%c0_32, %c0_33] : memref<64x1xf32, #tpu.memory_space<vmem>>, vector<64x1xf32>
    %57 = vector.extract_strided_slice %54 {offsets = [0, 0], sizes = [64, 10], strides = [1, 1]} : vector<64x13xf32> to vector<64x10xf32>
    %58 = vector.extract_strided_slice %54 {offsets = [0, 1], sizes = [64, 10], strides = [1, 1]} : vector<64x13xf32> to vector<64x10xf32>
    %59 = vector.extract_strided_slice %54 {offsets = [0, 2], sizes = [64, 10], strides = [1, 1]} : vector<64x13xf32> to vector<64x10xf32>
    %60 = vector.extract_strided_slice %54 {offsets = [0, 3], sizes = [64, 10], strides = [1, 1]} : vector<64x13xf32> to vector<64x10xf32>
    %61 = tpu.concatenate %57, %58, %59, %60 in 0 : vector<64x10xf32>, vector<64x10xf32>, vector<64x10xf32>, vector<64x10xf32> -> vector<256x10xf32>
    %cst_34 = arith.constant dense<0.000000e+00> : vector<64x10xf32>
    %62 = tpu.matmul %55, %61, %cst_34 {dimension_numbers = #tpu.dot_dimension_numbers<[1], [0], [0], [1], [0, 0, 1, 1], [], []>} : vector<64x256xf32>, vector<256x10xf32>, vector<64x10xf32> -> vector<64x10xf32>
    %63 = vector.broadcast %56 : vector<64x1xf32> to vector<64x10xf32>
    %64 = arith.addf %62, %63 : vector<64x10xf32>
    %cst_35 = arith.constant 0.000000e+00 : f32
    %65 = vector.broadcast %cst_35 : f32 to vector<64x10xf32>
    %66 = arith.maximumf %64, %65 : vector<64x10xf32>
    %c0_36 = arith.constant 0 : index
    %c0_37 = arith.constant 0 : index
    %67 = vector.load %arg5[%c0_36, %c0_37] : memref<64x256xf32, #tpu.memory_space<vmem>>, vector<64x256xf32>
    %c0_38 = arith.constant 0 : index
    %c0_39 = arith.constant 0 : index
    %68 = vector.load %arg6[%c0_38, %c0_39] : memref<64x1xf32, #tpu.memory_space<vmem>>, vector<64x1xf32>
    %69 = vector.extract_strided_slice %66 {offsets = [0, 0], sizes = [64, 7], strides = [1, 1]} : vector<64x10xf32> to vector<64x7xf32>
    %70 = vector.extract_strided_slice %66 {offsets = [0, 1], sizes = [64, 7], strides = [1, 1]} : vector<64x10xf32> to vector<64x7xf32>
    %71 = vector.extract_strided_slice %66 {offsets = [0, 2], sizes = [64, 7], strides = [1, 1]} : vector<64x10xf32> to vector<64x7xf32>
    %72 = vector.extract_strided_slice %66 {offsets = [0, 3], sizes = [64, 7], strides = [1, 1]} : vector<64x10xf32> to vector<64x7xf32>
    %73 = tpu.concatenate %69, %70, %71, %72 in 0 : vector<64x7xf32>, vector<64x7xf32>, vector<64x7xf32>, vector<64x7xf32> -> vector<256x7xf32>
    %cst_40 = arith.constant dense<0.000000e+00> : vector<64x7xf32>
    %74 = tpu.matmul %67, %73, %cst_40 {dimension_numbers = #tpu.dot_dimension_numbers<[1], [0], [0], [1], [0, 0, 1, 1], [], []>} : vector<64x256xf32>, vector<256x7xf32>, vector<64x7xf32> -> vector<64x7xf32>
    %75 = vector.broadcast %68 : vector<64x1xf32> to vector<64x7xf32>
    %76 = arith.addf %74, %75 : vector<64x7xf32>
    %cst_41 = arith.constant 0.000000e+00 : f32
    %77 = vector.broadcast %cst_41 : f32 to vector<64x7xf32>
    %78 = arith.maximumf %76, %77 : vector<64x7xf32>
    %c1_42 = arith.constant 1 : index
    %c0_43 = arith.constant 0 : index
    %c0_44 = arith.constant 0 : index
    %79 = vector.load %arg7[%c1_42, %c0_43, %c0_44] : memref<2x64x7xf32, #tpu.memory_space<vmem>>, vector<1x64x7xf32>
    %80 = vector.shape_cast %79 : vector<1x64x7xf32> to vector<64x7xf32>
    %81 = vector.shape_cast %78 : vector<64x7xf32> to vector<1x64x7xf32>
    tpu.vector_store %arg7[%c1_42, %c0_43, %c0_44], %81 {strides = array<i32>} : memref<2x64x7xf32, #tpu.memory_space<vmem>>, vector<1x64x7xf32>,
    return
  }
}

module attributes {stable_mosaic.version = 11 : i64} {
  func.func @lstm_fc_kernel(%arg0: memref<56x64xf32, #tpu.memory_space<vmem>>, %arg1: memref<4x64x256xf32, #tpu.memory_space<vmem>>, %arg2: memref<4x64x256xf32, #tpu.memory_space<vmem>>, %arg3: memref<4x1x256xf32, #tpu.memory_space<vmem>>, %arg4: memref<1x64xf32, #tpu.memory_space<vmem>>, %arg5: memref<1x1xf32, #tpu.memory_space<vmem>>, %arg6: memref<2x1xf32, #tpu.memory_space<vmem>>, %arg7: memref<56x64xf32, #tpu.memory_space<vmem>>) attributes {dimension_semantics = [], scalar_prefetch = 0 : i64, scratch_operands = 1 : i64, tpu.core_type = #tpu.core_type<tc>} {
    %c0 = arith.constant 0 : index
    %c0_0 = arith.constant 0 : index
    %0 = vector.load %arg0[%c0, %c0_0] : memref<56x64xf32, #tpu.memory_space<vmem>>, vector<56x64xf32>
    %c0_1 = arith.constant 0 : index
    %c0_2 = arith.constant 0 : index
    %c0_3 = arith.constant 0 : index
    %1 = vector.load %arg1[%c0_1, %c0_2, %c0_3] : memref<4x64x256xf32, #tpu.memory_space<vmem>>, vector<1x64x256xf32>
    %2 = vector.shape_cast %1 : vector<1x64x256xf32> to vector<64x256xf32>
    %cst = arith.constant dense<0.000000e+00> : vector<56x256xf32>
    %3 = tpu.matmul %0, %2, %cst {dimension_numbers = #tpu.dot_dimension_numbers<[1], [0], [0], [1], [0, 0, 1, 1], [], []>} : vector<56x64xf32>, vector<64x256xf32>, vector<56x256xf32> -> vector<56x256xf32>
    %c0_4 = arith.constant 0 : index
    %c0_5 = arith.constant 0 : index
    %c0_6 = arith.constant 0 : index
    %4 = vector.load %arg3[%c0_4, %c0_5, %c0_6] : memref<4x1x256xf32, #tpu.memory_space<vmem>>, vector<1x1x256xf32>
    %5 = vector.shape_cast %4 : vector<1x1x256xf32> to vector<1x256xf32>
    %6 = vector.broadcast %5 : vector<1x256xf32> to vector<56x256xf32>
    %7 = arith.addf %3, %6 : vector<56x256xf32>
    %c0_7 = arith.constant 0 : index
    %c0_8 = arith.constant 0 : index
    %c0_9 = arith.constant 0 : index
    %8 = vector.load %arg2[%c0_7, %c0_8, %c0_9] : memref<4x64x256xf32, #tpu.memory_space<vmem>>, vector<1x64x256xf32>
    %9 = vector.shape_cast %8 : vector<1x64x256xf32> to vector<64x256xf32>
    %cst_10 = arith.constant 0.000000e+00 : f32
    %10 = vector.broadcast %cst_10 : f32 to vector<8x64xf32>
    %cst_11 = arith.constant 0.000000e+00 : f32
    %11 = vector.broadcast %cst_11 : f32 to vector<8x64xf32>
    %12 = vector.extract_strided_slice %7 {offsets = [0, 0], sizes = [8, 256], strides = [1, 1]} : vector<56x256xf32> to vector<8x256xf32>
    %cst_12 = arith.constant dense<0.000000e+00> : vector<8x256xf32>
    %13 = tpu.matmul %10, %9, %cst_12 {dimension_numbers = #tpu.dot_dimension_numbers<[1], [0], [0], [1], [0, 0, 1, 1], [], []>} : vector<8x64xf32>, vector<64x256xf32>, vector<8x256xf32> -> vector<8x256xf32>
    %14 = arith.addf %12, %13 : vector<8x256xf32>
    %15 = vector.extract_strided_slice %14 {offsets = [0, 0], sizes = [8, 192], strides = [1, 1]} : vector<8x256xf32> to vector<8x192xf32>
    %16 = arith.negf %15 : vector<8x192xf32>
    %17 = math.exp %16 : vector<8x192xf32>
    %cst_13 = arith.constant 1.000000e+00 : f32
    %18 = vector.broadcast %cst_13 : f32 to vector<8x192xf32>
    %19 = arith.addf %18, %17 : vector<8x192xf32>
    %20 = arith.divf %18, %19 : vector<8x192xf32>
    %21 = vector.extract_strided_slice %20 {offsets = [0, 0], sizes = [8, 64], strides = [1, 1]} : vector<8x192xf32> to vector<8x64xf32>
    %22 = vector.extract_strided_slice %20 {offsets = [0, 64], sizes = [8, 64], strides = [1, 1]} : vector<8x192xf32> to vector<8x64xf32>
    %23 = vector.extract_strided_slice %20 {offsets = [0, 128], sizes = [8, 64], strides = [1, 1]} : vector<8x192xf32> to vector<8x64xf32>
    %24 = vector.extract_strided_slice %14 {offsets = [0, 192], sizes = [8, 64], strides = [1, 1]} : vector<8x256xf32> to vector<8x64xf32>
    %25 = math.tanh %24 : vector<8x64xf32>
    %26 = arith.mulf %22, %11 : vector<8x64xf32>
    %27 = arith.mulf %21, %25 : vector<8x64xf32>
    %28 = arith.addf %26, %27 : vector<8x64xf32>
    %29 = math.tanh %28 : vector<8x64xf32>
    %30 = arith.mulf %23, %29 : vector<8x64xf32>
    %c0_14 = arith.constant 0 : index
    %c0_15 = arith.constant 0 : index
    %31 = vector.load %arg7[%c0_14, %c0_15] : memref<56x64xf32, #tpu.memory_space<vmem>>, vector<8x64xf32>
    tpu.vector_store %arg7[%c0_14, %c0_15], %30 {strides = array<i32>} : memref<56x64xf32, #tpu.memory_space<vmem>>, vector<8x64xf32>,
    %32 = vector.extract_strided_slice %7 {offsets = [8, 0], sizes = [8, 256], strides = [1, 1]} : vector<56x256xf32> to vector<8x256xf32>
    %cst_16 = arith.constant dense<0.000000e+00> : vector<8x256xf32>
    %33 = tpu.matmul %30, %9, %cst_16 {dimension_numbers = #tpu.dot_dimension_numbers<[1], [0], [0], [1], [0, 0, 1, 1], [], []>} : vector<8x64xf32>, vector<64x256xf32>, vector<8x256xf32> -> vector<8x256xf32>
    %34 = arith.addf %32, %33 : vector<8x256xf32>
    %35 = vector.extract_strided_slice %34 {offsets = [0, 0], sizes = [8, 192], strides = [1, 1]} : vector<8x256xf32> to vector<8x192xf32>
    %36 = arith.negf %35 : vector<8x192xf32>
    %37 = math.exp %36 : vector<8x192xf32>
    %cst_17 = arith.constant 1.000000e+00 : f32
    %38 = vector.broadcast %cst_17 : f32 to vector<8x192xf32>
    %39 = arith.addf %38, %37 : vector<8x192xf32>
    %40 = arith.divf %38, %39 : vector<8x192xf32>
    %41 = vector.extract_strided_slice %40 {offsets = [0, 0], sizes = [8, 64], strides = [1, 1]} : vector<8x192xf32> to vector<8x64xf32>
    %42 = vector.extract_strided_slice %40 {offsets = [0, 64], sizes = [8, 64], strides = [1, 1]} : vector<8x192xf32> to vector<8x64xf32>
    %43 = vector.extract_strided_slice %40 {offsets = [0, 128], sizes = [8, 64], strides = [1, 1]} : vector<8x192xf32> to vector<8x64xf32>
    %44 = vector.extract_strided_slice %34 {offsets = [0, 192], sizes = [8, 64], strides = [1, 1]} : vector<8x256xf32> to vector<8x64xf32>
    %45 = math.tanh %44 : vector<8x64xf32>
    %46 = arith.mulf %42, %28 : vector<8x64xf32>
    %47 = arith.mulf %41, %45 : vector<8x64xf32>
    %48 = arith.addf %46, %47 : vector<8x64xf32>
    %49 = math.tanh %48 : vector<8x64xf32>
    %50 = arith.mulf %43, %49 : vector<8x64xf32>
    %c8 = arith.constant 8 : index
    %c0_18 = arith.constant 0 : index
    %51 = vector.load %arg7[%c8, %c0_18] : memref<56x64xf32, #tpu.memory_space<vmem>>, vector<8x64xf32>
    tpu.vector_store %arg7[%c8, %c0_18], %50 {strides = array<i32>} : memref<56x64xf32, #tpu.memory_space<vmem>>, vector<8x64xf32>,
    %52 = vector.extract_strided_slice %7 {offsets = [16, 0], sizes = [8, 256], strides = [1, 1]} : vector<56x256xf32> to vector<8x256xf32>
    %cst_19 = arith.constant dense<0.000000e+00> : vector<8x256xf32>
    %53 = tpu.matmul %50, %9, %cst_19 {dimension_numbers = #tpu.dot_dimension_numbers<[1], [0], [0], [1], [0, 0, 1, 1], [], []>} : vector<8x64xf32>, vector<64x256xf32>, vector<8x256xf32> -> vector<8x256xf32>
    %54 = arith.addf %52, %53 : vector<8x256xf32>
    %55 = vector.extract_strided_slice %54 {offsets = [0, 0], sizes = [8, 192], strides = [1, 1]} : vector<8x256xf32> to vector<8x192xf32>
    %56 = arith.negf %55 : vector<8x192xf32>
    %57 = math.exp %56 : vector<8x192xf32>
    %cst_20 = arith.constant 1.000000e+00 : f32
    %58 = vector.broadcast %cst_20 : f32 to vector<8x192xf32>
    %59 = arith.addf %58, %57 : vector<8x192xf32>
    %60 = arith.divf %58, %59 : vector<8x192xf32>
    %61 = vector.extract_strided_slice %60 {offsets = [0, 0], sizes = [8, 64], strides = [1, 1]} : vector<8x192xf32> to vector<8x64xf32>
    %62 = vector.extract_strided_slice %60 {offsets = [0, 64], sizes = [8, 64], strides = [1, 1]} : vector<8x192xf32> to vector<8x64xf32>
    %63 = vector.extract_strided_slice %60 {offsets = [0, 128], sizes = [8, 64], strides = [1, 1]} : vector<8x192xf32> to vector<8x64xf32>
    %64 = vector.extract_strided_slice %54 {offsets = [0, 192], sizes = [8, 64], strides = [1, 1]} : vector<8x256xf32> to vector<8x64xf32>
    %65 = math.tanh %64 : vector<8x64xf32>
    %66 = arith.mulf %62, %48 : vector<8x64xf32>
    %67 = arith.mulf %61, %65 : vector<8x64xf32>
    %68 = arith.addf %66, %67 : vector<8x64xf32>
    %69 = math.tanh %68 : vector<8x64xf32>
    %70 = arith.mulf %63, %69 : vector<8x64xf32>
    %c16 = arith.constant 16 : index
    %c0_21 = arith.constant 0 : index
    %71 = vector.load %arg7[%c16, %c0_21] : memref<56x64xf32, #tpu.memory_space<vmem>>, vector<8x64xf32>
    tpu.vector_store %arg7[%c16, %c0_21], %70 {strides = array<i32>} : memref<56x64xf32, #tpu.memory_space<vmem>>, vector<8x64xf32>,
    %72 = vector.extract_strided_slice %7 {offsets = [24, 0], sizes = [8, 256], strides = [1, 1]} : vector<56x256xf32> to vector<8x256xf32>
    %cst_22 = arith.constant dense<0.000000e+00> : vector<8x256xf32>
    %73 = tpu.matmul %70, %9, %cst_22 {dimension_numbers = #tpu.dot_dimension_numbers<[1], [0], [0], [1], [0, 0, 1, 1], [], []>} : vector<8x64xf32>, vector<64x256xf32>, vector<8x256xf32> -> vector<8x256xf32>
    %74 = arith.addf %72, %73 : vector<8x256xf32>
    %75 = vector.extract_strided_slice %74 {offsets = [0, 0], sizes = [8, 192], strides = [1, 1]} : vector<8x256xf32> to vector<8x192xf32>
    %76 = arith.negf %75 : vector<8x192xf32>
    %77 = math.exp %76 : vector<8x192xf32>
    %cst_23 = arith.constant 1.000000e+00 : f32
    %78 = vector.broadcast %cst_23 : f32 to vector<8x192xf32>
    %79 = arith.addf %78, %77 : vector<8x192xf32>
    %80 = arith.divf %78, %79 : vector<8x192xf32>
    %81 = vector.extract_strided_slice %80 {offsets = [0, 0], sizes = [8, 64], strides = [1, 1]} : vector<8x192xf32> to vector<8x64xf32>
    %82 = vector.extract_strided_slice %80 {offsets = [0, 64], sizes = [8, 64], strides = [1, 1]} : vector<8x192xf32> to vector<8x64xf32>
    %83 = vector.extract_strided_slice %80 {offsets = [0, 128], sizes = [8, 64], strides = [1, 1]} : vector<8x192xf32> to vector<8x64xf32>
    %84 = vector.extract_strided_slice %74 {offsets = [0, 192], sizes = [8, 64], strides = [1, 1]} : vector<8x256xf32> to vector<8x64xf32>
    %85 = math.tanh %84 : vector<8x64xf32>
    %86 = arith.mulf %82, %68 : vector<8x64xf32>
    %87 = arith.mulf %81, %85 : vector<8x64xf32>
    %88 = arith.addf %86, %87 : vector<8x64xf32>
    %89 = math.tanh %88 : vector<8x64xf32>
    %90 = arith.mulf %83, %89 : vector<8x64xf32>
    %c24 = arith.constant 24 : index
    %c0_24 = arith.constant 0 : index
    %91 = vector.load %arg7[%c24, %c0_24] : memref<56x64xf32, #tpu.memory_space<vmem>>, vector<8x64xf32>
    tpu.vector_store %arg7[%c24, %c0_24], %90 {strides = array<i32>} : memref<56x64xf32, #tpu.memory_space<vmem>>, vector<8x64xf32>,
    %92 = vector.extract_strided_slice %7 {offsets = [32, 0], sizes = [8, 256], strides = [1, 1]} : vector<56x256xf32> to vector<8x256xf32>
    %cst_25 = arith.constant dense<0.000000e+00> : vector<8x256xf32>
    %93 = tpu.matmul %90, %9, %cst_25 {dimension_numbers = #tpu.dot_dimension_numbers<[1], [0], [0], [1], [0, 0, 1, 1], [], []>} : vector<8x64xf32>, vector<64x256xf32>, vector<8x256xf32> -> vector<8x256xf32>
    %94 = arith.addf %92, %93 : vector<8x256xf32>
    %95 = vector.extract_strided_slice %94 {offsets = [0, 0], sizes = [8, 192], strides = [1, 1]} : vector<8x256xf32> to vector<8x192xf32>
    %96 = arith.negf %95 : vector<8x192xf32>
    %97 = math.exp %96 : vector<8x192xf32>
    %cst_26 = arith.constant 1.000000e+00 : f32
    %98 = vector.broadcast %cst_26 : f32 to vector<8x192xf32>
    %99 = arith.addf %98, %97 : vector<8x192xf32>
    %100 = arith.divf %98, %99 : vector<8x192xf32>
    %101 = vector.extract_strided_slice %100 {offsets = [0, 0], sizes = [8, 64], strides = [1, 1]} : vector<8x192xf32> to vector<8x64xf32>
    %102 = vector.extract_strided_slice %100 {offsets = [0, 64], sizes = [8, 64], strides = [1, 1]} : vector<8x192xf32> to vector<8x64xf32>
    %103 = vector.extract_strided_slice %100 {offsets = [0, 128], sizes = [8, 64], strides = [1, 1]} : vector<8x192xf32> to vector<8x64xf32>
    %104 = vector.extract_strided_slice %94 {offsets = [0, 192], sizes = [8, 64], strides = [1, 1]} : vector<8x256xf32> to vector<8x64xf32>
    %105 = math.tanh %104 : vector<8x64xf32>
    %106 = arith.mulf %102, %88 : vector<8x64xf32>
    %107 = arith.mulf %101, %105 : vector<8x64xf32>
    %108 = arith.addf %106, %107 : vector<8x64xf32>
    %109 = math.tanh %108 : vector<8x64xf32>
    %110 = arith.mulf %103, %109 : vector<8x64xf32>
    %c32 = arith.constant 32 : index
    %c0_27 = arith.constant 0 : index
    %111 = vector.load %arg7[%c32, %c0_27] : memref<56x64xf32, #tpu.memory_space<vmem>>, vector<8x64xf32>
    tpu.vector_store %arg7[%c32, %c0_27], %110 {strides = array<i32>} : memref<56x64xf32, #tpu.memory_space<vmem>>, vector<8x64xf32>,
    %112 = vector.extract_strided_slice %7 {offsets = [40, 0], sizes = [8, 256], strides = [1, 1]} : vector<56x256xf32> to vector<8x256xf32>
    %cst_28 = arith.constant dense<0.000000e+00> : vector<8x256xf32>
    %113 = tpu.matmul %110, %9, %cst_28 {dimension_numbers = #tpu.dot_dimension_numbers<[1], [0], [0], [1], [0, 0, 1, 1], [], []>} : vector<8x64xf32>, vector<64x256xf32>, vector<8x256xf32> -> vector<8x256xf32>
    %114 = arith.addf %112, %113 : vector<8x256xf32>
    %115 = vector.extract_strided_slice %114 {offsets = [0, 0], sizes = [8, 192], strides = [1, 1]} : vector<8x256xf32> to vector<8x192xf32>
    %116 = arith.negf %115 : vector<8x192xf32>
    %117 = math.exp %116 : vector<8x192xf32>
    %cst_29 = arith.constant 1.000000e+00 : f32
    %118 = vector.broadcast %cst_29 : f32 to vector<8x192xf32>
    %119 = arith.addf %118, %117 : vector<8x192xf32>
    %120 = arith.divf %118, %119 : vector<8x192xf32>
    %121 = vector.extract_strided_slice %120 {offsets = [0, 0], sizes = [8, 64], strides = [1, 1]} : vector<8x192xf32> to vector<8x64xf32>
    %122 = vector.extract_strided_slice %120 {offsets = [0, 64], sizes = [8, 64], strides = [1, 1]} : vector<8x192xf32> to vector<8x64xf32>
    %123 = vector.extract_strided_slice %120 {offsets = [0, 128], sizes = [8, 64], strides = [1, 1]} : vector<8x192xf32> to vector<8x64xf32>
    %124 = vector.extract_strided_slice %114 {offsets = [0, 192], sizes = [8, 64], strides = [1, 1]} : vector<8x256xf32> to vector<8x64xf32>
    %125 = math.tanh %124 : vector<8x64xf32>
    %126 = arith.mulf %122, %108 : vector<8x64xf32>
    %127 = arith.mulf %121, %125 : vector<8x64xf32>
    %128 = arith.addf %126, %127 : vector<8x64xf32>
    %129 = math.tanh %128 : vector<8x64xf32>
    %130 = arith.mulf %123, %129 : vector<8x64xf32>
    %c40 = arith.constant 40 : index
    %c0_30 = arith.constant 0 : index
    %131 = vector.load %arg7[%c40, %c0_30] : memref<56x64xf32, #tpu.memory_space<vmem>>, vector<8x64xf32>
    tpu.vector_store %arg7[%c40, %c0_30], %130 {strides = array<i32>} : memref<56x64xf32, #tpu.memory_space<vmem>>, vector<8x64xf32>,
    %132 = vector.extract_strided_slice %7 {offsets = [48, 0], sizes = [8, 256], strides = [1, 1]} : vector<56x256xf32> to vector<8x256xf32>
    %cst_31 = arith.constant dense<0.000000e+00> : vector<8x256xf32>
    %133 = tpu.matmul %130, %9, %cst_31 {dimension_numbers = #tpu.dot_dimension_numbers<[1], [0], [0], [1], [0, 0, 1, 1], [], []>} : vector<8x64xf32>, vector<64x256xf32>, vector<8x256xf32> -> vector<8x256xf32>
    %134 = arith.addf %132, %133 : vector<8x256xf32>
    %135 = vector.extract_strided_slice %134 {offsets = [0, 0], sizes = [8, 192], strides = [1, 1]} : vector<8x256xf32> to vector<8x192xf32>
    %136 = arith.negf %135 : vector<8x192xf32>
    %137 = math.exp %136 : vector<8x192xf32>
    %cst_32 = arith.constant 1.000000e+00 : f32
    %138 = vector.broadcast %cst_32 : f32 to vector<8x192xf32>
    %139 = arith.addf %138, %137 : vector<8x192xf32>
    %140 = arith.divf %138, %139 : vector<8x192xf32>
    %141 = vector.extract_strided_slice %140 {offsets = [0, 0], sizes = [8, 64], strides = [1, 1]} : vector<8x192xf32> to vector<8x64xf32>
    %142 = vector.extract_strided_slice %140 {offsets = [0, 64], sizes = [8, 64], strides = [1, 1]} : vector<8x192xf32> to vector<8x64xf32>
    %143 = vector.extract_strided_slice %140 {offsets = [0, 128], sizes = [8, 64], strides = [1, 1]} : vector<8x192xf32> to vector<8x64xf32>
    %144 = vector.extract_strided_slice %134 {offsets = [0, 192], sizes = [8, 64], strides = [1, 1]} : vector<8x256xf32> to vector<8x64xf32>
    %145 = math.tanh %144 : vector<8x64xf32>
    %146 = arith.mulf %142, %128 : vector<8x64xf32>
    %147 = arith.mulf %141, %145 : vector<8x64xf32>
    %148 = arith.addf %146, %147 : vector<8x64xf32>
    %149 = math.tanh %148 : vector<8x64xf32>
    %150 = arith.mulf %143, %149 : vector<8x64xf32>
    %c48 = arith.constant 48 : index
    %c0_33 = arith.constant 0 : index
    %151 = vector.load %arg7[%c48, %c0_33] : memref<56x64xf32, #tpu.memory_space<vmem>>, vector<8x64xf32>
    tpu.vector_store %arg7[%c48, %c0_33], %150 {strides = array<i32>} : memref<56x64xf32, #tpu.memory_space<vmem>>, vector<8x64xf32>,
    %c0_34 = arith.constant 0 : index
    %c0_35 = arith.constant 0 : index
    %152 = vector.load %arg7[%c0_34, %c0_35] : memref<56x64xf32, #tpu.memory_space<vmem>>, vector<56x64xf32>
    %c1 = arith.constant 1 : index
    %c0_36 = arith.constant 0 : index
    %c0_37 = arith.constant 0 : index
    %153 = vector.load %arg1[%c1, %c0_36, %c0_37] : memref<4x64x256xf32, #tpu.memory_space<vmem>>, vector<1x64x256xf32>
    %154 = vector.shape_cast %153 : vector<1x64x256xf32> to vector<64x256xf32>
    %cst_38 = arith.constant dense<0.000000e+00> : vector<56x256xf32>
    %155 = tpu.matmul %152, %154, %cst_38 {dimension_numbers = #tpu.dot_dimension_numbers<[1], [0], [0], [1], [0, 0, 1, 1], [], []>} : vector<56x64xf32>, vector<64x256xf32>, vector<56x256xf32> -> vector<56x256xf32>
    %c1_39 = arith.constant 1 : index
    %c0_40 = arith.constant 0 : index
    %c0_41 = arith.constant 0 : index
    %156 = vector.load %arg3[%c1_39, %c0_40, %c0_41] : memref<4x1x256xf32, #tpu.memory_space<vmem>>, vector<1x1x256xf32>
    %157 = vector.shape_cast %156 : vector<1x1x256xf32> to vector<1x256xf32>
    %158 = vector.broadcast %157 : vector<1x256xf32> to vector<56x256xf32>
    %159 = arith.addf %155, %158 : vector<56x256xf32>
    %c1_42 = arith.constant 1 : index
    %c0_43 = arith.constant 0 : index
    %c0_44 = arith.constant 0 : index
    %160 = vector.load %arg2[%c1_42, %c0_43, %c0_44] : memref<4x64x256xf32, #tpu.memory_space<vmem>>, vector<1x64x256xf32>
    %161 = vector.shape_cast %160 : vector<1x64x256xf32> to vector<64x256xf32>
    %cst_45 = arith.constant 0.000000e+00 : f32
    %162 = vector.broadcast %cst_45 : f32 to vector<8x64xf32>
    %cst_46 = arith.constant 0.000000e+00 : f32
    %163 = vector.broadcast %cst_46 : f32 to vector<8x64xf32>
    %164 = vector.extract_strided_slice %159 {offsets = [0, 0], sizes = [8, 256], strides = [1, 1]} : vector<56x256xf32> to vector<8x256xf32>
    %cst_47 = arith.constant dense<0.000000e+00> : vector<8x256xf32>
    %165 = tpu.matmul %162, %161, %cst_47 {dimension_numbers = #tpu.dot_dimension_numbers<[1], [0], [0], [1], [0, 0, 1, 1], [], []>} : vector<8x64xf32>, vector<64x256xf32>, vector<8x256xf32> -> vector<8x256xf32>
    %166 = arith.addf %164, %165 : vector<8x256xf32>
    %167 = vector.extract_strided_slice %166 {offsets = [0, 0], sizes = [8, 192], strides = [1, 1]} : vector<8x256xf32> to vector<8x192xf32>
    %168 = arith.negf %167 : vector<8x192xf32>
    %169 = math.exp %168 : vector<8x192xf32>
    %cst_48 = arith.constant 1.000000e+00 : f32
    %170 = vector.broadcast %cst_48 : f32 to vector<8x192xf32>
    %171 = arith.addf %170, %169 : vector<8x192xf32>
    %172 = arith.divf %170, %171 : vector<8x192xf32>
    %173 = vector.extract_strided_slice %172 {offsets = [0, 0], sizes = [8, 64], strides = [1, 1]} : vector<8x192xf32> to vector<8x64xf32>
    %174 = vector.extract_strided_slice %172 {offsets = [0, 64], sizes = [8, 64], strides = [1, 1]} : vector<8x192xf32> to vector<8x64xf32>
    %175 = vector.extract_strided_slice %172 {offsets = [0, 128], sizes = [8, 64], strides = [1, 1]} : vector<8x192xf32> to vector<8x64xf32>
    %176 = vector.extract_strided_slice %166 {offsets = [0, 192], sizes = [8, 64], strides = [1, 1]} : vector<8x256xf32> to vector<8x64xf32>
    %177 = math.tanh %176 : vector<8x64xf32>
    %178 = arith.mulf %174, %163 : vector<8x64xf32>
    %179 = arith.mulf %173, %177 : vector<8x64xf32>
    %180 = arith.addf %178, %179 : vector<8x64xf32>
    %181 = math.tanh %180 : vector<8x64xf32>
    %182 = arith.mulf %175, %181 : vector<8x64xf32>
    %c0_49 = arith.constant 0 : index
    %c0_50 = arith.constant 0 : index
    %183 = vector.load %arg7[%c0_49, %c0_50] : memref<56x64xf32, #tpu.memory_space<vmem>>, vector<8x64xf32>
    tpu.vector_store %arg7[%c0_49, %c0_50], %182 {strides = array<i32>} : memref<56x64xf32, #tpu.memory_space<vmem>>, vector<8x64xf32>,
    %184 = vector.extract_strided_slice %159 {offsets = [8, 0], sizes = [8, 256], strides = [1, 1]} : vector<56x256xf32> to vector<8x256xf32>
    %cst_51 = arith.constant dense<0.000000e+00> : vector<8x256xf32>
    %185 = tpu.matmul %182, %161, %cst_51 {dimension_numbers = #tpu.dot_dimension_numbers<[1], [0], [0], [1], [0, 0, 1, 1], [], []>} : vector<8x64xf32>, vector<64x256xf32>, vector<8x256xf32> -> vector<8x256xf32>
    %186 = arith.addf %184, %185 : vector<8x256xf32>
    %187 = vector.extract_strided_slice %186 {offsets = [0, 0], sizes = [8, 192], strides = [1, 1]} : vector<8x256xf32> to vector<8x192xf32>
    %188 = arith.negf %187 : vector<8x192xf32>
    %189 = math.exp %188 : vector<8x192xf32>
    %cst_52 = arith.constant 1.000000e+00 : f32
    %190 = vector.broadcast %cst_52 : f32 to vector<8x192xf32>
    %191 = arith.addf %190, %189 : vector<8x192xf32>
    %192 = arith.divf %190, %191 : vector<8x192xf32>
    %193 = vector.extract_strided_slice %192 {offsets = [0, 0], sizes = [8, 64], strides = [1, 1]} : vector<8x192xf32> to vector<8x64xf32>
    %194 = vector.extract_strided_slice %192 {offsets = [0, 64], sizes = [8, 64], strides = [1, 1]} : vector<8x192xf32> to vector<8x64xf32>
    %195 = vector.extract_strided_slice %192 {offsets = [0, 128], sizes = [8, 64], strides = [1, 1]} : vector<8x192xf32> to vector<8x64xf32>
    %196 = vector.extract_strided_slice %186 {offsets = [0, 192], sizes = [8, 64], strides = [1, 1]} : vector<8x256xf32> to vector<8x64xf32>
    %197 = math.tanh %196 : vector<8x64xf32>
    %198 = arith.mulf %194, %180 : vector<8x64xf32>
    %199 = arith.mulf %193, %197 : vector<8x64xf32>
    %200 = arith.addf %198, %199 : vector<8x64xf32>
    %201 = math.tanh %200 : vector<8x64xf32>
    %202 = arith.mulf %195, %201 : vector<8x64xf32>
    %c8_53 = arith.constant 8 : index
    %c0_54 = arith.constant 0 : index
    %203 = vector.load %arg7[%c8_53, %c0_54] : memref<56x64xf32, #tpu.memory_space<vmem>>, vector<8x64xf32>
    tpu.vector_store %arg7[%c8_53, %c0_54], %202 {strides = array<i32>} : memref<56x64xf32, #tpu.memory_space<vmem>>, vector<8x64xf32>,
    %204 = vector.extract_strided_slice %159 {offsets = [16, 0], sizes = [8, 256], strides = [1, 1]} : vector<56x256xf32> to vector<8x256xf32>
    %cst_55 = arith.constant dense<0.000000e+00> : vector<8x256xf32>
    %205 = tpu.matmul %202, %161, %cst_55 {dimension_numbers = #tpu.dot_dimension_numbers<[1], [0], [0], [1], [0, 0, 1, 1], [], []>} : vector<8x64xf32>, vector<64x256xf32>, vector<8x256xf32> -> vector<8x256xf32>
    %206 = arith.addf %204, %205 : vector<8x256xf32>
    %207 = vector.extract_strided_slice %206 {offsets = [0, 0], sizes = [8, 192], strides = [1, 1]} : vector<8x256xf32> to vector<8x192xf32>
    %208 = arith.negf %207 : vector<8x192xf32>
    %209 = math.exp %208 : vector<8x192xf32>
    %cst_56 = arith.constant 1.000000e+00 : f32
    %210 = vector.broadcast %cst_56 : f32 to vector<8x192xf32>
    %211 = arith.addf %210, %209 : vector<8x192xf32>
    %212 = arith.divf %210, %211 : vector<8x192xf32>
    %213 = vector.extract_strided_slice %212 {offsets = [0, 0], sizes = [8, 64], strides = [1, 1]} : vector<8x192xf32> to vector<8x64xf32>
    %214 = vector.extract_strided_slice %212 {offsets = [0, 64], sizes = [8, 64], strides = [1, 1]} : vector<8x192xf32> to vector<8x64xf32>
    %215 = vector.extract_strided_slice %212 {offsets = [0, 128], sizes = [8, 64], strides = [1, 1]} : vector<8x192xf32> to vector<8x64xf32>
    %216 = vector.extract_strided_slice %206 {offsets = [0, 192], sizes = [8, 64], strides = [1, 1]} : vector<8x256xf32> to vector<8x64xf32>
    %217 = math.tanh %216 : vector<8x64xf32>
    %218 = arith.mulf %214, %200 : vector<8x64xf32>
    %219 = arith.mulf %213, %217 : vector<8x64xf32>
    %220 = arith.addf %218, %219 : vector<8x64xf32>
    %221 = math.tanh %220 : vector<8x64xf32>
    %222 = arith.mulf %215, %221 : vector<8x64xf32>
    %c16_57 = arith.constant 16 : index
    %c0_58 = arith.constant 0 : index
    %223 = vector.load %arg7[%c16_57, %c0_58] : memref<56x64xf32, #tpu.memory_space<vmem>>, vector<8x64xf32>
    tpu.vector_store %arg7[%c16_57, %c0_58], %222 {strides = array<i32>} : memref<56x64xf32, #tpu.memory_space<vmem>>, vector<8x64xf32>,
    %224 = vector.extract_strided_slice %159 {offsets = [24, 0], sizes = [8, 256], strides = [1, 1]} : vector<56x256xf32> to vector<8x256xf32>
    %cst_59 = arith.constant dense<0.000000e+00> : vector<8x256xf32>
    %225 = tpu.matmul %222, %161, %cst_59 {dimension_numbers = #tpu.dot_dimension_numbers<[1], [0], [0], [1], [0, 0, 1, 1], [], []>} : vector<8x64xf32>, vector<64x256xf32>, vector<8x256xf32> -> vector<8x256xf32>
    %226 = arith.addf %224, %225 : vector<8x256xf32>
    %227 = vector.extract_strided_slice %226 {offsets = [0, 0], sizes = [8, 192], strides = [1, 1]} : vector<8x256xf32> to vector<8x192xf32>
    %228 = arith.negf %227 : vector<8x192xf32>
    %229 = math.exp %228 : vector<8x192xf32>
    %cst_60 = arith.constant 1.000000e+00 : f32
    %230 = vector.broadcast %cst_60 : f32 to vector<8x192xf32>
    %231 = arith.addf %230, %229 : vector<8x192xf32>
    %232 = arith.divf %230, %231 : vector<8x192xf32>
    %233 = vector.extract_strided_slice %232 {offsets = [0, 0], sizes = [8, 64], strides = [1, 1]} : vector<8x192xf32> to vector<8x64xf32>
    %234 = vector.extract_strided_slice %232 {offsets = [0, 64], sizes = [8, 64], strides = [1, 1]} : vector<8x192xf32> to vector<8x64xf32>
    %235 = vector.extract_strided_slice %232 {offsets = [0, 128], sizes = [8, 64], strides = [1, 1]} : vector<8x192xf32> to vector<8x64xf32>
    %236 = vector.extract_strided_slice %226 {offsets = [0, 192], sizes = [8, 64], strides = [1, 1]} : vector<8x256xf32> to vector<8x64xf32>
    %237 = math.tanh %236 : vector<8x64xf32>
    %238 = arith.mulf %234, %220 : vector<8x64xf32>
    %239 = arith.mulf %233, %237 : vector<8x64xf32>
    %240 = arith.addf %238, %239 : vector<8x64xf32>
    %241 = math.tanh %240 : vector<8x64xf32>
    %242 = arith.mulf %235, %241 : vector<8x64xf32>
    %c24_61 = arith.constant 24 : index
    %c0_62 = arith.constant 0 : index
    %243 = vector.load %arg7[%c24_61, %c0_62] : memref<56x64xf32, #tpu.memory_space<vmem>>, vector<8x64xf32>
    tpu.vector_store %arg7[%c24_61, %c0_62], %242 {strides = array<i32>} : memref<56x64xf32, #tpu.memory_space<vmem>>, vector<8x64xf32>,
    %244 = vector.extract_strided_slice %159 {offsets = [32, 0], sizes = [8, 256], strides = [1, 1]} : vector<56x256xf32> to vector<8x256xf32>
    %cst_63 = arith.constant dense<0.000000e+00> : vector<8x256xf32>
    %245 = tpu.matmul %242, %161, %cst_63 {dimension_numbers = #tpu.dot_dimension_numbers<[1], [0], [0], [1], [0, 0, 1, 1], [], []>} : vector<8x64xf32>, vector<64x256xf32>, vector<8x256xf32> -> vector<8x256xf32>
    %246 = arith.addf %244, %245 : vector<8x256xf32>
    %247 = vector.extract_strided_slice %246 {offsets = [0, 0], sizes = [8, 192], strides = [1, 1]} : vector<8x256xf32> to vector<8x192xf32>
    %248 = arith.negf %247 : vector<8x192xf32>
    %249 = math.exp %248 : vector<8x192xf32>
    %cst_64 = arith.constant 1.000000e+00 : f32
    %250 = vector.broadcast %cst_64 : f32 to vector<8x192xf32>
    %251 = arith.addf %250, %249 : vector<8x192xf32>
    %252 = arith.divf %250, %251 : vector<8x192xf32>
    %253 = vector.extract_strided_slice %252 {offsets = [0, 0], sizes = [8, 64], strides = [1, 1]} : vector<8x192xf32> to vector<8x64xf32>
    %254 = vector.extract_strided_slice %252 {offsets = [0, 64], sizes = [8, 64], strides = [1, 1]} : vector<8x192xf32> to vector<8x64xf32>
    %255 = vector.extract_strided_slice %252 {offsets = [0, 128], sizes = [8, 64], strides = [1, 1]} : vector<8x192xf32> to vector<8x64xf32>
    %256 = vector.extract_strided_slice %246 {offsets = [0, 192], sizes = [8, 64], strides = [1, 1]} : vector<8x256xf32> to vector<8x64xf32>
    %257 = math.tanh %256 : vector<8x64xf32>
    %258 = arith.mulf %254, %240 : vector<8x64xf32>
    %259 = arith.mulf %253, %257 : vector<8x64xf32>
    %260 = arith.addf %258, %259 : vector<8x64xf32>
    %261 = math.tanh %260 : vector<8x64xf32>
    %262 = arith.mulf %255, %261 : vector<8x64xf32>
    %c32_65 = arith.constant 32 : index
    %c0_66 = arith.constant 0 : index
    %263 = vector.load %arg7[%c32_65, %c0_66] : memref<56x64xf32, #tpu.memory_space<vmem>>, vector<8x64xf32>
    tpu.vector_store %arg7[%c32_65, %c0_66], %262 {strides = array<i32>} : memref<56x64xf32, #tpu.memory_space<vmem>>, vector<8x64xf32>,
    %264 = vector.extract_strided_slice %159 {offsets = [40, 0], sizes = [8, 256], strides = [1, 1]} : vector<56x256xf32> to vector<8x256xf32>
    %cst_67 = arith.constant dense<0.000000e+00> : vector<8x256xf32>
    %265 = tpu.matmul %262, %161, %cst_67 {dimension_numbers = #tpu.dot_dimension_numbers<[1], [0], [0], [1], [0, 0, 1, 1], [], []>} : vector<8x64xf32>, vector<64x256xf32>, vector<8x256xf32> -> vector<8x256xf32>
    %266 = arith.addf %264, %265 : vector<8x256xf32>
    %267 = vector.extract_strided_slice %266 {offsets = [0, 0], sizes = [8, 192], strides = [1, 1]} : vector<8x256xf32> to vector<8x192xf32>
    %268 = arith.negf %267 : vector<8x192xf32>
    %269 = math.exp %268 : vector<8x192xf32>
    %cst_68 = arith.constant 1.000000e+00 : f32
    %270 = vector.broadcast %cst_68 : f32 to vector<8x192xf32>
    %271 = arith.addf %270, %269 : vector<8x192xf32>
    %272 = arith.divf %270, %271 : vector<8x192xf32>
    %273 = vector.extract_strided_slice %272 {offsets = [0, 0], sizes = [8, 64], strides = [1, 1]} : vector<8x192xf32> to vector<8x64xf32>
    %274 = vector.extract_strided_slice %272 {offsets = [0, 64], sizes = [8, 64], strides = [1, 1]} : vector<8x192xf32> to vector<8x64xf32>
    %275 = vector.extract_strided_slice %272 {offsets = [0, 128], sizes = [8, 64], strides = [1, 1]} : vector<8x192xf32> to vector<8x64xf32>
    %276 = vector.extract_strided_slice %266 {offsets = [0, 192], sizes = [8, 64], strides = [1, 1]} : vector<8x256xf32> to vector<8x64xf32>
    %277 = math.tanh %276 : vector<8x64xf32>
    %278 = arith.mulf %274, %260 : vector<8x64xf32>
    %279 = arith.mulf %273, %277 : vector<8x64xf32>
    %280 = arith.addf %278, %279 : vector<8x64xf32>
    %281 = math.tanh %280 : vector<8x64xf32>
    %282 = arith.mulf %275, %281 : vector<8x64xf32>
    %c40_69 = arith.constant 40 : index
    %c0_70 = arith.constant 0 : index
    %283 = vector.load %arg7[%c40_69, %c0_70] : memref<56x64xf32, #tpu.memory_space<vmem>>, vector<8x64xf32>
    tpu.vector_store %arg7[%c40_69, %c0_70], %282 {strides = array<i32>} : memref<56x64xf32, #tpu.memory_space<vmem>>, vector<8x64xf32>,
    %284 = vector.extract_strided_slice %159 {offsets = [48, 0], sizes = [8, 256], strides = [1, 1]} : vector<56x256xf32> to vector<8x256xf32>
    %cst_71 = arith.constant dense<0.000000e+00> : vector<8x256xf32>
    %285 = tpu.matmul %282, %161, %cst_71 {dimension_numbers = #tpu.dot_dimension_numbers<[1], [0], [0], [1], [0, 0, 1, 1], [], []>} : vector<8x64xf32>, vector<64x256xf32>, vector<8x256xf32> -> vector<8x256xf32>
    %286 = arith.addf %284, %285 : vector<8x256xf32>
    %287 = vector.extract_strided_slice %286 {offsets = [0, 0], sizes = [8, 192], strides = [1, 1]} : vector<8x256xf32> to vector<8x192xf32>
    %288 = arith.negf %287 : vector<8x192xf32>
    %289 = math.exp %288 : vector<8x192xf32>
    %cst_72 = arith.constant 1.000000e+00 : f32
    %290 = vector.broadcast %cst_72 : f32 to vector<8x192xf32>
    %291 = arith.addf %290, %289 : vector<8x192xf32>
    %292 = arith.divf %290, %291 : vector<8x192xf32>
    %293 = vector.extract_strided_slice %292 {offsets = [0, 0], sizes = [8, 64], strides = [1, 1]} : vector<8x192xf32> to vector<8x64xf32>
    %294 = vector.extract_strided_slice %292 {offsets = [0, 64], sizes = [8, 64], strides = [1, 1]} : vector<8x192xf32> to vector<8x64xf32>
    %295 = vector.extract_strided_slice %292 {offsets = [0, 128], sizes = [8, 64], strides = [1, 1]} : vector<8x192xf32> to vector<8x64xf32>
    %296 = vector.extract_strided_slice %286 {offsets = [0, 192], sizes = [8, 64], strides = [1, 1]} : vector<8x256xf32> to vector<8x64xf32>
    %297 = math.tanh %296 : vector<8x64xf32>
    %298 = arith.mulf %294, %280 : vector<8x64xf32>
    %299 = arith.mulf %293, %297 : vector<8x64xf32>
    %300 = arith.addf %298, %299 : vector<8x64xf32>
    %301 = math.tanh %300 : vector<8x64xf32>
    %302 = arith.mulf %295, %301 : vector<8x64xf32>
    %c48_73 = arith.constant 48 : index
    %c0_74 = arith.constant 0 : index
    %303 = vector.load %arg7[%c48_73, %c0_74] : memref<56x64xf32, #tpu.memory_space<vmem>>, vector<8x64xf32>
    tpu.vector_store %arg7[%c48_73, %c0_74], %302 {strides = array<i32>} : memref<56x64xf32, #tpu.memory_space<vmem>>, vector<8x64xf32>,
    %c0_75 = arith.constant 0 : index
    %c0_76 = arith.constant 0 : index
    %304 = vector.load %arg7[%c0_75, %c0_76] : memref<56x64xf32, #tpu.memory_space<vmem>>, vector<56x64xf32>
    %c2 = arith.constant 2 : index
    %c0_77 = arith.constant 0 : index
    %c0_78 = arith.constant 0 : index
    %305 = vector.load %arg1[%c2, %c0_77, %c0_78] : memref<4x64x256xf32, #tpu.memory_space<vmem>>, vector<1x64x256xf32>
    %306 = vector.shape_cast %305 : vector<1x64x256xf32> to vector<64x256xf32>
    %cst_79 = arith.constant dense<0.000000e+00> : vector<56x256xf32>
    %307 = tpu.matmul %304, %306, %cst_79 {dimension_numbers = #tpu.dot_dimension_numbers<[1], [0], [0], [1], [0, 0, 1, 1], [], []>} : vector<56x64xf32>, vector<64x256xf32>, vector<56x256xf32> -> vector<56x256xf32>
    %c2_80 = arith.constant 2 : index
    %c0_81 = arith.constant 0 : index
    %c0_82 = arith.constant 0 : index
    %308 = vector.load %arg3[%c2_80, %c0_81, %c0_82] : memref<4x1x256xf32, #tpu.memory_space<vmem>>, vector<1x1x256xf32>
    %309 = vector.shape_cast %308 : vector<1x1x256xf32> to vector<1x256xf32>
    %310 = vector.broadcast %309 : vector<1x256xf32> to vector<56x256xf32>
    %311 = arith.addf %307, %310 : vector<56x256xf32>
    %c2_83 = arith.constant 2 : index
    %c0_84 = arith.constant 0 : index
    %c0_85 = arith.constant 0 : index
    %312 = vector.load %arg2[%c2_83, %c0_84, %c0_85] : memref<4x64x256xf32, #tpu.memory_space<vmem>>, vector<1x64x256xf32>
    %313 = vector.shape_cast %312 : vector<1x64x256xf32> to vector<64x256xf32>
    %cst_86 = arith.constant 0.000000e+00 : f32
    %314 = vector.broadcast %cst_86 : f32 to vector<8x64xf32>
    %cst_87 = arith.constant 0.000000e+00 : f32
    %315 = vector.broadcast %cst_87 : f32 to vector<8x64xf32>
    %316 = vector.extract_strided_slice %311 {offsets = [0, 0], sizes = [8, 256], strides = [1, 1]} : vector<56x256xf32> to vector<8x256xf32>
    %cst_88 = arith.constant dense<0.000000e+00> : vector<8x256xf32>
    %317 = tpu.matmul %314, %313, %cst_88 {dimension_numbers = #tpu.dot_dimension_numbers<[1], [0], [0], [1], [0, 0, 1, 1], [], []>} : vector<8x64xf32>, vector<64x256xf32>, vector<8x256xf32> -> vector<8x256xf32>
    %318 = arith.addf %316, %317 : vector<8x256xf32>
    %319 = vector.extract_strided_slice %318 {offsets = [0, 0], sizes = [8, 192], strides = [1, 1]} : vector<8x256xf32> to vector<8x192xf32>
    %320 = arith.negf %319 : vector<8x192xf32>
    %321 = math.exp %320 : vector<8x192xf32>
    %cst_89 = arith.constant 1.000000e+00 : f32
    %322 = vector.broadcast %cst_89 : f32 to vector<8x192xf32>
    %323 = arith.addf %322, %321 : vector<8x192xf32>
    %324 = arith.divf %322, %323 : vector<8x192xf32>
    %325 = vector.extract_strided_slice %324 {offsets = [0, 0], sizes = [8, 64], strides = [1, 1]} : vector<8x192xf32> to vector<8x64xf32>
    %326 = vector.extract_strided_slice %324 {offsets = [0, 64], sizes = [8, 64], strides = [1, 1]} : vector<8x192xf32> to vector<8x64xf32>
    %327 = vector.extract_strided_slice %324 {offsets = [0, 128], sizes = [8, 64], strides = [1, 1]} : vector<8x192xf32> to vector<8x64xf32>
    %328 = vector.extract_strided_slice %318 {offsets = [0, 192], sizes = [8, 64], strides = [1, 1]} : vector<8x256xf32> to vector<8x64xf32>
    %329 = math.tanh %328 : vector<8x64xf32>
    %330 = arith.mulf %326, %315 : vector<8x64xf32>
    %331 = arith.mulf %325, %329 : vector<8x64xf32>
    %332 = arith.addf %330, %331 : vector<8x64xf32>
    %333 = math.tanh %332 : vector<8x64xf32>
    %334 = arith.mulf %327, %333 : vector<8x64xf32>
    %c0_90 = arith.constant 0 : index
    %c0_91 = arith.constant 0 : index
    %335 = vector.load %arg7[%c0_90, %c0_91] : memref<56x64xf32, #tpu.memory_space<vmem>>, vector<8x64xf32>
    tpu.vector_store %arg7[%c0_90, %c0_91], %334 {strides = array<i32>} : memref<56x64xf32, #tpu.memory_space<vmem>>, vector<8x64xf32>,
    %336 = vector.extract_strided_slice %311 {offsets = [8, 0], sizes = [8, 256], strides = [1, 1]} : vector<56x256xf32> to vector<8x256xf32>
    %cst_92 = arith.constant dense<0.000000e+00> : vector<8x256xf32>
    %337 = tpu.matmul %334, %313, %cst_92 {dimension_numbers = #tpu.dot_dimension_numbers<[1], [0], [0], [1], [0, 0, 1, 1], [], []>} : vector<8x64xf32>, vector<64x256xf32>, vector<8x256xf32> -> vector<8x256xf32>
    %338 = arith.addf %336, %337 : vector<8x256xf32>
    %339 = vector.extract_strided_slice %338 {offsets = [0, 0], sizes = [8, 192], strides = [1, 1]} : vector<8x256xf32> to vector<8x192xf32>
    %340 = arith.negf %339 : vector<8x192xf32>
    %341 = math.exp %340 : vector<8x192xf32>
    %cst_93 = arith.constant 1.000000e+00 : f32
    %342 = vector.broadcast %cst_93 : f32 to vector<8x192xf32>
    %343 = arith.addf %342, %341 : vector<8x192xf32>
    %344 = arith.divf %342, %343 : vector<8x192xf32>
    %345 = vector.extract_strided_slice %344 {offsets = [0, 0], sizes = [8, 64], strides = [1, 1]} : vector<8x192xf32> to vector<8x64xf32>
    %346 = vector.extract_strided_slice %344 {offsets = [0, 64], sizes = [8, 64], strides = [1, 1]} : vector<8x192xf32> to vector<8x64xf32>
    %347 = vector.extract_strided_slice %344 {offsets = [0, 128], sizes = [8, 64], strides = [1, 1]} : vector<8x192xf32> to vector<8x64xf32>
    %348 = vector.extract_strided_slice %338 {offsets = [0, 192], sizes = [8, 64], strides = [1, 1]} : vector<8x256xf32> to vector<8x64xf32>
    %349 = math.tanh %348 : vector<8x64xf32>
    %350 = arith.mulf %346, %332 : vector<8x64xf32>
    %351 = arith.mulf %345, %349 : vector<8x64xf32>
    %352 = arith.addf %350, %351 : vector<8x64xf32>
    %353 = math.tanh %352 : vector<8x64xf32>
    %354 = arith.mulf %347, %353 : vector<8x64xf32>
    %c8_94 = arith.constant 8 : index
    %c0_95 = arith.constant 0 : index
    %355 = vector.load %arg7[%c8_94, %c0_95] : memref<56x64xf32, #tpu.memory_space<vmem>>, vector<8x64xf32>
    tpu.vector_store %arg7[%c8_94, %c0_95], %354 {strides = array<i32>} : memref<56x64xf32, #tpu.memory_space<vmem>>, vector<8x64xf32>,
    %356 = vector.extract_strided_slice %311 {offsets = [16, 0], sizes = [8, 256], strides = [1, 1]} : vector<56x256xf32> to vector<8x256xf32>
    %cst_96 = arith.constant dense<0.000000e+00> : vector<8x256xf32>
    %357 = tpu.matmul %354, %313, %cst_96 {dimension_numbers = #tpu.dot_dimension_numbers<[1], [0], [0], [1], [0, 0, 1, 1], [], []>} : vector<8x64xf32>, vector<64x256xf32>, vector<8x256xf32> -> vector<8x256xf32>
    %358 = arith.addf %356, %357 : vector<8x256xf32>
    %359 = vector.extract_strided_slice %358 {offsets = [0, 0], sizes = [8, 192], strides = [1, 1]} : vector<8x256xf32> to vector<8x192xf32>
    %360 = arith.negf %359 : vector<8x192xf32>
    %361 = math.exp %360 : vector<8x192xf32>
    %cst_97 = arith.constant 1.000000e+00 : f32
    %362 = vector.broadcast %cst_97 : f32 to vector<8x192xf32>
    %363 = arith.addf %362, %361 : vector<8x192xf32>
    %364 = arith.divf %362, %363 : vector<8x192xf32>
    %365 = vector.extract_strided_slice %364 {offsets = [0, 0], sizes = [8, 64], strides = [1, 1]} : vector<8x192xf32> to vector<8x64xf32>
    %366 = vector.extract_strided_slice %364 {offsets = [0, 64], sizes = [8, 64], strides = [1, 1]} : vector<8x192xf32> to vector<8x64xf32>
    %367 = vector.extract_strided_slice %364 {offsets = [0, 128], sizes = [8, 64], strides = [1, 1]} : vector<8x192xf32> to vector<8x64xf32>
    %368 = vector.extract_strided_slice %358 {offsets = [0, 192], sizes = [8, 64], strides = [1, 1]} : vector<8x256xf32> to vector<8x64xf32>
    %369 = math.tanh %368 : vector<8x64xf32>
    %370 = arith.mulf %366, %352 : vector<8x64xf32>
    %371 = arith.mulf %365, %369 : vector<8x64xf32>
    %372 = arith.addf %370, %371 : vector<8x64xf32>
    %373 = math.tanh %372 : vector<8x64xf32>
    %374 = arith.mulf %367, %373 : vector<8x64xf32>
    %c16_98 = arith.constant 16 : index
    %c0_99 = arith.constant 0 : index
    %375 = vector.load %arg7[%c16_98, %c0_99] : memref<56x64xf32, #tpu.memory_space<vmem>>, vector<8x64xf32>
    tpu.vector_store %arg7[%c16_98, %c0_99], %374 {strides = array<i32>} : memref<56x64xf32, #tpu.memory_space<vmem>>, vector<8x64xf32>,
    %376 = vector.extract_strided_slice %311 {offsets = [24, 0], sizes = [8, 256], strides = [1, 1]} : vector<56x256xf32> to vector<8x256xf32>
    %cst_100 = arith.constant dense<0.000000e+00> : vector<8x256xf32>
    %377 = tpu.matmul %374, %313, %cst_100 {dimension_numbers = #tpu.dot_dimension_numbers<[1], [0], [0], [1], [0, 0, 1, 1], [], []>} : vector<8x64xf32>, vector<64x256xf32>, vector<8x256xf32> -> vector<8x256xf32>
    %378 = arith.addf %376, %377 : vector<8x256xf32>
    %379 = vector.extract_strided_slice %378 {offsets = [0, 0], sizes = [8, 192], strides = [1, 1]} : vector<8x256xf32> to vector<8x192xf32>
    %380 = arith.negf %379 : vector<8x192xf32>
    %381 = math.exp %380 : vector<8x192xf32>
    %cst_101 = arith.constant 1.000000e+00 : f32
    %382 = vector.broadcast %cst_101 : f32 to vector<8x192xf32>
    %383 = arith.addf %382, %381 : vector<8x192xf32>
    %384 = arith.divf %382, %383 : vector<8x192xf32>
    %385 = vector.extract_strided_slice %384 {offsets = [0, 0], sizes = [8, 64], strides = [1, 1]} : vector<8x192xf32> to vector<8x64xf32>
    %386 = vector.extract_strided_slice %384 {offsets = [0, 64], sizes = [8, 64], strides = [1, 1]} : vector<8x192xf32> to vector<8x64xf32>
    %387 = vector.extract_strided_slice %384 {offsets = [0, 128], sizes = [8, 64], strides = [1, 1]} : vector<8x192xf32> to vector<8x64xf32>
    %388 = vector.extract_strided_slice %378 {offsets = [0, 192], sizes = [8, 64], strides = [1, 1]} : vector<8x256xf32> to vector<8x64xf32>
    %389 = math.tanh %388 : vector<8x64xf32>
    %390 = arith.mulf %386, %372 : vector<8x64xf32>
    %391 = arith.mulf %385, %389 : vector<8x64xf32>
    %392 = arith.addf %390, %391 : vector<8x64xf32>
    %393 = math.tanh %392 : vector<8x64xf32>
    %394 = arith.mulf %387, %393 : vector<8x64xf32>
    %c24_102 = arith.constant 24 : index
    %c0_103 = arith.constant 0 : index
    %395 = vector.load %arg7[%c24_102, %c0_103] : memref<56x64xf32, #tpu.memory_space<vmem>>, vector<8x64xf32>
    tpu.vector_store %arg7[%c24_102, %c0_103], %394 {strides = array<i32>} : memref<56x64xf32, #tpu.memory_space<vmem>>, vector<8x64xf32>,
    %396 = vector.extract_strided_slice %311 {offsets = [32, 0], sizes = [8, 256], strides = [1, 1]} : vector<56x256xf32> to vector<8x256xf32>
    %cst_104 = arith.constant dense<0.000000e+00> : vector<8x256xf32>
    %397 = tpu.matmul %394, %313, %cst_104 {dimension_numbers = #tpu.dot_dimension_numbers<[1], [0], [0], [1], [0, 0, 1, 1], [], []>} : vector<8x64xf32>, vector<64x256xf32>, vector<8x256xf32> -> vector<8x256xf32>
    %398 = arith.addf %396, %397 : vector<8x256xf32>
    %399 = vector.extract_strided_slice %398 {offsets = [0, 0], sizes = [8, 192], strides = [1, 1]} : vector<8x256xf32> to vector<8x192xf32>
    %400 = arith.negf %399 : vector<8x192xf32>
    %401 = math.exp %400 : vector<8x192xf32>
    %cst_105 = arith.constant 1.000000e+00 : f32
    %402 = vector.broadcast %cst_105 : f32 to vector<8x192xf32>
    %403 = arith.addf %402, %401 : vector<8x192xf32>
    %404 = arith.divf %402, %403 : vector<8x192xf32>
    %405 = vector.extract_strided_slice %404 {offsets = [0, 0], sizes = [8, 64], strides = [1, 1]} : vector<8x192xf32> to vector<8x64xf32>
    %406 = vector.extract_strided_slice %404 {offsets = [0, 64], sizes = [8, 64], strides = [1, 1]} : vector<8x192xf32> to vector<8x64xf32>
    %407 = vector.extract_strided_slice %404 {offsets = [0, 128], sizes = [8, 64], strides = [1, 1]} : vector<8x192xf32> to vector<8x64xf32>
    %408 = vector.extract_strided_slice %398 {offsets = [0, 192], sizes = [8, 64], strides = [1, 1]} : vector<8x256xf32> to vector<8x64xf32>
    %409 = math.tanh %408 : vector<8x64xf32>
    %410 = arith.mulf %406, %392 : vector<8x64xf32>
    %411 = arith.mulf %405, %409 : vector<8x64xf32>
    %412 = arith.addf %410, %411 : vector<8x64xf32>
    %413 = math.tanh %412 : vector<8x64xf32>
    %414 = arith.mulf %407, %413 : vector<8x64xf32>
    %c32_106 = arith.constant 32 : index
    %c0_107 = arith.constant 0 : index
    %415 = vector.load %arg7[%c32_106, %c0_107] : memref<56x64xf32, #tpu.memory_space<vmem>>, vector<8x64xf32>
    tpu.vector_store %arg7[%c32_106, %c0_107], %414 {strides = array<i32>} : memref<56x64xf32, #tpu.memory_space<vmem>>, vector<8x64xf32>,
    %416 = vector.extract_strided_slice %311 {offsets = [40, 0], sizes = [8, 256], strides = [1, 1]} : vector<56x256xf32> to vector<8x256xf32>
    %cst_108 = arith.constant dense<0.000000e+00> : vector<8x256xf32>
    %417 = tpu.matmul %414, %313, %cst_108 {dimension_numbers = #tpu.dot_dimension_numbers<[1], [0], [0], [1], [0, 0, 1, 1], [], []>} : vector<8x64xf32>, vector<64x256xf32>, vector<8x256xf32> -> vector<8x256xf32>
    %418 = arith.addf %416, %417 : vector<8x256xf32>
    %419 = vector.extract_strided_slice %418 {offsets = [0, 0], sizes = [8, 192], strides = [1, 1]} : vector<8x256xf32> to vector<8x192xf32>
    %420 = arith.negf %419 : vector<8x192xf32>
    %421 = math.exp %420 : vector<8x192xf32>
    %cst_109 = arith.constant 1.000000e+00 : f32
    %422 = vector.broadcast %cst_109 : f32 to vector<8x192xf32>
    %423 = arith.addf %422, %421 : vector<8x192xf32>
    %424 = arith.divf %422, %423 : vector<8x192xf32>
    %425 = vector.extract_strided_slice %424 {offsets = [0, 0], sizes = [8, 64], strides = [1, 1]} : vector<8x192xf32> to vector<8x64xf32>
    %426 = vector.extract_strided_slice %424 {offsets = [0, 64], sizes = [8, 64], strides = [1, 1]} : vector<8x192xf32> to vector<8x64xf32>
    %427 = vector.extract_strided_slice %424 {offsets = [0, 128], sizes = [8, 64], strides = [1, 1]} : vector<8x192xf32> to vector<8x64xf32>
    %428 = vector.extract_strided_slice %418 {offsets = [0, 192], sizes = [8, 64], strides = [1, 1]} : vector<8x256xf32> to vector<8x64xf32>
    %429 = math.tanh %428 : vector<8x64xf32>
    %430 = arith.mulf %426, %412 : vector<8x64xf32>
    %431 = arith.mulf %425, %429 : vector<8x64xf32>
    %432 = arith.addf %430, %431 : vector<8x64xf32>
    %433 = math.tanh %432 : vector<8x64xf32>
    %434 = arith.mulf %427, %433 : vector<8x64xf32>
    %c40_110 = arith.constant 40 : index
    %c0_111 = arith.constant 0 : index
    %435 = vector.load %arg7[%c40_110, %c0_111] : memref<56x64xf32, #tpu.memory_space<vmem>>, vector<8x64xf32>
    tpu.vector_store %arg7[%c40_110, %c0_111], %434 {strides = array<i32>} : memref<56x64xf32, #tpu.memory_space<vmem>>, vector<8x64xf32>,
    %436 = vector.extract_strided_slice %311 {offsets = [48, 0], sizes = [8, 256], strides = [1, 1]} : vector<56x256xf32> to vector<8x256xf32>
    %cst_112 = arith.constant dense<0.000000e+00> : vector<8x256xf32>
    %437 = tpu.matmul %434, %313, %cst_112 {dimension_numbers = #tpu.dot_dimension_numbers<[1], [0], [0], [1], [0, 0, 1, 1], [], []>} : vector<8x64xf32>, vector<64x256xf32>, vector<8x256xf32> -> vector<8x256xf32>
    %438 = arith.addf %436, %437 : vector<8x256xf32>
    %439 = vector.extract_strided_slice %438 {offsets = [0, 0], sizes = [8, 192], strides = [1, 1]} : vector<8x256xf32> to vector<8x192xf32>
    %440 = arith.negf %439 : vector<8x192xf32>
    %441 = math.exp %440 : vector<8x192xf32>
    %cst_113 = arith.constant 1.000000e+00 : f32
    %442 = vector.broadcast %cst_113 : f32 to vector<8x192xf32>
    %443 = arith.addf %442, %441 : vector<8x192xf32>
    %444 = arith.divf %442, %443 : vector<8x192xf32>
    %445 = vector.extract_strided_slice %444 {offsets = [0, 0], sizes = [8, 64], strides = [1, 1]} : vector<8x192xf32> to vector<8x64xf32>
    %446 = vector.extract_strided_slice %444 {offsets = [0, 64], sizes = [8, 64], strides = [1, 1]} : vector<8x192xf32> to vector<8x64xf32>
    %447 = vector.extract_strided_slice %444 {offsets = [0, 128], sizes = [8, 64], strides = [1, 1]} : vector<8x192xf32> to vector<8x64xf32>
    %448 = vector.extract_strided_slice %438 {offsets = [0, 192], sizes = [8, 64], strides = [1, 1]} : vector<8x256xf32> to vector<8x64xf32>
    %449 = math.tanh %448 : vector<8x64xf32>
    %450 = arith.mulf %446, %432 : vector<8x64xf32>
    %451 = arith.mulf %445, %449 : vector<8x64xf32>
    %452 = arith.addf %450, %451 : vector<8x64xf32>
    %453 = math.tanh %452 : vector<8x64xf32>
    %454 = arith.mulf %447, %453 : vector<8x64xf32>
    %c48_114 = arith.constant 48 : index
    %c0_115 = arith.constant 0 : index
    %455 = vector.load %arg7[%c48_114, %c0_115] : memref<56x64xf32, #tpu.memory_space<vmem>>, vector<8x64xf32>
    tpu.vector_store %arg7[%c48_114, %c0_115], %454 {strides = array<i32>} : memref<56x64xf32, #tpu.memory_space<vmem>>, vector<8x64xf32>,
    %c0_116 = arith.constant 0 : index
    %c0_117 = arith.constant 0 : index
    %456 = vector.load %arg7[%c0_116, %c0_117] : memref<56x64xf32, #tpu.memory_space<vmem>>, vector<56x64xf32>
    %c3 = arith.constant 3 : index
    %c0_118 = arith.constant 0 : index
    %c0_119 = arith.constant 0 : index
    %457 = vector.load %arg1[%c3, %c0_118, %c0_119] : memref<4x64x256xf32, #tpu.memory_space<vmem>>, vector<1x64x256xf32>
    %458 = vector.shape_cast %457 : vector<1x64x256xf32> to vector<64x256xf32>
    %cst_120 = arith.constant dense<0.000000e+00> : vector<56x256xf32>
    %459 = tpu.matmul %456, %458, %cst_120 {dimension_numbers = #tpu.dot_dimension_numbers<[1], [0], [0], [1], [0, 0, 1, 1], [], []>} : vector<56x64xf32>, vector<64x256xf32>, vector<56x256xf32> -> vector<56x256xf32>
    %c3_121 = arith.constant 3 : index
    %c0_122 = arith.constant 0 : index
    %c0_123 = arith.constant 0 : index
    %460 = vector.load %arg3[%c3_121, %c0_122, %c0_123] : memref<4x1x256xf32, #tpu.memory_space<vmem>>, vector<1x1x256xf32>
    %461 = vector.shape_cast %460 : vector<1x1x256xf32> to vector<1x256xf32>
    %462 = vector.broadcast %461 : vector<1x256xf32> to vector<56x256xf32>
    %463 = arith.addf %459, %462 : vector<56x256xf32>
    %c3_124 = arith.constant 3 : index
    %c0_125 = arith.constant 0 : index
    %c0_126 = arith.constant 0 : index
    %464 = vector.load %arg2[%c3_124, %c0_125, %c0_126] : memref<4x64x256xf32, #tpu.memory_space<vmem>>, vector<1x64x256xf32>
    %465 = vector.shape_cast %464 : vector<1x64x256xf32> to vector<64x256xf32>
    %cst_127 = arith.constant 0.000000e+00 : f32
    %466 = vector.broadcast %cst_127 : f32 to vector<8x64xf32>
    %cst_128 = arith.constant 0.000000e+00 : f32
    %467 = vector.broadcast %cst_128 : f32 to vector<8x64xf32>
    %468 = vector.extract_strided_slice %463 {offsets = [0, 0], sizes = [8, 256], strides = [1, 1]} : vector<56x256xf32> to vector<8x256xf32>
    %cst_129 = arith.constant dense<0.000000e+00> : vector<8x256xf32>
    %469 = tpu.matmul %466, %465, %cst_129 {dimension_numbers = #tpu.dot_dimension_numbers<[1], [0], [0], [1], [0, 0, 1, 1], [], []>} : vector<8x64xf32>, vector<64x256xf32>, vector<8x256xf32> -> vector<8x256xf32>
    %470 = arith.addf %468, %469 : vector<8x256xf32>
    %471 = vector.extract_strided_slice %470 {offsets = [0, 0], sizes = [8, 192], strides = [1, 1]} : vector<8x256xf32> to vector<8x192xf32>
    %472 = arith.negf %471 : vector<8x192xf32>
    %473 = math.exp %472 : vector<8x192xf32>
    %cst_130 = arith.constant 1.000000e+00 : f32
    %474 = vector.broadcast %cst_130 : f32 to vector<8x192xf32>
    %475 = arith.addf %474, %473 : vector<8x192xf32>
    %476 = arith.divf %474, %475 : vector<8x192xf32>
    %477 = vector.extract_strided_slice %476 {offsets = [0, 0], sizes = [8, 64], strides = [1, 1]} : vector<8x192xf32> to vector<8x64xf32>
    %478 = vector.extract_strided_slice %476 {offsets = [0, 64], sizes = [8, 64], strides = [1, 1]} : vector<8x192xf32> to vector<8x64xf32>
    %479 = vector.extract_strided_slice %476 {offsets = [0, 128], sizes = [8, 64], strides = [1, 1]} : vector<8x192xf32> to vector<8x64xf32>
    %480 = vector.extract_strided_slice %470 {offsets = [0, 192], sizes = [8, 64], strides = [1, 1]} : vector<8x256xf32> to vector<8x64xf32>
    %481 = math.tanh %480 : vector<8x64xf32>
    %482 = arith.mulf %478, %467 : vector<8x64xf32>
    %483 = arith.mulf %477, %481 : vector<8x64xf32>
    %484 = arith.addf %482, %483 : vector<8x64xf32>
    %485 = math.tanh %484 : vector<8x64xf32>
    %486 = arith.mulf %479, %485 : vector<8x64xf32>
    %487 = vector.extract_strided_slice %463 {offsets = [8, 0], sizes = [8, 256], strides = [1, 1]} : vector<56x256xf32> to vector<8x256xf32>
    %cst_131 = arith.constant dense<0.000000e+00> : vector<8x256xf32>
    %488 = tpu.matmul %486, %465, %cst_131 {dimension_numbers = #tpu.dot_dimension_numbers<[1], [0], [0], [1], [0, 0, 1, 1], [], []>} : vector<8x64xf32>, vector<64x256xf32>, vector<8x256xf32> -> vector<8x256xf32>
    %489 = arith.addf %487, %488 : vector<8x256xf32>
    %490 = vector.extract_strided_slice %489 {offsets = [0, 0], sizes = [8, 192], strides = [1, 1]} : vector<8x256xf32> to vector<8x192xf32>
    %491 = arith.negf %490 : vector<8x192xf32>
    %492 = math.exp %491 : vector<8x192xf32>
    %cst_132 = arith.constant 1.000000e+00 : f32
    %493 = vector.broadcast %cst_132 : f32 to vector<8x192xf32>
    %494 = arith.addf %493, %492 : vector<8x192xf32>
    %495 = arith.divf %493, %494 : vector<8x192xf32>
    %496 = vector.extract_strided_slice %495 {offsets = [0, 0], sizes = [8, 64], strides = [1, 1]} : vector<8x192xf32> to vector<8x64xf32>
    %497 = vector.extract_strided_slice %495 {offsets = [0, 64], sizes = [8, 64], strides = [1, 1]} : vector<8x192xf32> to vector<8x64xf32>
    %498 = vector.extract_strided_slice %495 {offsets = [0, 128], sizes = [8, 64], strides = [1, 1]} : vector<8x192xf32> to vector<8x64xf32>
    %499 = vector.extract_strided_slice %489 {offsets = [0, 192], sizes = [8, 64], strides = [1, 1]} : vector<8x256xf32> to vector<8x64xf32>
    %500 = math.tanh %499 : vector<8x64xf32>
    %501 = arith.mulf %497, %484 : vector<8x64xf32>
    %502 = arith.mulf %496, %500 : vector<8x64xf32>
    %503 = arith.addf %501, %502 : vector<8x64xf32>
    %504 = math.tanh %503 : vector<8x64xf32>
    %505 = arith.mulf %498, %504 : vector<8x64xf32>
    %506 = vector.extract_strided_slice %463 {offsets = [16, 0], sizes = [8, 256], strides = [1, 1]} : vector<56x256xf32> to vector<8x256xf32>
    %cst_133 = arith.constant dense<0.000000e+00> : vector<8x256xf32>
    %507 = tpu.matmul %505, %465, %cst_133 {dimension_numbers = #tpu.dot_dimension_numbers<[1], [0], [0], [1], [0, 0, 1, 1], [], []>} : vector<8x64xf32>, vector<64x256xf32>, vector<8x256xf32> -> vector<8x256xf32>
    %508 = arith.addf %506, %507 : vector<8x256xf32>
    %509 = vector.extract_strided_slice %508 {offsets = [0, 0], sizes = [8, 192], strides = [1, 1]} : vector<8x256xf32> to vector<8x192xf32>
    %510 = arith.negf %509 : vector<8x192xf32>
    %511 = math.exp %510 : vector<8x192xf32>
    %cst_134 = arith.constant 1.000000e+00 : f32
    %512 = vector.broadcast %cst_134 : f32 to vector<8x192xf32>
    %513 = arith.addf %512, %511 : vector<8x192xf32>
    %514 = arith.divf %512, %513 : vector<8x192xf32>
    %515 = vector.extract_strided_slice %514 {offsets = [0, 0], sizes = [8, 64], strides = [1, 1]} : vector<8x192xf32> to vector<8x64xf32>
    %516 = vector.extract_strided_slice %514 {offsets = [0, 64], sizes = [8, 64], strides = [1, 1]} : vector<8x192xf32> to vector<8x64xf32>
    %517 = vector.extract_strided_slice %514 {offsets = [0, 128], sizes = [8, 64], strides = [1, 1]} : vector<8x192xf32> to vector<8x64xf32>
    %518 = vector.extract_strided_slice %508 {offsets = [0, 192], sizes = [8, 64], strides = [1, 1]} : vector<8x256xf32> to vector<8x64xf32>
    %519 = math.tanh %518 : vector<8x64xf32>
    %520 = arith.mulf %516, %503 : vector<8x64xf32>
    %521 = arith.mulf %515, %519 : vector<8x64xf32>
    %522 = arith.addf %520, %521 : vector<8x64xf32>
    %523 = math.tanh %522 : vector<8x64xf32>
    %524 = arith.mulf %517, %523 : vector<8x64xf32>
    %525 = vector.extract_strided_slice %463 {offsets = [24, 0], sizes = [8, 256], strides = [1, 1]} : vector<56x256xf32> to vector<8x256xf32>
    %cst_135 = arith.constant dense<0.000000e+00> : vector<8x256xf32>
    %526 = tpu.matmul %524, %465, %cst_135 {dimension_numbers = #tpu.dot_dimension_numbers<[1], [0], [0], [1], [0, 0, 1, 1], [], []>} : vector<8x64xf32>, vector<64x256xf32>, vector<8x256xf32> -> vector<8x256xf32>
    %527 = arith.addf %525, %526 : vector<8x256xf32>
    %528 = vector.extract_strided_slice %527 {offsets = [0, 0], sizes = [8, 192], strides = [1, 1]} : vector<8x256xf32> to vector<8x192xf32>
    %529 = arith.negf %528 : vector<8x192xf32>
    %530 = math.exp %529 : vector<8x192xf32>
    %cst_136 = arith.constant 1.000000e+00 : f32
    %531 = vector.broadcast %cst_136 : f32 to vector<8x192xf32>
    %532 = arith.addf %531, %530 : vector<8x192xf32>
    %533 = arith.divf %531, %532 : vector<8x192xf32>
    %534 = vector.extract_strided_slice %533 {offsets = [0, 0], sizes = [8, 64], strides = [1, 1]} : vector<8x192xf32> to vector<8x64xf32>
    %535 = vector.extract_strided_slice %533 {offsets = [0, 64], sizes = [8, 64], strides = [1, 1]} : vector<8x192xf32> to vector<8x64xf32>
    %536 = vector.extract_strided_slice %533 {offsets = [0, 128], sizes = [8, 64], strides = [1, 1]} : vector<8x192xf32> to vector<8x64xf32>
    %537 = vector.extract_strided_slice %527 {offsets = [0, 192], sizes = [8, 64], strides = [1, 1]} : vector<8x256xf32> to vector<8x64xf32>
    %538 = math.tanh %537 : vector<8x64xf32>
    %539 = arith.mulf %535, %522 : vector<8x64xf32>
    %540 = arith.mulf %534, %538 : vector<8x64xf32>
    %541 = arith.addf %539, %540 : vector<8x64xf32>
    %542 = math.tanh %541 : vector<8x64xf32>
    %543 = arith.mulf %536, %542 : vector<8x64xf32>
    %544 = vector.extract_strided_slice %463 {offsets = [32, 0], sizes = [8, 256], strides = [1, 1]} : vector<56x256xf32> to vector<8x256xf32>
    %cst_137 = arith.constant dense<0.000000e+00> : vector<8x256xf32>
    %545 = tpu.matmul %543, %465, %cst_137 {dimension_numbers = #tpu.dot_dimension_numbers<[1], [0], [0], [1], [0, 0, 1, 1], [], []>} : vector<8x64xf32>, vector<64x256xf32>, vector<8x256xf32> -> vector<8x256xf32>
    %546 = arith.addf %544, %545 : vector<8x256xf32>
    %547 = vector.extract_strided_slice %546 {offsets = [0, 0], sizes = [8, 192], strides = [1, 1]} : vector<8x256xf32> to vector<8x192xf32>
    %548 = arith.negf %547 : vector<8x192xf32>
    %549 = math.exp %548 : vector<8x192xf32>
    %cst_138 = arith.constant 1.000000e+00 : f32
    %550 = vector.broadcast %cst_138 : f32 to vector<8x192xf32>
    %551 = arith.addf %550, %549 : vector<8x192xf32>
    %552 = arith.divf %550, %551 : vector<8x192xf32>
    %553 = vector.extract_strided_slice %552 {offsets = [0, 0], sizes = [8, 64], strides = [1, 1]} : vector<8x192xf32> to vector<8x64xf32>
    %554 = vector.extract_strided_slice %552 {offsets = [0, 64], sizes = [8, 64], strides = [1, 1]} : vector<8x192xf32> to vector<8x64xf32>
    %555 = vector.extract_strided_slice %552 {offsets = [0, 128], sizes = [8, 64], strides = [1, 1]} : vector<8x192xf32> to vector<8x64xf32>
    %556 = vector.extract_strided_slice %546 {offsets = [0, 192], sizes = [8, 64], strides = [1, 1]} : vector<8x256xf32> to vector<8x64xf32>
    %557 = math.tanh %556 : vector<8x64xf32>
    %558 = arith.mulf %554, %541 : vector<8x64xf32>
    %559 = arith.mulf %553, %557 : vector<8x64xf32>
    %560 = arith.addf %558, %559 : vector<8x64xf32>
    %561 = math.tanh %560 : vector<8x64xf32>
    %562 = arith.mulf %555, %561 : vector<8x64xf32>
    %563 = vector.extract_strided_slice %463 {offsets = [40, 0], sizes = [8, 256], strides = [1, 1]} : vector<56x256xf32> to vector<8x256xf32>
    %cst_139 = arith.constant dense<0.000000e+00> : vector<8x256xf32>
    %564 = tpu.matmul %562, %465, %cst_139 {dimension_numbers = #tpu.dot_dimension_numbers<[1], [0], [0], [1], [0, 0, 1, 1], [], []>} : vector<8x64xf32>, vector<64x256xf32>, vector<8x256xf32> -> vector<8x256xf32>
    %565 = arith.addf %563, %564 : vector<8x256xf32>
    %566 = vector.extract_strided_slice %565 {offsets = [0, 0], sizes = [8, 192], strides = [1, 1]} : vector<8x256xf32> to vector<8x192xf32>
    %567 = arith.negf %566 : vector<8x192xf32>
    %568 = math.exp %567 : vector<8x192xf32>
    %cst_140 = arith.constant 1.000000e+00 : f32
    %569 = vector.broadcast %cst_140 : f32 to vector<8x192xf32>
    %570 = arith.addf %569, %568 : vector<8x192xf32>
    %571 = arith.divf %569, %570 : vector<8x192xf32>
    %572 = vector.extract_strided_slice %571 {offsets = [0, 0], sizes = [8, 64], strides = [1, 1]} : vector<8x192xf32> to vector<8x64xf32>
    %573 = vector.extract_strided_slice %571 {offsets = [0, 64], sizes = [8, 64], strides = [1, 1]} : vector<8x192xf32> to vector<8x64xf32>
    %574 = vector.extract_strided_slice %571 {offsets = [0, 128], sizes = [8, 64], strides = [1, 1]} : vector<8x192xf32> to vector<8x64xf32>
    %575 = vector.extract_strided_slice %565 {offsets = [0, 192], sizes = [8, 64], strides = [1, 1]} : vector<8x256xf32> to vector<8x64xf32>
    %576 = math.tanh %575 : vector<8x64xf32>
    %577 = arith.mulf %573, %560 : vector<8x64xf32>
    %578 = arith.mulf %572, %576 : vector<8x64xf32>
    %579 = arith.addf %577, %578 : vector<8x64xf32>
    %580 = math.tanh %579 : vector<8x64xf32>
    %581 = arith.mulf %574, %580 : vector<8x64xf32>
    %582 = vector.extract_strided_slice %463 {offsets = [48, 0], sizes = [8, 256], strides = [1, 1]} : vector<56x256xf32> to vector<8x256xf32>
    %cst_141 = arith.constant dense<0.000000e+00> : vector<8x256xf32>
    %583 = tpu.matmul %581, %465, %cst_141 {dimension_numbers = #tpu.dot_dimension_numbers<[1], [0], [0], [1], [0, 0, 1, 1], [], []>} : vector<8x64xf32>, vector<64x256xf32>, vector<8x256xf32> -> vector<8x256xf32>
    %584 = arith.addf %582, %583 : vector<8x256xf32>
    %585 = vector.extract_strided_slice %584 {offsets = [0, 0], sizes = [8, 192], strides = [1, 1]} : vector<8x256xf32> to vector<8x192xf32>
    %586 = arith.negf %585 : vector<8x192xf32>
    %587 = math.exp %586 : vector<8x192xf32>
    %cst_142 = arith.constant 1.000000e+00 : f32
    %588 = vector.broadcast %cst_142 : f32 to vector<8x192xf32>
    %589 = arith.addf %588, %587 : vector<8x192xf32>
    %590 = arith.divf %588, %589 : vector<8x192xf32>
    %591 = vector.extract_strided_slice %590 {offsets = [0, 0], sizes = [8, 64], strides = [1, 1]} : vector<8x192xf32> to vector<8x64xf32>
    %592 = vector.extract_strided_slice %590 {offsets = [0, 64], sizes = [8, 64], strides = [1, 1]} : vector<8x192xf32> to vector<8x64xf32>
    %593 = vector.extract_strided_slice %590 {offsets = [0, 128], sizes = [8, 64], strides = [1, 1]} : vector<8x192xf32> to vector<8x64xf32>
    %594 = vector.extract_strided_slice %584 {offsets = [0, 192], sizes = [8, 64], strides = [1, 1]} : vector<8x256xf32> to vector<8x64xf32>
    %595 = math.tanh %594 : vector<8x64xf32>
    %596 = arith.mulf %592, %579 : vector<8x64xf32>
    %597 = arith.mulf %591, %595 : vector<8x64xf32>
    %598 = arith.addf %596, %597 : vector<8x64xf32>
    %599 = math.tanh %598 : vector<8x64xf32>
    %600 = arith.mulf %593, %599 : vector<8x64xf32>
    %c0_143 = arith.constant 0 : index
    %c0_144 = arith.constant 0 : index
    %601 = vector.load %arg4[%c0_143, %c0_144] : memref<1x64xf32, #tpu.memory_space<vmem>>, vector<1x64xf32>
    %602 = vector.broadcast %601 : vector<1x64xf32> to vector<8x64xf32>
    %603 = arith.mulf %600, %602 : vector<8x64xf32>
    %cst_145 = arith.constant dense<0.000000e+00> : vector<8xf32>
    %604 = vector.multi_reduction <add>, %603, %cst_145 [1] : vector<8x64xf32> to vector<8xf32>
    %605 = vector.shape_cast %604 : vector<8xf32> to vector<8x1xf32>
    %c0_146 = arith.constant 0 : index
    %c0_147 = arith.constant 0 : index
    %606 = vector.load %arg5[%c0_146, %c0_147] : memref<1x1xf32, #tpu.memory_space<vmem>>, vector<1x1xf32>
    %607 = vector.broadcast %606 : vector<1x1xf32> to vector<8x1xf32>
    %608 = arith.addf %605, %607 : vector<8x1xf32>
    %609 = vector.extract_strided_slice %608 {offsets = [0, 0], sizes = [2, 1], strides = [1, 1]} : vector<8x1xf32> to vector<2x1xf32>
    %610 = arith.negf %609 : vector<2x1xf32>
    %611 = math.exp %610 : vector<2x1xf32>
    %cst_148 = arith.constant 1.000000e+00 : f32
    %612 = vector.broadcast %cst_148 : f32 to vector<2x1xf32>
    %613 = arith.addf %612, %611 : vector<2x1xf32>
    %614 = arith.divf %612, %613 : vector<2x1xf32>
    %c0_149 = arith.constant 0 : index
    %c0_150 = arith.constant 0 : index
    %615 = vector.load %arg6[%c0_149, %c0_150] : memref<2x1xf32, #tpu.memory_space<vmem>>, vector<2x1xf32>
    tpu.vector_store %arg6[%c0_149, %c0_150], %614 {strides = array<i32>} : memref<2x1xf32, #tpu.memory_space<vmem>>, vector<2x1xf32>,
    return
  }
}

</mosaic_0001>

<llo_original>
// kernel: model_forward.2
$region0: #{model_forward.2}
  #allocation0 [shape = 'u32[]', space=smem, size = 0x4, offset = 0x4, fixed_abs, tag = 'smem constant byte address 0x4 - core index']
  #allocation1 [shape = 'u32[144,128]{1,0:T(1,128)}', space=vmem, size = 0x12000, scoped, tag = 'internal scratch']
  %s0 = inlined_call_operand.vmem [shape: f32[2,32,16], index: 0, kind: input, shape index: {}]
  %s1 = inlined_call_operand.vmem [shape: f32[64,128], index: 1, kind: input, shape index: {}]
  %s2 = inlined_call_operand.vmem [shape: f32[64,1], index: 2, kind: input, shape index: {}]
  %s3 = inlined_call_operand.vmem [shape: f32[64,256], index: 3, kind: input, shape index: {}]
  %s4 = inlined_call_operand.vmem [shape: f32[64,1], index: 4, kind: input, shape index: {}]
  %s5 = inlined_call_operand.hbm [shape: f32[64,256], index: 5, kind: input, shape index: {}]
  %s6 = inlined_call_operand.vmem [shape: f32[64,1], index: 6, kind: input, shape index: {}]
  %s7 = inlined_call_operand.vmem [shape: f32[2,64,7], index: 7, kind: output, shape index: {}]
  %s8 = sld [smem:[#allocation0]]
  $region42: #{model_forward.2} parent=0
    _
  %s10 = ssub.s32 1, %s8
  %s11 = scalar_select 0, %s10, %s8
  $region1: #{model_forward.2} parent=0
    #allocation2 [shape = 'u8[65536]{0}', space=vmem, size = 0x10000, scoped, tag = 'input window, operand 5, single buffered']
    #allocation3 [shape = 's32[1]{0}', space=sflag, size = 0x4, scoped, tag = 'scoped memory for model_forward.2']
    %12 = vsyncpa [#allocation3], 0
    // Predicated region
    $region2: #{model_forward.2} parent=1 // pred_check
      _
    $region3: #{model_forward.2} parent=1 // pred_check_branch
      %14 = sbr.rel (0) target = $region5
    $region4: #{model_forward.2} parent=1 // pred_region
      _
    $region5: #{model_forward.2} parent=1 // pred_fallthru
      _
    // Predicated region
    $region6: #{model_forward.2} parent=1 // pred_check
      _
    $region7: #{model_forward.2} parent=1 // pred_check_branch
      %16 = sbr.rel (0) target = $region9
    $region8: #{model_forward.2} parent=1 // pred_region
      _
    $region9: #{model_forward.2} parent=1 // pred_fallthru
      _
    // Predicated region
    $region10: #{model_forward.2} parent=1 // pred_check
      _
    $region11: #{model_forward.2} parent=1 // pred_check_branch
      %18 = sbr.rel (0) target = $region13
    $region12: #{model_forward.2} parent=1 // pred_region
      _
    $region13: #{model_forward.2} parent=1 // pred_fallthru
      _
    // Predicated region
    $region14: #{model_forward.2} parent=1 // pred_check
      _
    $region15: #{model_forward.2} parent=1 // pred_check_branch
      %20 = sbr.rel (0) target = $region17
    $region16: #{model_forward.2} parent=1 // pred_region
      _
    $region17: #{model_forward.2} parent=1 // pred_fallthru
      _
    // Predicated region
    $region18: #{model_forward.2} parent=1 // pred_check
      _
    $region19: #{model_forward.2} parent=1 // pred_check_branch
      %22 = sbr.rel (0) target = $region21
    $region20: #{model_forward.2} parent=1 // pred_region
      _
    $region21: #{model_forward.2} parent=1 // pred_fallthru
      _
    // Predicated region
    $region22: #{model_forward.2} parent=1 // pred_check
      _
    $region23: #{model_forward.2} parent=1 // pred_check_branch
      %24 = sbr.rel (0) target = $region25
    $region24: #{model_forward.2} parent=1 // pred_region
      %s26 = ssub.s32 2048, 2048
      %27 = vsyncadd [#allocation3], %s26
      %s28 = sshll.u32 [#allocation2], 4
      %s29 = int_to_ptr.vmem [resolvable:$true] %s28
      %34 = dma.hbm_to_vmem [thread:$0]  %s5, 2048, %s29, [#allocation3], 256, 256, 16
    $region25: #{model_forward.2} parent=1 // pred_fallthru
      _
    // Predicated region
    $region26: #{model_forward.2} parent=1 // pred_check
      _
    $region27: #{model_forward.2} parent=1 // pred_check_branch
      %36 = sbr.rel (0) target = $region29
    $region28: #{model_forward.2} parent=1 // pred_region
      _
    $region29: #{model_forward.2} parent=1 // pred_fallthru
      _
    // Predicated region
    $region30: #{model_forward.2} parent=1 // pred_check
      _
    $region31: #{model_forward.2} parent=1 // pred_check_branch
      %38 = sbr.rel (0) target = $region33
    $region32: #{model_forward.2} parent=1 // pred_region
      %39 = dma.done [#allocation3], 2048
    $region33: #{model_forward.2} parent=1 // pred_fallthru
      _
    %v40 = vld [vmem:[%s0] sm:$0xff]
    %v41 = vld [vmem:[%s0 + $0x8] sm:$0xff]
    %v42 = vld [vmem:[%s0 + $0x10] sm:$0xff]
    %v43 = vld [vmem:[%s0 + $0x18] sm:$0xff]
    %v44 = vld [vmem:[%s1] sm:$0xff]
    %v45 = vld [vmem:[%s1 + $0x8] sm:$0xff]
    %v46 = vld [vmem:[%s1 + $0x10] sm:$0xff]
    %v47 = vld [vmem:[%s1 + $0x18] sm:$0xff]
    %v48 = vld [vmem:[%s1 + $0x20] sm:$0xff]
    %v49 = vld [vmem:[%s1 + $0x28] sm:$0xff]
    %v50 = vld [vmem:[%s1 + $0x30] sm:$0xff]
    %v51 = vld [vmem:[%s1 + $0x38] sm:$0xff]
    %v52 = vld [vmem:[%s2] sm:$0xff]
    %v53 = vld [vmem:[%s2 + $0x8] sm:$0xff]
    %v54 = vld [vmem:[%s2 + $0x10] sm:$0xff]
    %v55 = vld [vmem:[%s2 + $0x18] sm:$0xff]
    %v56 = vld [vmem:[%s2 + $0x20] sm:$0xff]
    %v57 = vld [vmem:[%s2 + $0x28] sm:$0xff]
    %v58 = vld [vmem:[%s2 + $0x30] sm:$0xff]
    %v59 = vld [vmem:[%s2 + $0x38] sm:$0xff]
    %64 = vrot.lane.b32.xlu0 %v40, 127
    %v65 = vpop.permute.xlu0 %64
    %66 = vrot.lane.b32.xlu0 %v41, 127
    %v67 = vpop.permute.xlu0 %66
    %68 = vrot.lane.b32.xlu0 %v42, 127
    %v69 = vpop.permute.xlu0 %68
    %70 = vrot.lane.b32.xlu0 %v43, 127
    %v71 = vpop.permute.xlu0 %70
    %76 = vrot.lane.b32.xlu0 %v40, 126
    %v77 = vpop.permute.xlu0 %76
    %78 = vrot.lane.b32.xlu0 %v41, 126
    %v79 = vpop.permute.xlu0 %78
    %80 = vrot.lane.b32.xlu0 %v42, 126
    %v81 = vpop.permute.xlu0 %80
    %82 = vrot.lane.b32.xlu0 %v43, 126
    %v83 = vpop.permute.xlu0 %82
    %88 = vrot.lane.b32.xlu0 %v40, 125
    %v89 = vpop.permute.xlu0 %88
    %90 = vrot.lane.b32.xlu0 %v41, 125
    %v91 = vpop.permute.xlu0 %90
    %92 = vrot.lane.b32.xlu0 %v42, 125
    %v93 = vpop.permute.xlu0 %92
    %94 = vrot.lane.b32.xlu0 %v43, 125
    %v95 = vpop.permute.xlu0 %94
    %101 = vset.pattern.permute.xlu0 0
    %102 = vperm.xlu0 %101, %v52
    %v103 = vpop.permute.xlu0 %102
    %106 = vset.pattern.permute.xlu0 0
    %107 = vperm.xlu0 %106, %v53
    %v108 = vpop.permute.xlu0 %107
    %111 = vset.pattern.permute.xlu0 0
    %112 = vperm.xlu0 %111, %v54
    %v113 = vpop.permute.xlu0 %112
    %116 = vset.pattern.permute.xlu0 0
    %117 = vperm.xlu0 %116, %v55
    %v118 = vpop.permute.xlu0 %117
    %121 = vset.pattern.permute.xlu0 0
    %122 = vperm.xlu0 %121, %v56
    %v123 = vpop.permute.xlu0 %122
    %126 = vset.pattern.permute.xlu0 0
    %127 = vperm.xlu0 %126, %v57
    %v128 = vpop.permute.xlu0 %127
    %131 = vset.pattern.permute.xlu0 0
    %132 = vperm.xlu0 %131, %v58
    %v133 = vpop.permute.xlu0 %132
    %136 = vset.pattern.permute.xlu0 0
    %137 = vperm.xlu0 %136, %v59
    %v138 = vpop.permute.xlu0 %137
    %140 = vmatprep.subr.mxu0 0.0
    %141 = vmatpush1.msra.mxu0 %v40
    %142 = vmatprep.subr.mxu0 0.0
    %143 = vmatpush1.msra.mxu0 %v41
    %144 = vmatprep.subr.mxu0 0.0
    %145 = vmatpush1.msra.mxu0 %v42
    %146 = vmatprep.subr.mxu0 0.0
    %147 = vmatpush1.msra.mxu0 %v43
    %148 = vmatprep.subr.mxu0 0.0
    %149 = vmatpush1.msra.mxu0 %v65
    %150 = vmatprep.subr.mxu0 0.0
    %151 = vmatpush1.msra.mxu0 %v67
    %152 = vmatprep.subr.mxu0 0.0
    %153 = vmatpush1.msra.mxu0 %v69
    %154 = vmatprep.subr.mxu0 0.0
    %155 = vmatpush1.msra.mxu0 %v71
    %156 = vmatprep.subr.mxu0 0.0
    %157 = vmatpush1.msra.mxu0 %v77
    %158 = vmatprep.subr.mxu0 0.0
    %159 = vmatpush1.msra.mxu0 %v79
    %160 = vmatprep.subr.mxu0 0.0
    %161 = vmatpush1.msra.mxu0 %v81
    %162 = vmatprep.subr.mxu0 0.0
    %163 = vmatpush1.msra.mxu0 %v83
    %164 = vmatprep.subr.mxu0 0.0
    %165 = vmatpush1.msra.mxu0 %v89
    %166 = vmatprep.subr.mxu0 0.0
    %167 = vmatpush1.msra.mxu0 %v91
    %168 = vmatprep.subr.mxu0 0.0
    %169 = vmatpush1.msra.mxu0 %v93
    %170 = vmatprep.subr.mxu0 0.0
    %171 = vmatpush1.msra.mxu0 %v95
    %172 = vmatprep.subr.mxu0 0.0
    %173 = vmatpush1.msra.mxu0 0.0
    %174 = vmatprep.subr.mxu0 0.0
    %175 = vmatpush1.msra.mxu0 0.0
    %176 = vmatprep.subr.mxu0 0.0
    %177 = vmatpush1.msra.mxu0 0.0
    %178 = vmatprep.subr.mxu0 0.0
    %179 = vmatpush1.msra.mxu0 0.0
    %180 = vmatprep.subr.mxu0 0.0
    %181 = vmatpush1.msra.mxu0 0.0
    %182 = vmatprep.subr.mxu0 0.0
    %183 = vmatpush1.msra.mxu0 0.0
    %184 = vmatprep.subr.mxu0 0.0
    %185 = vmatpush1.msra.mxu0 0.0
    %186 = vmatprep.subr.mxu0 0.0
    %187 = vmatpush1.msra.mxu0 0.0
    %188 = vmatprep.subr.mxu0 0.0
    %189 = vmatpush1.msra.mxu0 0.0
    %190 = vmatprep.subr.mxu0 0.0
    %191 = vmatpush1.msra.mxu0 0.0
    %192 = vmatprep.subr.mxu0 0.0
    %193 = vmatpush1.msra.mxu0 0.0
    %194 = vmatprep.subr.mxu0 0.0
    %195 = vmatpush1.msra.mxu0 0.0
    %196 = vmatprep.subr.mxu0 0.0
    %197 = vmatpush1.msra.mxu0 0.0
    %198 = vmatprep.subr.mxu0 0.0
    %199 = vmatpush1.msra.mxu0 0.0
    %200 = vmatprep.subr.mxu0 0.0
    %201 = vmatpush1.msra.mxu0 0.0
    %202 = vmatprep.subr.mxu0 0.0
    %203 = vmatpush1.msra.mxu0 0.0
    %204 = vmatprep.mubr.f32.mxu0 0.0
    %205 = vmatmul.mubr.f32.gmra.mrb[0].mxu0 %v44
    %v206 = vpop.f32.mrb[0].mxu0
    %v207 = vadd.f32 %v103, %v206
    %v208 = vpop.f32.mrb[0].mxu0
    %209 = vmatprep.mubr.f32.mxu0 0.0
    %210 = vmatmul.mubr.f32.gmra.mrb[0].mxu0 %v45
    %v211 = vpop.f32.mrb[0].mxu0
    %v212 = vadd.f32 %v108, %v211
    %v213 = vpop.f32.mrb[0].mxu0
    %214 = vmatprep.mubr.f32.mxu0 0.0
    %215 = vmatmul.mubr.f32.gmra.mrb[0].mxu0 %v46
    %v216 = vpop.f32.mrb[0].mxu0
    %v217 = vadd.f32 %v113, %v216
    %v218 = vpop.f32.mrb[0].mxu0
    %219 = vmatprep.mubr.f32.mxu0 0.0
    %220 = vmatmul.mubr.f32.gmra.mrb[0].mxu0 %v47
    %v221 = vpop.f32.mrb[0].mxu0
    %v222 = vadd.f32 %v118, %v221
    %v223 = vpop.f32.mrb[0].mxu0
    %224 = vmatprep.mubr.f32.mxu0 0.0
    %225 = vmatmul.mubr.f32.gmra.mrb[0].mxu0 %v48
    %v226 = vpop.f32.mrb[0].mxu0
    %v227 = vadd.f32 %v123, %v226
    %v228 = vpop.f32.mrb[0].mxu0
    %229 = vmatprep.mubr.f32.mxu0 0.0
    %230 = vmatmul.mubr.f32.gmra.mrb[0].mxu0 %v49
    %v231 = vpop.f32.mrb[0].mxu0
    %v232 = vadd.f32 %v128, %v231
    %v233 = vpop.f32.mrb[0].mxu0
    %234 = vmatprep.mubr.f32.mxu0 0.0
    %235 = vmatmul.mubr.f32.gmra.mrb[0].mxu0 %v50
    %v236 = vpop.f32.mrb[0].mxu0
    %v237 = vadd.f32 %v133, %v236
    %v238 = vpop.f32.mrb[0].mxu0
    %239 = vmatprep.mubr.f32.mxu0 0.0
    %240 = vmatmul.mubr.f32.gmra.mrb[0].mxu0 %v51
    %v241 = vpop.f32.mrb[0].mxu0
    %v242 = vadd.f32 %v138, %v241
    %v243 = vpop.f32.mrb[0].mxu0
    %244 = vdwg.mxu0
    %v245 = vmax.f32 %v207, 0.0
    %v246 = vmax.f32 %v212, 0.0
    %v247 = vmax.f32 %v217, 0.0
    %v248 = vmax.f32 %v222, 0.0
    %v249 = vmax.f32 %v227, 0.0
    %v250 = vmax.f32 %v232, 0.0
    %v251 = vmax.f32 %v237, 0.0
    %v252 = vmax.f32 %v242, 0.0
    %v253 = vld [vmem:[%s3] sm:$0xff]
    %v254 = vld [vmem:[%s3 + $0x8] sm:$0xff]
    %v255 = vld [vmem:[%s3 + $0x10] sm:$0xff]
    %v256 = vld [vmem:[%s3 + $0x18] sm:$0xff]
    %v257 = vld [vmem:[%s3 + $0x20] sm:$0xff]
    %v258 = vld [vmem:[%s3 + $0x28] sm:$0xff]
    %v259 = vld [vmem:[%s3 + $0x30] sm:$0xff]
    %v260 = vld [vmem:[%s3 + $0x38] sm:$0xff]
    %v261 = vld [vmem:[%s3 + $0x40] sm:$0xff]
    %v262 = vld [vmem:[%s3 + $0x48] sm:$0xff]
    %v263 = vld [vmem:[%s3 + $0x50] sm:$0xff]
    %v264 = vld [vmem:[%s3 + $0x58] sm:$0xff]
    %v265 = vld [vmem:[%s3 + $0x60] sm:$0xff]
    %v266 = vld [vmem:[%s3 + $0x68] sm:$0xff]
    %v267 = vld [vmem:[%s3 + $0x70] sm:$0xff]
    %v268 = vld [vmem:[%s3 + $0x78] sm:$0xff]
    %v269 = vld [vmem:[%s4] sm:$0xff]
    %v270 = vld [vmem:[%s4 + $0x8] sm:$0xff]
    %v271 = vld [vmem:[%s4 + $0x10] sm:$0xff]
    %v272 = vld [vmem:[%s4 + $0x18] sm:$0xff]
    %v273 = vld [vmem:[%s4 + $0x20] sm:$0xff]
    %v274 = vld [vmem:[%s4 + $0x28] sm:$0xff]
    %v275 = vld [vmem:[%s4 + $0x30] sm:$0xff]
    %v276 = vld [vmem:[%s4 + $0x38] sm:$0xff]
    %285 = vrot.lane.b32.xlu0 %v245, 127
    %v286 = vpop.permute.xlu0 %285
    %287 = vrot.lane.b32.xlu0 %v246, 127
    %v288 = vpop.permute.xlu0 %287
    %289 = vrot.lane.b32.xlu0 %v247, 127
    %v290 = vpop.permute.xlu0 %289
    %291 = vrot.lane.b32.xlu0 %v248, 127
    %v292 = vpop.permute.xlu0 %291
    %293 = vrot.lane.b32.xlu0 %v249, 127
    %v294 = vpop.permute.xlu0 %293
    %295 = vrot.lane.b32.xlu0 %v250, 127
    %v296 = vpop.permute.xlu0 %295
    %297 = vrot.lane.b32.xlu0 %v251, 127
    %v298 = vpop.permute.xlu0 %297
    %299 = vrot.lane.b32.xlu0 %v252, 127
    %v300 = vpop.permute.xlu0 %299
    %309 = vrot.lane.b32.xlu0 %v245, 126
    %v310 = vpop.permute.xlu0 %309
    %311 = vrot.lane.b32.xlu0 %v246, 126
    %v312 = vpop.permute.xlu0 %311
    %313 = vrot.lane.b32.xlu0 %v247, 126
    %v314 = vpop.permute.xlu0 %313
    %315 = vrot.lane.b32.xlu0 %v248, 126
    %v316 = vpop.permute.xlu0 %315
    %317 = vrot.lane.b32.xlu0 %v249, 126
    %v318 = vpop.permute.xlu0 %317
    %319 = vrot.lane.b32.xlu0 %v250, 126
    %v320 = vpop.permute.xlu0 %319
    %321 = vrot.lane.b32.xlu0 %v251, 126
    %v322 = vpop.permute.xlu0 %321
    %323 = vrot.lane.b32.xlu0 %v252, 126
    %v324 = vpop.permute.xlu0 %323
    %333 = vrot.lane.b32.xlu0 %v245, 125
    %v334 = vpop.permute.xlu0 %333
    %335 = vrot.lane.b32.xlu0 %v246, 125
    %v336 = vpop.permute.xlu0 %335
    %337 = vrot.lane.b32.xlu0 %v247, 125
    %v338 = vpop.permute.xlu0 %337
    %339 = vrot.lane.b32.xlu0 %v248, 125
    %v340 = vpop.permute.xlu0 %339
    %341 = vrot.lane.b32.xlu0 %v249, 125
    %v342 = vpop.permute.xlu0 %341
    %343 = vrot.lane.b32.xlu0 %v250, 125
    %v344 = vpop.permute.xlu0 %343
    %345 = vrot.lane.b32.xlu0 %v251, 125
    %v346 = vpop.permute.xlu0 %345
    %347 = vrot.lane.b32.xlu0 %v252, 125
    %v348 = vpop.permute.xlu0 %347
    %358 = vset.pattern.permute.xlu0 0
    %359 = vperm.xlu0 %358, %v269
    %v360 = vpop.permute.xlu0 %359
    %363 = vset.pattern.permute.xlu0 0
    %364 = vperm.xlu0 %363, %v270
    %v365 = vpop.permute.xlu0 %364
    %368 = vset.pattern.permute.xlu0 0
    %369 = vperm.xlu0 %368, %v271
    %v370 = vpop.permute.xlu0 %369
    %373 = vset.pattern.permute.xlu0 0
    %374 = vperm.xlu0 %373, %v272
    %v375 = vpop.permute.xlu0 %374
    %378 = vset.pattern.permute.xlu0 0
    %379 = vperm.xlu0 %378, %v273
    %v380 = vpop.permute.xlu0 %379
    %383 = vset.pattern.permute.xlu0 0
    %384 = vperm.xlu0 %383, %v274
    %v385 = vpop.permute.xlu0 %384
    %388 = vset.pattern.permute.xlu0 0
    %389 = vperm.xlu0 %388, %v275
    %v390 = vpop.permute.xlu0 %389
    %393 = vset.pattern.permute.xlu0 0
    %394 = vperm.xlu0 %393, %v276
    %v395 = vpop.permute.xlu0 %394
    %397 = vmatprep.subr.mxu0 0.0
    %398 = vmatpush1.msra.mxu0 %v245
    %399 = vmatprep.subr.mxu0 0.0
    %400 = vmatpush1.msra.mxu0 %v246
    %401 = vmatprep.subr.mxu0 0.0
    %402 = vmatpush1.msra.mxu0 %v247
    %403 = vmatprep.subr.mxu0 0.0
    %404 = vmatpush1.msra.mxu0 %v248
    %405 = vmatprep.subr.mxu0 0.0
    %406 = vmatpush1.msra.mxu0 %v249
    %407 = vmatprep.subr.mxu0 0.0
    %408 = vmatpush1.msra.mxu0 %v250
    %409 = vmatprep.subr.mxu0 0.0
    %410 = vmatpush1.msra.mxu0 %v251
    %411 = vmatprep.subr.mxu0 0.0
    %412 = vmatpush1.msra.mxu0 %v252
    %413 = vmatprep.subr.mxu0 0.0
    %414 = vmatpush1.msra.mxu0 %v286
    %415 = vmatprep.subr.mxu0 0.0
    %416 = vmatpush1.msra.mxu0 %v288
    %417 = vmatprep.subr.mxu0 0.0
    %418 = vmatpush1.msra.mxu0 %v290
    %419 = vmatprep.subr.mxu0 0.0
    %420 = vmatpush1.msra.mxu0 %v292
    %421 = vmatprep.subr.mxu0 0.0
    %422 = vmatpush1.msra.mxu0 %v294
    %423 = vmatprep.subr.mxu0 0.0
    %424 = vmatpush1.msra.mxu0 %v296
    %425 = vmatprep.subr.mxu0 0.0
    %426 = vmatpush1.msra.mxu0 %v298
    %427 = vmatprep.subr.mxu0 0.0
    %428 = vmatpush1.msra.mxu0 %v300
    %429 = vmatprep.subr.mxu0 0.0
    %430 = vmatpush1.msra.mxu0 %v310
    %431 = vmatprep.subr.mxu0 0.0
    %432 = vmatpush1.msra.mxu0 %v312
    %433 = vmatprep.subr.mxu0 0.0
    %434 = vmatpush1.msra.mxu0 %v314
    %435 = vmatprep.subr.mxu0 0.0
    %436 = vmatpush1.msra.mxu0 %v316
    %437 = vmatprep.subr.mxu0 0.0
    %438 = vmatpush1.msra.mxu0 %v318
    %439 = vmatprep.subr.mxu0 0.0
    %440 = vmatpush1.msra.mxu0 %v320
    %441 = vmatprep.subr.mxu0 0.0
    %442 = vmatpush1.msra.mxu0 %v322
    %443 = vmatprep.subr.mxu0 0.0
    %444 = vmatpush1.msra.mxu0 %v324
    %445 = vmatprep.subr.mxu0 0.0
    %446 = vmatpush1.msra.mxu0 %v334
    %447 = vmatprep.subr.mxu0 0.0
    %448 = vmatpush1.msra.mxu0 %v336
    %449 = vmatprep.subr.mxu0 0.0
    %450 = vmatpush1.msra.mxu0 %v338
    %451 = vmatprep.subr.mxu0 0.0
    %452 = vmatpush1.msra.mxu0 %v340
    %453 = vmatprep.subr.mxu0 0.0
    %454 = vmatpush1.msra.mxu0 %v342
    %455 = vmatprep.subr.mxu0 0.0
    %456 = vmatpush1.msra.mxu0 %v344
    %457 = vmatprep.subr.mxu0 0.0
    %458 = vmatpush1.msra.mxu0 %v346
    %459 = vmatprep.subr.mxu0 0.0
    %460 = vmatpush1.msra.mxu0 %v348
    %461 = vmatprep.mubr.f32.mxu0 %v254
    %462 = vmatmul.mubr.f32.gmra.mrb[0].mxu0 %v253
    %v463 = vpop.f32.mrb[0].mxu0
    %v464 = vadd.f32 %v360, %v463
    %v465 = vpop.f32.mrb[0].mxu0
    %466 = vmatprep.mubr.f32.mxu0 %v256
    %467 = vmatmul.mubr.f32.gmra.mrb[0].mxu0 %v255
    %v468 = vpop.f32.mrb[0].mxu0
    %v469 = vadd.f32 %v365, %v468
    %v470 = vpop.f32.mrb[0].mxu0
    %471 = vmatprep.mubr.f32.mxu0 %v258
    %472 = vmatmul.mubr.f32.gmra.mrb[0].mxu0 %v257
    %v473 = vpop.f32.mrb[0].mxu0
    %v474 = vadd.f32 %v370, %v473
    %v475 = vpop.f32.mrb[0].mxu0
    %476 = vmatprep.mubr.f32.mxu0 %v260
    %477 = vmatmul.mubr.f32.gmra.mrb[0].mxu0 %v259
    %v478 = vpop.f32.mrb[0].mxu0
    %v479 = vadd.f32 %v375, %v478
    %v480 = vpop.f32.mrb[0].mxu0
    %481 = vmatprep.mubr.f32.mxu0 %v262
    %482 = vmatmul.mubr.f32.gmra.mrb[0].mxu0 %v261
    %v483 = vpop.f32.mrb[0].mxu0
    %v484 = vadd.f32 %v380, %v483
    %v485 = vpop.f32.mrb[0].mxu0
    %486 = vmatprep.mubr.f32.mxu0 %v264
    %487 = vmatmul.mubr.f32.gmra.mrb[0].mxu0 %v263
    %v488 = vpop.f32.mrb[0].mxu0
    %v489 = vadd.f32 %v385, %v488
    %v490 = vpop.f32.mrb[0].mxu0
    %491 = vmatprep.mubr.f32.mxu0 %v266
    %492 = vmatmul.mubr.f32.gmra.mrb[0].mxu0 %v265
    %v493 = vpop.f32.mrb[0].mxu0
    %v494 = vadd.f32 %v390, %v493
    %v495 = vpop.f32.mrb[0].mxu0
    %496 = vmatprep.mubr.f32.mxu0 %v268
    %497 = vmatmul.mubr.f32.gmra.mrb[0].mxu0 %v267
    %v498 = vpop.f32.mrb[0].mxu0
    %v499 = vadd.f32 %v395, %v498
    %v500 = vpop.f32.mrb[0].mxu0
    %501 = vdwg.mxu0
    %v502 = vmax.f32 %v464, 0.0
    %v503 = vmax.f32 %v469, 0.0
    %v504 = vmax.f32 %v474, 0.0
    %v505 = vmax.f32 %v479, 0.0
    %v506 = vmax.f32 %v484, 0.0
    %v507 = vmax.f32 %v489, 0.0
    %v508 = vmax.f32 %v494, 0.0
    %v509 = vmax.f32 %v499, 0.0
    %v510 = vld [vmem:[#allocation2] sm:$0xff]
    %v511 = vld [vmem:[#allocation2 + $0x8] sm:$0xff]
    %v512 = vld [vmem:[#allocation2 + $0x10] sm:$0xff]
    %v513 = vld [vmem:[#allocation2 + $0x18] sm:$0xff]
    %v514 = vld [vmem:[#allocation2 + $0x20] sm:$0xff]
    %v515 = vld [vmem:[#allocation2 + $0x28] sm:$0xff]
    %v516 = vld [vmem:[#allocation2 + $0x30] sm:$0xff]
    %v517 = vld [vmem:[#allocation2 + $0x38] sm:$0xff]
    %v518 = vld [vmem:[#allocation2 + $0x40] sm:$0xff]
    %v519 = vld [vmem:[#allocation2 + $0x48] sm:$0xff]
    %v520 = vld [vmem:[#allocation2 + $0x50] sm:$0xff]
    %v521 = vld [vmem:[#allocation2 + $0x58] sm:$0xff]
    %v522 = vld [vmem:[#allocation2 + $0x60] sm:$0xff]
    %v523 = vld [vmem:[#allocation2 + $0x68] sm:$0xff]
    %v524 = vld [vmem:[#allocation2 + $0x70] sm:$0xff]
    %v525 = vld [vmem:[#allocation2 + $0x78] sm:$0xff]
    %v526 = vld [vmem:[%s6] sm:$0xff]
    %v527 = vld [vmem:[%s6 + $0x8] sm:$0xff]
    %v528 = vld [vmem:[%s6 + $0x10] sm:$0xff]
    %v529 = vld [vmem:[%s6 + $0x18] sm:$0xff]
    %v530 = vld [vmem:[%s6 + $0x20] sm:$0xff]
    %v531 = vld [vmem:[%s6 + $0x28] sm:$0xff]
    %v532 = vld [vmem:[%s6 + $0x30] sm:$0xff]
    %v533 = vld [vmem:[%s6 + $0x38] sm:$0xff]
    %542 = vrot.lane.b32.xlu0 %v502, 127
    %v543 = vpop.permute.xlu0 %542
    %544 = vrot.lane.b32.xlu0 %v503, 127
    %v545 = vpop.permute.xlu0 %544
    %546 = vrot.lane.b32.xlu0 %v504, 127
    %v547 = vpop.permute.xlu0 %546
    %548 = vrot.lane.b32.xlu0 %v505, 127
    %v549 = vpop.permute.xlu0 %548
    %550 = vrot.lane.b32.xlu0 %v506, 127
    %v551 = vpop.permute.xlu0 %550
    %552 = vrot.lane.b32.xlu0 %v507, 127
    %v553 = vpop.permute.xlu0 %552
    %554 = vrot.lane.b32.xlu0 %v508, 127
    %v555 = vpop.permute.xlu0 %554
    %556 = vrot.lane.b32.xlu0 %v509, 127
    %v557 = vpop.permute.xlu0 %556
    %566 = vrot.lane.b32.xlu0 %v502, 126
    %v567 = vpop.permute.xlu0 %566
    %568 = vrot.lane.b32.xlu0 %v503, 126
    %v569 = vpop.permute.xlu0 %568
    %570 = vrot.lane.b32.xlu0 %v504, 126
    %v571 = vpop.permute.xlu0 %570
    %572 = vrot.lane.b32.xlu0 %v505, 126
    %v573 = vpop.permute.xlu0 %572
    %574 = vrot.lane.b32.xlu0 %v506, 126
    %v575 = vpop.permute.xlu0 %574
    %576 = vrot.lane.b32.xlu0 %v507, 126
    %v577 = vpop.permute.xlu0 %576
    %578 = vrot.lane.b32.xlu0 %v508, 126
    %v579 = vpop.permute.xlu0 %578
    %580 = vrot.lane.b32.xlu0 %v509, 126
    %v581 = vpop.permute.xlu0 %580
    %590 = vrot.lane.b32.xlu0 %v502, 125
    %v591 = vpop.permute.xlu0 %590
    %592 = vrot.lane.b32.xlu0 %v503, 125
    %v593 = vpop.permute.xlu0 %592
    %594 = vrot.lane.b32.xlu0 %v504, 125
    %v595 = vpop.permute.xlu0 %594
    %596 = vrot.lane.b32.xlu0 %v505, 125
    %v597 = vpop.permute.xlu0 %596
    %598 = vrot.lane.b32.xlu0 %v506, 125
    %v599 = vpop.permute.xlu0 %598
    %600 = vrot.lane.b32.xlu0 %v507, 125
    %v601 = vpop.permute.xlu0 %600
    %602 = vrot.lane.b32.xlu0 %v508, 125
    %v603 = vpop.permute.xlu0 %602
    %604 = vrot.lane.b32.xlu0 %v509, 125
    %v605 = vpop.permute.xlu0 %604
    %615 = vset.pattern.permute.xlu0 0
    %616 = vperm.xlu0 %615, %v526
    %v617 = vpop.permute.xlu0 %616
    %620 = vset.pattern.permute.xlu0 0
    %621 = vperm.xlu0 %620, %v527
    %v622 = vpop.permute.xlu0 %621
    %625 = vset.pattern.permute.xlu0 0
    %626 = vperm.xlu0 %625, %v528
    %v627 = vpop.permute.xlu0 %626
    %630 = vset.pattern.permute.xlu0 0
    %631 = vperm.xlu0 %630, %v529
    %v632 = vpop.permute.xlu0 %631
    %635 = vset.pattern.permute.xlu0 0
    %636 = vperm.xlu0 %635, %v530
    %v637 = vpop.permute.xlu0 %636
    %640 = vset.pattern.permute.xlu0 0
    %641 = vperm.xlu0 %640, %v531
    %v642 = vpop.permute.xlu0 %641
    %645 = vset.pattern.permute.xlu0 0
    %646 = vperm.xlu0 %645, %v532
    %v647 = vpop.permute.xlu0 %646
    %650 = vset.pattern.permute.xlu0 0
    %651 = vperm.xlu0 %650, %v533
    %v652 = vpop.permute.xlu0 %651
    %654 = vmatprep.subr.mxu0 0.0
    %655 = vmatpush1.msra.mxu0 %v502
    %656 = vmatprep.subr.mxu0 0.0
    %657 = vmatpush1.msra.mxu0 %v503
    %658 = vmatprep.subr.mxu0 0.0
    %659 = vmatpush1.msra.mxu0 %v504
    %660 = vmatprep.subr.mxu0 0.0
    %661 = vmatpush1.msra.mxu0 %v505
    %662 = vmatprep.subr.mxu0 0.0
    %663 = vmatpush1.msra.mxu0 %v506
    %664 = vmatprep.subr.mxu0 0.0
    %665 = vmatpush1.msra.mxu0 %v507
    %666 = vmatprep.subr.mxu0 0.0
    %667 = vmatpush1.msra.mxu0 %v508
    %668 = vmatprep.subr.mxu0 0.0
    %669 = vmatpush1.msra.mxu0 %v509
    %670 = vmatprep.subr.mxu0 0.0
    %671 = vmatpush1.msra.mxu0 %v543
    %672 = vmatprep.subr.mxu0 0.0
    %673 = vmatpush1.msra.mxu0 %v545
    %674 = vmatprep.subr.mxu0 0.0
    %675 = vmatpush1.msra.mxu0 %v547
    %676 = vmatprep.subr.mxu0 0.0
    %677 = vmatpush1.msra.mxu0 %v549
    %678 = vmatprep.subr.mxu0 0.0
    %679 = vmatpush1.msra.mxu0 %v551
    %680 = vmatprep.subr.mxu0 0.0
    %681 = vmatpush1.msra.mxu0 %v553
    %682 = vmatprep.subr.mxu0 0.0
    %683 = vmatpush1.msra.mxu0 %v555
    %684 = vmatprep.subr.mxu0 0.0
    %685 = vmatpush1.msra.mxu0 %v557
    %686 = vmatprep.subr.mxu0 0.0
    %687 = vmatpush1.msra.mxu0 %v567
    %688 = vmatprep.subr.mxu0 0.0
    %689 = vmatpush1.msra.mxu0 %v569
    %690 = vmatprep.subr.mxu0 0.0
    %691 = vmatpush1.msra.mxu0 %v571
    %692 = vmatprep.subr.mxu0 0.0
    %693 = vmatpush1.msra.mxu0 %v573
    %694 = vmatprep.subr.mxu0 0.0
    %695 = vmatpush1.msra.mxu0 %v575
    %696 = vmatprep.subr.mxu0 0.0
    %697 = vmatpush1.msra.mxu0 %v577
    %698 = vmatprep.subr.mxu0 0.0
    %699 = vmatpush1.msra.mxu0 %v579
    %700 = vmatprep.subr.mxu0 0.0
    %701 = vmatpush1.msra.mxu0 %v581
    %702 = vmatprep.subr.mxu0 0.0
    %703 = vmatpush1.msra.mxu0 %v591
    %704 = vmatprep.subr.mxu0 0.0
    %705 = vmatpush1.msra.mxu0 %v593
    %706 = vmatprep.subr.mxu0 0.0
    %707 = vmatpush1.msra.mxu0 %v595
    %708 = vmatprep.subr.mxu0 0.0
    %709 = vmatpush1.msra.mxu0 %v597
    %710 = vmatprep.subr.mxu0 0.0
    %711 = vmatpush1.msra.mxu0 %v599
    %712 = vmatprep.subr.mxu0 0.0
    %713 = vmatpush1.msra.mxu0 %v601
    %714 = vmatprep.subr.mxu0 0.0
    %715 = vmatpush1.msra.mxu0 %v603
    %716 = vmatprep.subr.mxu0 0.0
    %717 = vmatpush1.msra.mxu0 %v605
    %718 = vmatprep.mubr.f32.mxu0 %v511
    %719 = vmatmul.mubr.f32.gmra.mrb[0].mxu0 %v510
    %v720 = vpop.f32.mrb[0].mxu0
    %v721 = vadd.f32 %v617, %v720
    %v722 = vpop.f32.mrb[0].mxu0
    %723 = vmatprep.mubr.f32.mxu0 %v513
    %724 = vmatmul.mubr.f32.gmra.mrb[0].mxu0 %v512
    %v725 = vpop.f32.mrb[0].mxu0
    %v726 = vadd.f32 %v622, %v725
    %v727 = vpop.f32.mrb[0].mxu0
    %728 = vmatprep.mubr.f32.mxu0 %v515
    %729 = vmatmul.mubr.f32.gmra.mrb[0].mxu0 %v514
    %v730 = vpop.f32.mrb[0].mxu0
    %v731 = vadd.f32 %v627, %v730
    %v732 = vpop.f32.mrb[0].mxu0
    %733 = vmatprep.mubr.f32.mxu0 %v517
    %734 = vmatmul.mubr.f32.gmra.mrb[0].mxu0 %v516
    %v735 = vpop.f32.mrb[0].mxu0
    %v736 = vadd.f32 %v632, %v735
    %v737 = vpop.f32.mrb[0].mxu0
    %738 = vmatprep.mubr.f32.mxu0 %v519
    %739 = vmatmul.mubr.f32.gmra.mrb[0].mxu0 %v518
    %v740 = vpop.f32.mrb[0].mxu0
    %v741 = vadd.f32 %v637, %v740
    %v742 = vpop.f32.mrb[0].mxu0
    %743 = vmatprep.mubr.f32.mxu0 %v521
    %744 = vmatmul.mubr.f32.gmra.mrb[0].mxu0 %v520
    %v745 = vpop.f32.mrb[0].mxu0
    %v746 = vadd.f32 %v642, %v745
    %v747 = vpop.f32.mrb[0].mxu0
    %748 = vmatprep.mubr.f32.mxu0 %v523
    %749 = vmatmul.mubr.f32.gmra.mrb[0].mxu0 %v522
    %v750 = vpop.f32.mrb[0].mxu0
    %v751 = vadd.f32 %v647, %v750
    %v752 = vpop.f32.mrb[0].mxu0
    %753 = vmatprep.mubr.f32.mxu0 %v525
    %754 = vmatmul.mubr.f32.gmra.mrb[0].mxu0 %v524
    %v755 = vpop.f32.mrb[0].mxu0
    %v756 = vadd.f32 %v652, %v755
    %v757 = vpop.f32.mrb[0].mxu0
    %758 = vdwg.mxu0
    %v759 = vmax.f32 %v721, 0.0
    %v760 = vmax.f32 %v726, 0.0
    %v761 = vmax.f32 %v731, 0.0
    %v762 = vmax.f32 %v736, 0.0
    %v763 = vmax.f32 %v741, 0.0
    %v764 = vmax.f32 %v746, 0.0
    %v765 = vmax.f32 %v751, 0.0
    %v766 = vmax.f32 %v756, 0.0
    %vm767 = vcmask 56320
    %768 = vst.msk [vmem:[%s7] sm:$0xff] %vm767, %v759
    %769 = vst.msk [vmem:[%s7 + $0x8] sm:$0xff] %vm767, %v760
    %770 = vst.msk [vmem:[%s7 + $0x10] sm:$0xff] %vm767, %v761
    %771 = vst.msk [vmem:[%s7 + $0x18] sm:$0xff] %vm767, %v762
    %772 = vst.msk [vmem:[%s7 + $0x20] sm:$0xff] %vm767, %v763
    %773 = vst.msk [vmem:[%s7 + $0x28] sm:$0xff] %vm767, %v764
    %774 = vst.msk [vmem:[%s7 + $0x30] sm:$0xff] %vm767, %v765
    %775 = vst.msk [vmem:[%s7 + $0x38] sm:$0xff] %vm767, %v766
    %s776 = scalar_lea.vmem %s0, 32
    %v777 = vld [vmem:[%s776] sm:$0xff]
    %v778 = vld [vmem:[%s776 + $0x8] sm:$0xff]
    %v779 = vld [vmem:[%s776 + $0x10] sm:$0xff]
    %v780 = vld [vmem:[%s776 + $0x18] sm:$0xff]
    %v781 = vld [vmem:[%s1] sm:$0xff]
    %v782 = vld [vmem:[%s1 + $0x8] sm:$0xff]
    %v783 = vld [vmem:[%s1 + $0x10] sm:$0xff]
    %v784 = vld [vmem:[%s1 + $0x18] sm:$0xff]
    %v785 = vld [vmem:[%s1 + $0x20] sm:$0xff]
    %v786 = vld [vmem:[%s1 + $0x28] sm:$0xff]
    %v787 = vld [vmem:[%s1 + $0x30] sm:$0xff]
    %v788 = vld [vmem:[%s1 + $0x38] sm:$0xff]
    %v789 = vld [vmem:[%s2] sm:$0xff]
    %v790 = vld [vmem:[%s2 + $0x8] sm:$0xff]
    %v791 = vld [vmem:[%s2 + $0x10] sm:$0xff]
    %v792 = vld [vmem:[%s2 + $0x18] sm:$0xff]
    %v793 = vld [vmem:[%s2 + $0x20] sm:$0xff]
    %v794 = vld [vmem:[%s2 + $0x28] sm:$0xff]
    %v795 = vld [vmem:[%s2 + $0x30] sm:$0xff]
    %v796 = vld [vmem:[%s2 + $0x38] sm:$0xff]
    %801 = vrot.lane.b32.xlu0 %v777, 127
    %v802 = vpop.permute.xlu0 %801
    %803 = vrot.lane.b32.xlu0 %v778, 127
    %v804 = vpop.permute.xlu0 %803
    %805 = vrot.lane.b32.xlu0 %v779, 127
    %v806 = vpop.permute.xlu0 %805
    %807 = vrot.lane.b32.xlu0 %v780, 127
    %v808 = vpop.permute.xlu0 %807
    %813 = vrot.lane.b32.xlu0 %v777, 126
    %v814 = vpop.permute.xlu0 %813
    %815 = vrot.lane.b32.xlu0 %v778, 126
    %v816 = vpop.permute.xlu0 %815
    %817 = vrot.lane.b32.xlu0 %v779, 126
    %v818 = vpop.permute.xlu0 %817
    %819 = vrot.lane.b32.xlu0 %v780, 126
    %v820 = vpop.permute.xlu0 %819
    %825 = vrot.lane.b32.xlu0 %v777, 125
    %v826 = vpop.permute.xlu0 %825
    %827 = vrot.lane.b32.xlu0 %v778, 125
    %v828 = vpop.permute.xlu0 %827
    %829 = vrot.lane.b32.xlu0 %v779, 125
    %v830 = vpop.permute.xlu0 %829
    %831 = vrot.lane.b32.xlu0 %v780, 125
    %v832 = vpop.permute.xlu0 %831
    %838 = vset.pattern.permute.xlu0 0
    %839 = vperm.xlu0 %838, %v789
    %v840 = vpop.permute.xlu0 %839
    %843 = vset.pattern.permute.xlu0 0
    %844 = vperm.xlu0 %843, %v790
    %v845 = vpop.permute.xlu0 %844
    %848 = vset.pattern.permute.xlu0 0
    %849 = vperm.xlu0 %848, %v791
    %v850 = vpop.permute.xlu0 %849
    %853 = vset.pattern.permute.xlu0 0
    %854 = vperm.xlu0 %853, %v792
    %v855 = vpop.permute.xlu0 %854
    %858 = vset.pattern.permute.xlu0 0
    %859 = vperm.xlu0 %858, %v793
    %v860 = vpop.permute.xlu0 %859
    %863 = vset.pattern.permute.xlu0 0
    %864 = vperm.xlu0 %863, %v794
    %v865 = vpop.permute.xlu0 %864
    %868 = vset.pattern.permute.xlu0 0
    %869 = vperm.xlu0 %868, %v795
    %v870 = vpop.permute.xlu0 %869
    %873 = vset.pattern.permute.xlu0 0
    %874 = vperm.xlu0 %873, %v796
    %v875 = vpop.permute.xlu0 %874
    %877 = vmatprep.subr.mxu0 0.0
    %878 = vmatpush1.msra.mxu0 %v777
    %879 = vmatprep.subr.mxu0 0.0
    %880 = vmatpush1.msra.mxu0 %v778
    %881 = vmatprep.subr.mxu0 0.0
    %882 = vmatpush1.msra.mxu0 %v779
    %883 = vmatprep.subr.mxu0 0.0
    %884 = vmatpush1.msra.mxu0 %v780
    %885 = vmatprep.subr.mxu0 0.0
    %886 = vmatpush1.msra.mxu0 %v802
    %887 = vmatprep.subr.mxu0 0.0
    %888 = vmatpush1.msra.mxu0 %v804
    %889 = vmatprep.subr.mxu0 0.0
    %890 = vmatpush1.msra.mxu0 %v806
    %891 = vmatprep.subr.mxu0 0.0
    %892 = vmatpush1.msra.mxu0 %v808
    %893 = vmatprep.subr.mxu0 0.0
    %894 = vmatpush1.msra.mxu0 %v814
    %895 = vmatprep.subr.mxu0 0.0
    %896 = vmatpush1.msra.mxu0 %v816
    %897 = vmatprep.subr.mxu0 0.0
    %898 = vmatpush1.msra.mxu0 %v818
    %899 = vmatprep.subr.mxu0 0.0
    %900 = vmatpush1.msra.mxu0 %v820
    %901 = vmatprep.subr.mxu0 0.0
    %902 = vmatpush1.msra.mxu0 %v826
    %903 = vmatprep.subr.mxu0 0.0
    %904 = vmatpush1.msra.mxu0 %v828
    %905 = vmatprep.subr.mxu0 0.0
    %906 = vmatpush1.msra.mxu0 %v830
    %907 = vmatprep.subr.mxu0 0.0
    %908 = vmatpush1.msra.mxu0 %v832
    %909 = vmatprep.subr.mxu0 0.0
    %910 = vmatpush1.msra.mxu0 0.0
    %911 = vmatprep.subr.mxu0 0.0
    %912 = vmatpush1.msra.mxu0 0.0
    %913 = vmatprep.subr.mxu0 0.0
    %914 = vmatpush1.msra.mxu0 0.0
    %915 = vmatprep.subr.mxu0 0.0
    %916 = vmatpush1.msra.mxu0 0.0
    %917 = vmatprep.subr.mxu0 0.0
    %918 = vmatpush1.msra.mxu0 0.0
    %919 = vmatprep.subr.mxu0 0.0
    %920 = vmatpush1.msra.mxu0 0.0
    %921 = vmatprep.subr.mxu0 0.0
    %922 = vmatpush1.msra.mxu0 0.0
    %923 = vmatprep.subr.mxu0 0.0
    %924 = vmatpush1.msra.mxu0 0.0
    %925 = vmatprep.subr.mxu0 0.0
    %926 = vmatpush1.msra.mxu0 0.0
    %927 = vmatprep.subr.mxu0 0.0
    %928 = vmatpush1.msra.mxu0 0.0
    %929 = vmatprep.subr.mxu0 0.0
    %930 = vmatpush1.msra.mxu0 0.0
    %931 = vmatprep.subr.mxu0 0.0
    %932 = vmatpush1.msra.mxu0 0.0
    %933 = vmatprep.subr.mxu0 0.0
    %934 = vmatpush1.msra.mxu0 0.0
    %935 = vmatprep.subr.mxu0 0.0
    %936 = vmatpush1.msra.mxu0 0.0
    %937 = vmatprep.subr.mxu0 0.0
    %938 = vmatpush1.msra.mxu0 0.0
    %939 = vmatprep.subr.mxu0 0.0
    %940 = vmatpush1.msra.mxu0 0.0
    %941 = vmatprep.mubr.f32.mxu0 0.0
    %942 = vmatmul.mubr.f32.gmra.mrb[0].mxu0 %v781
    %v943 = vpop.f32.mrb[0].mxu0
    %v944 = vadd.f32 %v840, %v943
    %v945 = vpop.f32.mrb[0].mxu0
    %946 = vmatprep.mubr.f32.mxu0 0.0
    %947 = vmatmul.mubr.f32.gmra.mrb[0].mxu0 %v782
    %v948 = vpop.f32.mrb[0].mxu0
    %v949 = vadd.f32 %v845, %v948
    %v950 = vpop.f32.mrb[0].mxu0
    %951 = vmatprep.mubr.f32.mxu0 0.0
    %952 = vmatmul.mubr.f32.gmra.mrb[0].mxu0 %v783
    %v953 = vpop.f32.mrb[0].mxu0
    %v954 = vadd.f32 %v850, %v953
    %v955 = vpop.f32.mrb[0].mxu0
    %956 = vmatprep.mubr.f32.mxu0 0.0
    %957 = vmatmul.mubr.f32.gmra.mrb[0].mxu0 %v784
    %v958 = vpop.f32.mrb[0].mxu0
    %v959 = vadd.f32 %v855, %v958
    %v960 = vpop.f32.mrb[0].mxu0
    %961 = vmatprep.mubr.f32.mxu0 0.0
    %962 = vmatmul.mubr.f32.gmra.mrb[0].mxu0 %v785
    %v963 = vpop.f32.mrb[0].mxu0
    %v964 = vadd.f32 %v860, %v963
    %v965 = vpop.f32.mrb[0].mxu0
    %966 = vmatprep.mubr.f32.mxu0 0.0
    %967 = vmatmul.mubr.f32.gmra.mrb[0].mxu0 %v786
    %v968 = vpop.f32.mrb[0].mxu0
    %v969 = vadd.f32 %v865, %v968
    %v970 = vpop.f32.mrb[0].mxu0
    %971 = vmatprep.mubr.f32.mxu0 0.0
    %972 = vmatmul.mubr.f32.gmra.mrb[0].mxu0 %v787
    %v973 = vpop.f32.mrb[0].mxu0
    %v974 = vadd.f32 %v870, %v973
    %v975 = vpop.f32.mrb[0].mxu0
    %976 = vmatprep.mubr.f32.mxu0 0.0
    %977 = vmatmul.mubr.f32.gmra.mrb[0].mxu0 %v788
    %v978 = vpop.f32.mrb[0].mxu0
    %v979 = vadd.f32 %v875, %v978
    %v980 = vpop.f32.mrb[0].mxu0
    %981 = vdwg.mxu0
    %v982 = vmax.f32 %v944, 0.0
    %v983 = vmax.f32 %v949, 0.0
    %v984 = vmax.f32 %v954, 0.0
    %v985 = vmax.f32 %v959, 0.0
    %v986 = vmax.f32 %v964, 0.0
    %v987 = vmax.f32 %v969, 0.0
    %v988 = vmax.f32 %v974, 0.0
    %v989 = vmax.f32 %v979, 0.0
    %v990 = vld [vmem:[%s3] sm:$0xff]
    %v991 = vld [vmem:[%s3 + $0x8] sm:$0xff]
    %v992 = vld [vmem:[%s3 + $0x10] sm:$0xff]
    %v993 = vld [vmem:[%s3 + $0x18] sm:$0xff]
    %v994 = vld [vmem:[%s3 + $0x20] sm:$0xff]
    %v995 = vld [vmem:[%s3 + $0x28] sm:$0xff]
    %v996 = vld [vmem:[%s3 + $0x30] sm:$0xff]
    %v997 = vld [vmem:[%s3 + $0x38] sm:$0xff]
    %v998 = vld [vmem:[%s3 + $0x40] sm:$0xff]
    %v999 = vld [vmem:[%s3 + $0x48] sm:$0xff]
    %v1000 = vld [vmem:[%s3 + $0x50] sm:$0xff]
    %v1001 = vld [vmem:[%s3 + $0x58] sm:$0xff]
    %v1002 = vld [vmem:[%s3 + $0x60] sm:$0xff]
    %v1003 = vld [vmem:[%s3 + $0x68] sm:$0xff]
    %v1004 = vld [vmem:[%s3 + $0x70] sm:$0xff]
    %v1005 = vld [vmem:[%s3 + $0x78] sm:$0xff]
    %v1006 = vld [vmem:[%s4] sm:$0xff]
    %v1007 = vld [vmem:[%s4 + $0x8] sm:$0xff]
    %v1008 = vld [vmem:[%s4 + $0x10] sm:$0xff]
    %v1009 = vld [vmem:[%s4 + $0x18] sm:$0xff]
    %v1010 = vld [vmem:[%s4 + $0x20] sm:$0xff]
    %v1011 = vld [vmem:[%s4 + $0x28] sm:$0xff]
    %v1012 = vld [vmem:[%s4 + $0x30] sm:$0xff]
    %v1013 = vld [vmem:[%s4 + $0x38] sm:$0xff]
    %1022 = vrot.lane.b32.xlu0 %v982, 127
    %v1023 = vpop.permute.xlu0 %1022
    %1024 = vrot.lane.b32.xlu0 %v983, 127
    %v1025 = vpop.permute.xlu0 %1024
    %1026 = vrot.lane.b32.xlu0 %v984, 127
    %v1027 = vpop.permute.xlu0 %1026
    %1028 = vrot.lane.b32.xlu0 %v985, 127
    %v1029 = vpop.permute.xlu0 %1028
    %1030 = vrot.lane.b32.xlu0 %v986, 127
    %v1031 = vpop.permute.xlu0 %1030
    %1032 = vrot.lane.b32.xlu0 %v987, 127
    %v1033 = vpop.permute.xlu0 %1032
    %1034 = vrot.lane.b32.xlu0 %v988, 127
    %v1035 = vpop.permute.xlu0 %1034
    %1036 = vrot.lane.b32.xlu0 %v989, 127
    %v1037 = vpop.permute.xlu0 %1036
    %1046 = vrot.lane.b32.xlu0 %v982, 126
    %v1047 = vpop.permute.xlu0 %1046
    %1048 = vrot.lane.b32.xlu0 %v983, 126
    %v1049 = vpop.permute.xlu0 %1048
    %1050 = vrot.lane.b32.xlu0 %v984, 126
    %v1051 = vpop.permute.xlu0 %1050
    %1052 = vrot.lane.b32.xlu0 %v985, 126
    %v1053 = vpop.permute.xlu0 %1052
    %1054 = vrot.lane.b32.xlu0 %v986, 126
    %v1055 = vpop.permute.xlu0 %1054
    %1056 = vrot.lane.b32.xlu0 %v987, 126
    %v1057 = vpop.permute.xlu0 %1056
    %1058 = vrot.lane.b32.xlu0 %v988, 126
    %v1059 = vpop.permute.xlu0 %1058
    %1060 = vrot.lane.b32.xlu0 %v989, 126
    %v1061 = vpop.permute.xlu0 %1060
    %1070 = vrot.lane.b32.xlu0 %v982, 125
    %v1071 = vpop.permute.xlu0 %1070
    %1072 = vrot.lane.b32.xlu0 %v983, 125
    %v1073 = vpop.permute.xlu0 %1072
    %1074 = vrot.lane.b32.xlu0 %v984, 125
    %v1075 = vpop.permute.xlu0 %1074
    %1076 = vrot.lane.b32.xlu0 %v985, 125
    %v1077 = vpop.permute.xlu0 %1076
    %1078 = vrot.lane.b32.xlu0 %v986, 125
    %v1079 = vpop.permute.xlu0 %1078
    %1080 = vrot.lane.b32.xlu0 %v987, 125
    %v1081 = vpop.permute.xlu0 %1080
    %1082 = vrot.lane.b32.xlu0 %v988, 125
    %v1083 = vpop.permute.xlu0 %1082
    %1084 = vrot.lane.b32.xlu0 %v989, 125
    %v1085 = vpop.permute.xlu0 %1084
    %1095 = vset.pattern.permute.xlu0 0
    %1096 = vperm.xlu0 %1095, %v1006
    %v1097 = vpop.permute.xlu0 %1096
    %1100 = vset.pattern.permute.xlu0 0
    %1101 = vperm.xlu0 %1100, %v1007
    %v1102 = vpop.permute.xlu0 %1101
    %1105 = vset.pattern.permute.xlu0 0
    %1106 = vperm.xlu0 %1105, %v1008
    %v1107 = vpop.permute.xlu0 %1106
    %1110 = vset.pattern.permute.xlu0 0
    %1111 = vperm.xlu0 %1110, %v1009
    %v1112 = vpop.permute.xlu0 %1111
    %1115 = vset.pattern.permute.xlu0 0
    %1116 = vperm.xlu0 %1115, %v1010
    %v1117 = vpop.permute.xlu0 %1116
    %1120 = vset.pattern.permute.xlu0 0
    %1121 = vperm.xlu0 %1120, %v1011
    %v1122 = vpop.permute.xlu0 %1121
    %1125 = vset.pattern.permute.xlu0 0
    %1126 = vperm.xlu0 %1125, %v1012
    %v1127 = vpop.permute.xlu0 %1126
    %1130 = vset.pattern.permute.xlu0 0
    %1131 = vperm.xlu0 %1130, %v1013
    %v1132 = vpop.permute.xlu0 %1131
    %1134 = vmatprep.subr.mxu0 0.0
    %1135 = vmatpush1.msra.mxu0 %v982
    %1136 = vmatprep.subr.mxu0 0.0
    %1137 = vmatpush1.msra.mxu0 %v983
    %1138 = vmatprep.subr.mxu0 0.0
    %1139 = vmatpush1.msra.mxu0 %v984
    %1140 = vmatprep.subr.mxu0 0.0
    %1141 = vmatpush1.msra.mxu0 %v985
    %1142 = vmatprep.subr.mxu0 0.0
    %1143 = vmatpush1.msra.mxu0 %v986
    %1144 = vmatprep.subr.mxu0 0.0
    %1145 = vmatpush1.msra.mxu0 %v987
    %1146 = vmatprep.subr.mxu0 0.0
    %1147 = vmatpush1.msra.mxu0 %v988
    %1148 = vmatprep.subr.mxu0 0.0
    %1149 = vmatpush1.msra.mxu0 %v989
    %1150 = vmatprep.subr.mxu0 0.0
    %1151 = vmatpush1.msra.mxu0 %v1023
    %1152 = vmatprep.subr.mxu0 0.0
    %1153 = vmatpush1.msra.mxu0 %v1025
    %1154 = vmatprep.subr.mxu0 0.0
    %1155 = vmatpush1.msra.mxu0 %v1027
    %1156 = vmatprep.subr.mxu0 0.0
    %1157 = vmatpush1.msra.mxu0 %v1029
    %1158 = vmatprep.subr.mxu0 0.0
    %1159 = vmatpush1.msra.mxu0 %v1031
    %1160 = vmatprep.subr.mxu0 0.0
    %1161 = vmatpush1.msra.mxu0 %v1033
    %1162 = vmatprep.subr.mxu0 0.0
    %1163 = vmatpush1.msra.mxu0 %v1035
    %1164 = vmatprep.subr.mxu0 0.0
    %1165 = vmatpush1.msra.mxu0 %v1037
    %1166 = vmatprep.subr.mxu0 0.0
    %1167 = vmatpush1.msra.mxu0 %v1047
    %1168 = vmatprep.subr.mxu0 0.0
    %1169 = vmatpush1.msra.mxu0 %v1049
    %1170 = vmatprep.subr.mxu0 0.0
    %1171 = vmatpush1.msra.mxu0 %v1051
    %1172 = vmatprep.subr.mxu0 0.0
    %1173 = vmatpush1.msra.mxu0 %v1053
    %1174 = vmatprep.subr.mxu0 0.0
    %1175 = vmatpush1.msra.mxu0 %v1055
    %1176 = vmatprep.subr.mxu0 0.0
    %1177 = vmatpush1.msra.mxu0 %v1057
    %1178 = vmatprep.subr.mxu0 0.0
    %1179 = vmatpush1.msra.mxu0 %v1059
    %1180 = vmatprep.subr.mxu0 0.0
    %1181 = vmatpush1.msra.mxu0 %v1061
    %1182 = vmatprep.subr.mxu0 0.0
    %1183 = vmatpush1.msra.mxu0 %v1071
    %1184 = vmatprep.subr.mxu0 0.0
    %1185 = vmatpush1.msra.mxu0 %v1073
    %1186 = vmatprep.subr.mxu0 0.0
    %1187 = vmatpush1.msra.mxu0 %v1075
    %1188 = vmatprep.subr.mxu0 0.0
    %1189 = vmatpush1.msra.mxu0 %v1077
    %1190 = vmatprep.subr.mxu0 0.0
    %1191 = vmatpush1.msra.mxu0 %v1079
    %1192 = vmatprep.subr.mxu0 0.0
    %1193 = vmatpush1.msra.mxu0 %v1081
    %1194 = vmatprep.subr.mxu0 0.0
    %1195 = vmatpush1.msra.mxu0 %v1083
    %1196 = vmatprep.subr.mxu0 0.0
    %1197 = vmatpush1.msra.mxu0 %v1085
    %1198 = vmatprep.mubr.f32.mxu0 %v991
    %1199 = vmatmul.mubr.f32.gmra.mrb[0].mxu0 %v990
    %v1200 = vpop.f32.mrb[0].mxu0
    %v1201 = vadd.f32 %v1097, %v1200
    %v1202 = vpop.f32.mrb[0].mxu0
    %1203 = vmatprep.mubr.f32.mxu0 %v993
    %1204 = vmatmul.mubr.f32.gmra.mrb[0].mxu0 %v992
    %v1205 = vpop.f32.mrb[0].mxu0
    %v1206 = vadd.f32 %v1102, %v1205
    %v1207 = vpop.f32.mrb[0].mxu0
    %1208 = vmatprep.mubr.f32.mxu0 %v995
    %1209 = vmatmul.mubr.f32.gmra.mrb[0].mxu0 %v994
    %v1210 = vpop.f32.mrb[0].mxu0
    %v1211 = vadd.f32 %v1107, %v1210
    %v1212 = vpop.f32.mrb[0].mxu0
    %1213 = vmatprep.mubr.f32.mxu0 %v997
    %1214 = vmatmul.mubr.f32.gmra.mrb[0].mxu0 %v996
    %v1215 = vpop.f32.mrb[0].mxu0
    %v1216 = vadd.f32 %v1112, %v1215
    %v1217 = vpop.f32.mrb[0].mxu0
    %1218 = vmatprep.mubr.f32.mxu0 %v999
    %1219 = vmatmul.mubr.f32.gmra.mrb[0].mxu0 %v998
    %v1220 = vpop.f32.mrb[0].mxu0
    %v1221 = vadd.f32 %v1117, %v1220
    %v1222 = vpop.f32.mrb[0].mxu0
    %1223 = vmatprep.mubr.f32.mxu0 %v1001
    %1224 = vmatmul.mubr.f32.gmra.mrb[0].mxu0 %v1000
    %v1225 = vpop.f32.mrb[0].mxu0
    %v1226 = vadd.f32 %v1122, %v1225
    %v1227 = vpop.f32.mrb[0].mxu0
    %1228 = vmatprep.mubr.f32.mxu0 %v1003
    %1229 = vmatmul.mubr.f32.gmra.mrb[0].mxu0 %v1002
    %v1230 = vpop.f32.mrb[0].mxu0
    %v1231 = vadd.f32 %v1127, %v1230
    %v1232 = vpop.f32.mrb[0].mxu0
    %1233 = vmatprep.mubr.f32.mxu0 %v1005
    %1234 = vmatmul.mubr.f32.gmra.mrb[0].mxu0 %v1004
    %v1235 = vpop.f32.mrb[0].mxu0
    %v1236 = vadd.f32 %v1132, %v1235
    %v1237 = vpop.f32.mrb[0].mxu0
    %1238 = vdwg.mxu0
    %v1239 = vmax.f32 %v1201, 0.0
    %v1240 = vmax.f32 %v1206, 0.0
    %v1241 = vmax.f32 %v1211, 0.0
    %v1242 = vmax.f32 %v1216, 0.0
    %v1243 = vmax.f32 %v1221, 0.0
    %v1244 = vmax.f32 %v1226, 0.0
    %v1245 = vmax.f32 %v1231, 0.0
    %v1246 = vmax.f32 %v1236, 0.0
    %v1247 = vld [vmem:[#allocation2] sm:$0xff]
    %v1248 = vld [vmem:[#allocation2 + $0x8] sm:$0xff]
    %v1249 = vld [vmem:[#allocation2 + $0x10] sm:$0xff]
    %v1250 = vld [vmem:[#allocation2 + $0x18] sm:$0xff]
    %v1251 = vld [vmem:[#allocation2 + $0x20] sm:$0xff]
    %v1252 = vld [vmem:[#allocation2 + $0x28] sm:$0xff]
    %v1253 = vld [vmem:[#allocation2 + $0x30] sm:$0xff]
    %v1254 = vld [vmem:[#allocation2 + $0x38] sm:$0xff]
    %v1255 = vld [vmem:[#allocation2 + $0x40] sm:$0xff]
    %v1256 = vld [vmem:[#allocation2 + $0x48] sm:$0xff]
    %v1257 = vld [vmem:[#allocation2 + $0x50] sm:$0xff]
    %v1258 = vld [vmem:[#allocation2 + $0x58] sm:$0xff]
    %v1259 = vld [vmem:[#allocation2 + $0x60] sm:$0xff]
    %v1260 = vld [vmem:[#allocation2 + $0x68] sm:$0xff]
    %v1261 = vld [vmem:[#allocation2 + $0x70] sm:$0xff]
    %v1262 = vld [vmem:[#allocation2 + $0x78] sm:$0xff]
    %v1263 = vld [vmem:[%s6] sm:$0xff]
    %v1264 = vld [vmem:[%s6 + $0x8] sm:$0xff]
    %v1265 = vld [vmem:[%s6 + $0x10] sm:$0xff]
    %v1266 = vld [vmem:[%s6 + $0x18] sm:$0xff]
    %v1267 = vld [vmem:[%s6 + $0x20] sm:$0xff]
    %v1268 = vld [vmem:[%s6 + $0x28] sm:$0xff]
    %v1269 = vld [vmem:[%s6 + $0x30] sm:$0xff]
    %v1270 = vld [vmem:[%s6 + $0x38] sm:$0xff]
    %1279 = vrot.lane.b32.xlu0 %v1239, 127
    %v1280 = vpop.permute.xlu0 %1279
    %1281 = vrot.lane.b32.xlu0 %v1240, 127
    %v1282 = vpop.permute.xlu0 %1281
    %1283 = vrot.lane.b32.xlu0 %v1241, 127
    %v1284 = vpop.permute.xlu0 %1283
    %1285 = vrot.lane.b32.xlu0 %v1242, 127
    %v1286 = vpop.permute.xlu0 %1285
    %1287 = vrot.lane.b32.xlu0 %v1243, 127
    %v1288 = vpop.permute.xlu0 %1287
    %1289 = vrot.lane.b32.xlu0 %v1244, 127
    %v1290 = vpop.permute.xlu0 %1289
    %1291 = vrot.lane.b32.xlu0 %v1245, 127
    %v1292 = vpop.permute.xlu0 %1291
    %1293 = vrot.lane.b32.xlu0 %v1246, 127
    %v1294 = vpop.permute.xlu0 %1293
    %1303 = vrot.lane.b32.xlu0 %v1239, 126
    %v1304 = vpop.permute.xlu0 %1303
    %1305 = vrot.lane.b32.xlu0 %v1240, 126
    %v1306 = vpop.permute.xlu0 %1305
    %1307 = vrot.lane.b32.xlu0 %v1241, 126
    %v1308 = vpop.permute.xlu0 %1307
    %1309 = vrot.lane.b32.xlu0 %v1242, 126
    %v1310 = vpop.permute.xlu0 %1309
    %1311 = vrot.lane.b32.xlu0 %v1243, 126
    %v1312 = vpop.permute.xlu0 %1311
    %1313 = vrot.lane.b32.xlu0 %v1244, 126
    %v1314 = vpop.permute.xlu0 %1313
    %1315 = vrot.lane.b32.xlu0 %v1245, 126
    %v1316 = vpop.permute.xlu0 %1315
    %1317 = vrot.lane.b32.xlu0 %v1246, 126
    %v1318 = vpop.permute.xlu0 %1317
    %1327 = vrot.lane.b32.xlu0 %v1239, 125
    %v1328 = vpop.permute.xlu0 %1327
    %1329 = vrot.lane.b32.xlu0 %v1240, 125
    %v1330 = vpop.permute.xlu0 %1329
    %1331 = vrot.lane.b32.xlu0 %v1241, 125
    %v1332 = vpop.permute.xlu0 %1331
    %1333 = vrot.lane.b32.xlu0 %v1242, 125
    %v1334 = vpop.permute.xlu0 %1333
    %1335 = vrot.lane.b32.xlu0 %v1243, 125
    %v1336 = vpop.permute.xlu0 %1335
    %1337 = vrot.lane.b32.xlu0 %v1244, 125
    %v1338 = vpop.permute.xlu0 %1337
    %1339 = vrot.lane.b32.xlu0 %v1245, 125
    %v1340 = vpop.permute.xlu0 %1339
    %1341 = vrot.lane.b32.xlu0 %v1246, 125
    %v1342 = vpop.permute.xlu0 %1341
    %1352 = vset.pattern.permute.xlu0 0
    %1353 = vperm.xlu0 %1352, %v1263
    %v1354 = vpop.permute.xlu0 %1353
    %1357 = vset.pattern.permute.xlu0 0
    %1358 = vperm.xlu0 %1357, %v1264
    %v1359 = vpop.permute.xlu0 %1358
    %1362 = vset.pattern.permute.xlu0 0
    %1363 = vperm.xlu0 %1362, %v1265
    %v1364 = vpop.permute.xlu0 %1363
    %1367 = vset.pattern.permute.xlu0 0
    %1368 = vperm.xlu0 %1367, %v1266
    %v1369 = vpop.permute.xlu0 %1368
    %1372 = vset.pattern.permute.xlu0 0
    %1373 = vperm.xlu0 %1372, %v1267
    %v1374 = vpop.permute.xlu0 %1373
    %1377 = vset.pattern.permute.xlu0 0
    %1378 = vperm.xlu0 %1377, %v1268
    %v1379 = vpop.permute.xlu0 %1378
    %1382 = vset.pattern.permute.xlu0 0
    %1383 = vperm.xlu0 %1382, %v1269
    %v1384 = vpop.permute.xlu0 %1383
    %1387 = vset.pattern.permute.xlu0 0
    %1388 = vperm.xlu0 %1387, %v1270
    %v1389 = vpop.permute.xlu0 %1388
    %1391 = vmatprep.subr.mxu0 0.0
    %1392 = vmatpush1.msra.mxu0 %v1239
    %1393 = vmatprep.subr.mxu0 0.0
    %1394 = vmatpush1.msra.mxu0 %v1240
    %1395 = vmatprep.subr.mxu0 0.0
    %1396 = vmatpush1.msra.mxu0 %v1241
    %1397 = vmatprep.subr.mxu0 0.0
    %1398 = vmatpush1.msra.mxu0 %v1242
    %1399 = vmatprep.subr.mxu0 0.0
    %1400 = vmatpush1.msra.mxu0 %v1243
    %1401 = vmatprep.subr.mxu0 0.0
    %1402 = vmatpush1.msra.mxu0 %v1244
    %1403 = vmatprep.subr.mxu0 0.0
    %1404 = vmatpush1.msra.mxu0 %v1245
    %1405 = vmatprep.subr.mxu0 0.0
    %1406 = vmatpush1.msra.mxu0 %v1246
    %1407 = vmatprep.subr.mxu0 0.0
    %1408 = vmatpush1.msra.mxu0 %v1280
    %1409 = vmatprep.subr.mxu0 0.0
    %1410 = vmatpush1.msra.mxu0 %v1282
    %1411 = vmatprep.subr.mxu0 0.0
    %1412 = vmatpush1.msra.mxu0 %v1284
    %1413 = vmatprep.subr.mxu0 0.0
    %1414 = vmatpush1.msra.mxu0 %v1286
    %1415 = vmatprep.subr.mxu0 0.0
    %1416 = vmatpush1.msra.mxu0 %v1288
    %1417 = vmatprep.subr.mxu0 0.0
    %1418 = vmatpush1.msra.mxu0 %v1290
    %1419 = vmatprep.subr.mxu0 0.0
    %1420 = vmatpush1.msra.mxu0 %v1292
    %1421 = vmatprep.subr.mxu0 0.0
    %1422 = vmatpush1.msra.mxu0 %v1294
    %1423 = vmatprep.subr.mxu0 0.0
    %1424 = vmatpush1.msra.mxu0 %v1304
    %1425 = vmatprep.subr.mxu0 0.0
    %1426 = vmatpush1.msra.mxu0 %v1306
    %1427 = vmatprep.subr.mxu0 0.0
    %1428 = vmatpush1.msra.mxu0 %v1308
    %1429 = vmatprep.subr.mxu0 0.0
    %1430 = vmatpush1.msra.mxu0 %v1310
    %1431 = vmatprep.subr.mxu0 0.0
    %1432 = vmatpush1.msra.mxu0 %v1312
    %1433 = vmatprep.subr.mxu0 0.0
    %1434 = vmatpush1.msra.mxu0 %v1314
    %1435 = vmatprep.subr.mxu0 0.0
    %1436 = vmatpush1.msra.mxu0 %v1316
    %1437 = vmatprep.subr.mxu0 0.0
    %1438 = vmatpush1.msra.mxu0 %v1318
    %1439 = vmatprep.subr.mxu0 0.0
    %1440 = vmatpush1.msra.mxu0 %v1328
    %1441 = vmatprep.subr.mxu0 0.0
    %1442 = vmatpush1.msra.mxu0 %v1330
    %1443 = vmatprep.subr.mxu0 0.0
    %1444 = vmatpush1.msra.mxu0 %v1332
    %1445 = vmatprep.subr.mxu0 0.0
    %1446 = vmatpush1.msra.mxu0 %v1334
    %1447 = vmatprep.subr.mxu0 0.0
    %1448 = vmatpush1.msra.mxu0 %v1336
    %1449 = vmatprep.subr.mxu0 0.0
    %1450 = vmatpush1.msra.mxu0 %v1338
    %1451 = vmatprep.subr.mxu0 0.0
    %1452 = vmatpush1.msra.mxu0 %v1340
    %1453 = vmatprep.subr.mxu0 0.0
    %1454 = vmatpush1.msra.mxu0 %v1342
    %1455 = vmatprep.mubr.f32.mxu0 %v1248
    %1456 = vmatmul.mubr.f32.gmra.mrb[0].mxu0 %v1247
    %v1457 = vpop.f32.mrb[0].mxu0
    %v1458 = vadd.f32 %v1354, %v1457
    %v1459 = vpop.f32.mrb[0].mxu0
    %1460 = vmatprep.mubr.f32.mxu0 %v1250
    %1461 = vmatmul.mubr.f32.gmra.mrb[0].mxu0 %v1249
    %v1462 = vpop.f32.mrb[0].mxu0
    %v1463 = vadd.f32 %v1359, %v1462
    %v1464 = vpop.f32.mrb[0].mxu0
    %1465 = vmatprep.mubr.f32.mxu0 %v1252
    %1466 = vmatmul.mubr.f32.gmra.mrb[0].mxu0 %v1251
    %v1467 = vpop.f32.mrb[0].mxu0
    %v1468 = vadd.f32 %v1364, %v1467
    %v1469 = vpop.f32.mrb[0].mxu0
    %1470 = vmatprep.mubr.f32.mxu0 %v1254
    %1471 = vmatmul.mubr.f32.gmra.mrb[0].mxu0 %v1253
    %v1472 = vpop.f32.mrb[0].mxu0
    %v1473 = vadd.f32 %v1369, %v1472
    %v1474 = vpop.f32.mrb[0].mxu0
    %1475 = vmatprep.mubr.f32.mxu0 %v1256
    %1476 = vmatmul.mubr.f32.gmra.mrb[0].mxu0 %v1255
    %v1477 = vpop.f32.mrb[0].mxu0
    %v1478 = vadd.f32 %v1374, %v1477
    %v1479 = vpop.f32.mrb[0].mxu0
    %1480 = vmatprep.mubr.f32.mxu0 %v1258
    %1481 = vmatmul.mubr.f32.gmra.mrb[0].mxu0 %v1257
    %v1482 = vpop.f32.mrb[0].mxu0
    %v1483 = vadd.f32 %v1379, %v1482
    %v1484 = vpop.f32.mrb[0].mxu0
    %1485 = vmatprep.mubr.f32.mxu0 %v1260
    %1486 = vmatmul.mubr.f32.gmra.mrb[0].mxu0 %v1259
    %v1487 = vpop.f32.mrb[0].mxu0
    %v1488 = vadd.f32 %v1384, %v1487
    %v1489 = vpop.f32.mrb[0].mxu0
    %1490 = vmatprep.mubr.f32.mxu0 %v1262
    %1491 = vmatmul.mubr.f32.gmra.mrb[0].mxu0 %v1261
    %v1492 = vpop.f32.mrb[0].mxu0
    %v1493 = vadd.f32 %v1389, %v1492
    %v1494 = vpop.f32.mrb[0].mxu0
    %1495 = vdwg.mxu0
    %v1496 = vmax.f32 %v1458, 0.0
    %v1497 = vmax.f32 %v1463, 0.0
    %v1498 = vmax.f32 %v1468, 0.0
    %v1499 = vmax.f32 %v1473, 0.0
    %v1500 = vmax.f32 %v1478, 0.0
    %v1501 = vmax.f32 %v1483, 0.0
    %v1502 = vmax.f32 %v1488, 0.0
    %v1503 = vmax.f32 %v1493, 0.0
    %s1504 = scalar_lea.vmem %s7, 64
    %1505 = vst.msk [vmem:[%s1504] sm:$0xff] %vm767, %v1496
    %1506 = vst.msk [vmem:[%s1504 + $0x8] sm:$0xff] %vm767, %v1497
    %1507 = vst.msk [vmem:[%s1504 + $0x10] sm:$0xff] %vm767, %v1498
    %1508 = vst.msk [vmem:[%s1504 + $0x18] sm:$0xff] %vm767, %v1499
    %1509 = vst.msk [vmem:[%s1504 + $0x20] sm:$0xff] %vm767, %v1500
    %1510 = vst.msk [vmem:[%s1504 + $0x28] sm:$0xff] %vm767, %v1501
    %1511 = vst.msk [vmem:[%s1504 + $0x30] sm:$0xff] %vm767, %v1502
    %1512 = vst.msk [vmem:[%s1504 + $0x38] sm:$0xff] %vm767, %v1503
    // Predicated region
    $region34: #{model_forward.2} parent=1 // pred_check
      _
    $region35: #{model_forward.2} parent=1 // pred_check_branch
      %1514 = sbr.rel (0) target = $region37
    $region36: #{model_forward.2} parent=1 // pred_region
      _
    $region37: #{model_forward.2} parent=1 // pred_fallthru
      _
    // Predicated region
    $region38: #{model_forward.2} parent=1 // pred_check
      _
    $region39: #{model_forward.2} parent=1 // pred_check_branch
      %1516 = sbr.rel (0) target = $region41
    $region40: #{model_forward.2} parent=1 // pred_region
      _
    $region41: #{model_forward.2} parent=1 // pred_fallthru
      _
    %1517 = vsyncpa [#allocation3], 1

// kernel: model_forward.3
$region0: #{model_forward.3}
  #allocation0 [shape = 'u32[]', space=smem, size = 0x4, offset = 0x4, fixed_abs, tag = 'smem constant byte address 0x4 - core index']
  #allocation1 [shape = 'u32[144,128]{1,0:T(1,128)}', space=vmem, size = 0x12000, scoped, tag = 'internal scratch']
  #allocation2 [shape = 'f32[56,64]{1,0:T(8,128)}', space=vmem, size = 0x7000, scoped, tag = 'scratch operand']
  #allocation3 [shape = 'f32[1,1]{1,0:T(1,128)S(1)}', space=vmem, size = 0x200, scoped, tag = 'scoped memory for model_forward.3']
  %s0 = inlined_call_operand.vmem [shape: f32[56,64], index: 0, kind: input, shape index: {}]
  %s1 = inlined_call_operand.vmem [shape: f32[4,64,256], index: 1, kind: input, shape index: {}]
  %s2 = inlined_call_operand.vmem [shape: f32[4,64,256], index: 2, kind: input, shape index: {}]
  %s3 = inlined_call_operand.vmem [shape: f32[4,1,256], index: 3, kind: input, shape index: {}]
  %s4 = inlined_call_operand.hbm [shape: f32[1,64], index: 4, kind: input, shape index: {}]
  %s5 = inlined_call_operand.<no memory space> [shape: f32[1,1], index: 5, kind: input, shape index: {}]
  %s6 = inlined_call_operand.vmem [shape: f32[2,1], index: 6, kind: output, shape index: {}]
  %s7 = sld [smem:[#allocation0]]
  $region38: #{model_forward.3} parent=0
    _
  %s9 = ssub.s32 1, %s7
  %s10 = scalar_select 0, %s9, %s7
  %v11 = vstv %s5
  %12 = vst [vmem:[#allocation3] sm:$0x1] %v11
  $region1: #{model_forward.3} parent=0
    #allocation4 [shape = 'u8[512]{0}', space=vmem, size = 0x400, scoped, tag = 'input window, operand 4, single buffered']
    #allocation5 [shape = 's32[1]{0}', space=sflag, size = 0x4, scoped, tag = 'scoped memory for model_forward.3']
    %13 = vsyncpa [#allocation5], 0
    // Predicated region
    $region2: #{model_forward.3} parent=1 // pred_check
      _
    $region3: #{model_forward.3} parent=1 // pred_check_branch
      %15 = sbr.rel (0) target = $region5
    $region4: #{model_forward.3} parent=1 // pred_region
      _
    $region5: #{model_forward.3} parent=1 // pred_fallthru
      _
    // Predicated region
    $region6: #{model_forward.3} parent=1 // pred_check
      _
    $region7: #{model_forward.3} parent=1 // pred_check_branch
      %17 = sbr.rel (0) target = $region9
    $region8: #{model_forward.3} parent=1 // pred_region
      _
    $region9: #{model_forward.3} parent=1 // pred_fallthru
      _
    // Predicated region
    $region10: #{model_forward.3} parent=1 // pred_check
      _
    $region11: #{model_forward.3} parent=1 // pred_check_branch
      %19 = sbr.rel (0) target = $region13
    $region12: #{model_forward.3} parent=1 // pred_region
      _
    $region13: #{model_forward.3} parent=1 // pred_fallthru
      _
    // Predicated region
    $region14: #{model_forward.3} parent=1 // pred_check
      _
    $region15: #{model_forward.3} parent=1 // pred_check_branch
      %21 = sbr.rel (0) target = $region17
    $region16: #{model_forward.3} parent=1 // pred_region
      _
    $region17: #{model_forward.3} parent=1 // pred_fallthru
      _
    // Predicated region
    $region18: #{model_forward.3} parent=1 // pred_check
      _
    $region19: #{model_forward.3} parent=1 // pred_check_branch
      %23 = sbr.rel (0) target = $region21
    $region20: #{model_forward.3} parent=1 // pred_region
      %s25 = ssub.s32 16, 16
      %26 = vsyncadd [#allocation5], %s25
      %s28 = sshll.u32 [#allocation4], 4
      %s29 = int_to_ptr.vmem [resolvable:$true] %s28
      %31 = dma.hbm_to_vmem [thread:$0]  %s4, 16, %s29, [#allocation5]
    $region21: #{model_forward.3} parent=1 // pred_fallthru
      _
    // Predicated region
    $region22: #{model_forward.3} parent=1 // pred_check
      _
    $region23: #{model_forward.3} parent=1 // pred_check_branch
      %33 = sbr.rel (0) target = $region25
    $region24: #{model_forward.3} parent=1 // pred_region
      _
    $region25: #{model_forward.3} parent=1 // pred_fallthru
      _
    // Predicated region
    $region26: #{model_forward.3} parent=1 // pred_check
      _
    $region27: #{model_forward.3} parent=1 // pred_check_branch
      %35 = sbr.rel (0) target = $region29
    $region28: #{model_forward.3} parent=1 // pred_region
      %36 = dma.done [#allocation5], 16
    $region29: #{model_forward.3} parent=1 // pred_fallthru
      _
    %v37 = vld [vmem:[%s0] sm:$0xff]
    %v38 = vld [vmem:[%s0 + $0x8] sm:$0xff]
    %v39 = vld [vmem:[%s0 + $0x10] sm:$0xff]
    %v40 = vld [vmem:[%s0 + $0x18] sm:$0xff]
    %v41 = vld [vmem:[%s0 + $0x20] sm:$0xff]
    %v42 = vld [vmem:[%s0 + $0x28] sm:$0xff]
    %v43 = vld [vmem:[%s0 + $0x30] sm:$0xff]
    %v44 = vld [vmem:[%s1] sm:$0xff]
    %v45 = vld [vmem:[%s1 + $0x8] sm:$0xff]
    %v46 = vld [vmem:[%s1 + $0x10] sm:$0xff]
    %v47 = vld [vmem:[%s1 + $0x18] sm:$0xff]
    %v48 = vld [vmem:[%s1 + $0x20] sm:$0xff]
    %v49 = vld [vmem:[%s1 + $0x28] sm:$0xff]
    %v50 = vld [vmem:[%s1 + $0x30] sm:$0xff]
    %v51 = vld [vmem:[%s1 + $0x38] sm:$0xff]
    %v52 = vld [vmem:[%s1 + $0x40] sm:$0xff]
    %v53 = vld [vmem:[%s1 + $0x48] sm:$0xff]
    %v54 = vld [vmem:[%s1 + $0x50] sm:$0xff]
    %v55 = vld [vmem:[%s1 + $0x58] sm:$0xff]
    %v56 = vld [vmem:[%s1 + $0x60] sm:$0xff]
    %v57 = vld [vmem:[%s1 + $0x68] sm:$0xff]
    %v58 = vld [vmem:[%s1 + $0x70] sm:$0xff]
    %v59 = vld [vmem:[%s1 + $0x78] sm:$0xff]
    %v60 = vld [vmem:[%s3] sm:$0x3]
    %v62 = vlaneseq
    %v63 = vshrl.u32 %v62, 7
    %v64 = vsub.s32 0, %v63
    %v65 = vrot.slane %v60, %v64
    %v66 = vlaneseq
    %v67 = vshrl.u32 %v66, 7
    %v68 = vsub.s32 1, %v67
    %v69 = vrot.slane %v60, %v68
    %vm72 = vcmask 523264
    %v74 = vsel %vm72, %v37, 0
    %v77 = vsel %vm72, %v38, 0
    %v80 = vsel %vm72, %v39, 0
    %v83 = vsel %vm72, %v40, 0
    %v86 = vsel %vm72, %v41, 0
    %v89 = vsel %vm72, %v42, 0
    %v92 = vsel %vm72, %v43, 0
    %94 = vmatprep.subr.mxu0 %v45
    %95 = vmatpush1.msra.mxu0 %v44
    %96 = vmatprep.subr.mxu0 %v47
    %97 = vmatpush1.msra.mxu0 %v46
    %98 = vmatprep.subr.mxu0 %v49
    %99 = vmatpush1.msra.mxu0 %v48
    %100 = vmatprep.subr.mxu0 %v51
    %101 = vmatpush1.msra.mxu0 %v50
    %102 = vmatprep.subr.mxu0 %v53
    %103 = vmatpush1.msra.mxu0 %v52
    %104 = vmatprep.subr.mxu0 %v55
    %105 = vmatpush1.msra.mxu0 %v54
    %106 = vmatprep.subr.mxu0 %v57
    %107 = vmatpush1.msra.mxu0 %v56
    %108 = vmatprep.subr.mxu0 %v59
    %109 = vmatpush1.msra.mxu0 %v58
    %110 = vmatprep.subr.mxu0 0.0
    %111 = vmatpush1.msra.mxu0 0.0
    %112 = vmatprep.subr.mxu0 0.0
    %113 = vmatpush1.msra.mxu0 0.0
    %114 = vmatprep.subr.mxu0 0.0
    %115 = vmatpush1.msra.mxu0 0.0
    %116 = vmatprep.subr.mxu0 0.0
    %117 = vmatpush1.msra.mxu0 0.0
    %118 = vmatprep.subr.mxu0 0.0
    %119 = vmatpush1.msra.mxu0 0.0
    %120 = vmatprep.subr.mxu0 0.0
    %121 = vmatpush1.msra.mxu0 0.0
    %122 = vmatprep.subr.mxu0 0.0
    %123 = vmatpush1.msra.mxu0 0.0
    %124 = vmatprep.subr.mxu0 0.0
    %125 = vmatpush1.msra.mxu0 0.0
    %126 = vmatprep.subr.mxu0 0.0
    %127 = vmatpush1.msra.mxu0 0.0
    %128 = vmatprep.subr.mxu0 0.0
    %129 = vmatpush1.msra.mxu0 0.0
    %130 = vmatprep.subr.mxu0 0.0
    %131 = vmatpush1.msra.mxu0 0.0
    %132 = vmatprep.subr.mxu0 0.0
    %133 = vmatpush1.msra.mxu0 0.0
    %134 = vmatprep.subr.mxu0 0.0
    %135 = vmatpush1.msra.mxu0 0.0
    %136 = vmatprep.subr.mxu0 0.0
    %137 = vmatpush1.msra.mxu0 0.0
    %138 = vmatprep.subr.mxu0 0.0
    %139 = vmatpush1.msra.mxu0 0.0
    %140 = vmatprep.subr.mxu0 0.0
    %141 = vmatpush1.msra.mxu0 0.0
    %142 = vmatprep.subr.mxu0 0.0
    %143 = vmatpush1.msra.mxu0 0.0
    %144 = vmatprep.subr.mxu0 0.0
    %145 = vmatpush1.msra.mxu0 0.0
    %146 = vmatprep.subr.mxu0 0.0
    %147 = vmatpush1.msra.mxu0 0.0
    %148 = vmatprep.subr.mxu0 0.0
    %149 = vmatpush1.msra.mxu0 0.0
    %150 = vmatprep.subr.mxu0 0.0
    %151 = vmatpush1.msra.mxu0 0.0
    %152 = vmatprep.subr.mxu0 0.0
    %153 = vmatpush1.msra.mxu0 0.0
    %154 = vmatprep.subr.mxu0 0.0
    %155 = vmatpush1.msra.mxu0 0.0
    %156 = vmatprep.subr.mxu0 0.0
    %157 = vmatpush1.msra.mxu0 0.0
    %158 = vmatprep.mubr.f32.mxu0 0.0
    %159 = vmatmul.mubr.f32.gmra.mrb[0].mxu0 %v74
    %v160 = vpop.f32.mrb[0].mxu0
    %v161 = vadd.f32 %v65, %v160
    %v162 = vpop.f32.mrb[0].mxu0
    %v163 = vadd.f32 %v69, %v162
    %164 = vmatprep.mubr.f32.mxu0 0.0
    %165 = vmatmul.mubr.f32.gmra.mrb[0].mxu0 %v77
    %v166 = vpop.f32.mrb[0].mxu0
    %v167 = vadd.f32 %v65, %v166
    %v168 = vpop.f32.mrb[0].mxu0
    %v169 = vadd.f32 %v69, %v168
    %170 = vmatprep.mubr.f32.mxu0 0.0
    %171 = vmatmul.mubr.f32.gmra.mrb[0].mxu0 %v80
    %v172 = vpop.f32.mrb[0].mxu0
    %v173 = vadd.f32 %v65, %v172
    %v174 = vpop.f32.mrb[0].mxu0
    %v175 = vadd.f32 %v69, %v174
    %176 = vmatprep.mubr.f32.mxu0 0.0
    %177 = vmatmul.mubr.f32.gmra.mrb[0].mxu0 %v83
    %v178 = vpop.f32.mrb[0].mxu0
    %v179 = vadd.f32 %v65, %v178
    %v180 = vpop.f32.mrb[0].mxu0
    %v181 = vadd.f32 %v69, %v180
    %182 = vmatprep.mubr.f32.mxu0 0.0
    %183 = vmatmul.mubr.f32.gmra.mrb[0].mxu0 %v86
    %v184 = vpop.f32.mrb[0].mxu0
    %v185 = vadd.f32 %v65, %v184
    %v186 = vpop.f32.mrb[0].mxu0
    %v187 = vadd.f32 %v69, %v186
    %188 = vmatprep.mubr.f32.mxu0 0.0
    %189 = vmatmul.mubr.f32.gmra.mrb[0].mxu0 %v89
    %v190 = vpop.f32.mrb[0].mxu0
    %v191 = vadd.f32 %v65, %v190
    %v192 = vpop.f32.mrb[0].mxu0
    %v193 = vadd.f32 %v69, %v192
    %194 = vmatprep.mubr.f32.mxu0 0.0
    %195 = vmatmul.mubr.f32.gmra.mrb[0].mxu0 %v92
    %v196 = vpop.f32.mrb[0].mxu0
    %v197 = vadd.f32 %v65, %v196
    %v198 = vpop.f32.mrb[0].mxu0
    %v199 = vadd.f32 %v69, %v198
    %200 = vdwg.mxu0
    %v201 = vld [vmem:[%s2] sm:$0xff]
    %v202 = vld [vmem:[%s2 + $0x8] sm:$0xff]
    %v203 = vld [vmem:[%s2 + $0x10] sm:$0xff]
    %v204 = vld [vmem:[%s2 + $0x18] sm:$0xff]
    %v205 = vld [vmem:[%s2 + $0x20] sm:$0xff]
    %v206 = vld [vmem:[%s2 + $0x28] sm:$0xff]
    %v207 = vld [vmem:[%s2 + $0x30] sm:$0xff]
    %v208 = vld [vmem:[%s2 + $0x38] sm:$0xff]
    %v209 = vld [vmem:[%s2 + $0x40] sm:$0xff]
    %v210 = vld [vmem:[%s2 + $0x48] sm:$0xff]
    %v211 = vld [vmem:[%s2 + $0x50] sm:$0xff]
    %v212 = vld [vmem:[%s2 + $0x58] sm:$0xff]
    %v213 = vld [vmem:[%s2 + $0x60] sm:$0xff]
    %v214 = vld [vmem:[%s2 + $0x68] sm:$0xff]
    %v215 = vld [vmem:[%s2 + $0x70] sm:$0xff]
    %v216 = vld [vmem:[%s2 + $0x78] sm:$0xff]
    %v218 = vsel %vm72, 0.0, 0
    %220 = vmatprep.subr.mxu0 %v202
    %221 = vmatpush1.msra.mxu0 %v201
    %222 = vmatprep.subr.mxu0 %v204
    %223 = vmatpush1.msra.mxu0 %v203
    %224 = vmatprep.subr.mxu0 %v206
    %225 = vmatpush1.msra.mxu0 %v205
    %226 = vmatprep.subr.mxu0 %v208
    %227 = vmatpush1.msra.mxu0 %v207
    %228 = vmatprep.subr.mxu0 %v210
    %229 = vmatpush1.msra.mxu0 %v209
    %230 = vmatprep.subr.mxu0 %v212
    %231 = vmatpush1.msra.mxu0 %v211
    %232 = vmatprep.subr.mxu0 %v214
    %233 = vmatpush1.msra.mxu0 %v213
    %234 = vmatprep.subr.mxu0 %v216
    %235 = vmatpush1.msra.mxu0 %v215
    %236 = vmatprep.subr.mxu0 0.0
    %237 = vmatpush1.msra.mxu0 0.0
    %238 = vmatprep.subr.mxu0 0.0
    %239 = vmatpush1.msra.mxu0 0.0
    %240 = vmatprep.subr.mxu0 0.0
    %241 = vmatpush1.msra.mxu0 0.0
    %242 = vmatprep.subr.mxu0 0.0
    %243 = vmatpush1.msra.mxu0 0.0
    %244 = vmatprep.subr.mxu0 0.0
    %245 = vmatpush1.msra.mxu0 0.0
    %246 = vmatprep.subr.mxu0 0.0
    %247 = vmatpush1.msra.mxu0 0.0
    %248 = vmatprep.subr.mxu0 0.0
    %249 = vmatpush1.msra.mxu0 0.0
    %250 = vmatprep.subr.mxu0 0.0
    %251 = vmatpush1.msra.mxu0 0.0
    %252 = vmatprep.subr.mxu0 0.0
    %253 = vmatpush1.msra.mxu0 0.0
    %254 = vmatprep.subr.mxu0 0.0
    %255 = vmatpush1.msra.mxu0 0.0
    %256 = vmatprep.subr.mxu0 0.0
    %257 = vmatpush1.msra.mxu0 0.0
    %258 = vmatprep.subr.mxu0 0.0
    %259 = vmatpush1.msra.mxu0 0.0
    %260 = vmatprep.subr.mxu0 0.0
    %261 = vmatpush1.msra.mxu0 0.0
    %262 = vmatprep.subr.mxu0 0.0
    %263 = vmatpush1.msra.mxu0 0.0
    %264 = vmatprep.subr.mxu0 0.0
    %265 = vmatpush1.msra.mxu0 0.0
    %266 = vmatprep.subr.mxu0 0.0
    %267 = vmatpush1.msra.mxu0 0.0
    %268 = vmatprep.subr.mxu0 0.0
    %269 = vmatpush1.msra.mxu0 0.0
    %270 = vmatprep.subr.mxu0 0.0
    %271 = vmatpush1.msra.mxu0 0.0
    %272 = vmatprep.subr.mxu0 0.0
    %273 = vmatpush1.msra.mxu0 0.0
    %274 = vmatprep.subr.mxu0 0.0
    %275 = vmatpush1.msra.mxu0 0.0
    %276 = vmatprep.subr.mxu0 0.0
    %277 = vmatpush1.msra.mxu0 0.0
    %278 = vmatprep.subr.mxu0 0.0
    %279 = vmatpush1.msra.mxu0 0.0
    %280 = vmatprep.subr.mxu0 0.0
    %281 = vmatpush1.msra.mxu0 0.0
    %282 = vmatprep.subr.mxu0 0.0
    %283 = vmatpush1.msra.mxu0 0.0
    %284 = vmatprep.mubr.f32.mxu0 0.0
    %285 = vmatmul.mubr.f32.gmra.mrb[0].mxu0 %v218
    %v286 = vpop.f32.mrb[0].mxu0
    %v287 = vadd.f32 0.0, %v286
    %v288 = vpop.f32.mrb[0].mxu0
    %v289 = vadd.f32 0.0, %v288
    %290 = vdwg.mxu0
    %v291 = vadd.f32 %v161, %v287
    %v292 = vadd.f32 %v163, %v289
    %v293 = vxor.u32 %v291, 2147483648
    %v294 = vxor.u32 %v292, 2147483648
    %v295 = vmul.f32 %v293, 1.442695
    %v296 = vpow.pop %v295
    %v297 = vmul.f32 %v294, 1.442695
    %v298 = vpow.pop %v297
    %v299 = vadd.f32 %v296, 1.0
    %v300 = vadd.f32 %v298, 1.0
    %v301 = vrcp.pop %v299
    %v302 = vmul.f32 1.0, %v301
    %v303 = vrcp.pop %v300
    %v304 = vmul.f32 1.0, %v303
    %v305 = vtanh.pop %v292
    %v306 = vmul.f32 %v302, 0.0
    %308 = vrot.lane.b32.xlu0 %v305, 64
    %v309 = vpop.permute.xlu0 %308
    %v311 = vmul.f32 %v302, %v309
    %313 = vrot.lane.b32.xlu0 %v311, 64
    %v314 = vpop.permute.xlu0 %313
    %v316 = vadd.f32 %v306, %v314
    %v317 = vtanh.pop %v316
    %319 = vrot.lane.b32.xlu0 %v317, 64
    %v320 = vpop.permute.xlu0 %319
    %v322 = vmul.f32 %v304, %v320
    %323 = vst.msk [vmem:[#allocation2] sm:$0xff] %vm72, %v322
    %v325 = vsel %vm72, %v322, 0
    %327 = vmatprep.subr.mxu0 %v202
    %328 = vmatpush1.msra.mxu0 %v201
    %329 = vmatprep.subr.mxu0 %v204
    %330 = vmatpush1.msra.mxu0 %v203
    %331 = vmatprep.subr.mxu0 %v206
    %332 = vmatpush1.msra.mxu0 %v205
    %333 = vmatprep.subr.mxu0 %v208
    %334 = vmatpush1.msra.mxu0 %v207
    %335 = vmatprep.subr.mxu0 %v210
    %336 = vmatpush1.msra.mxu0 %v209
    %337 = vmatprep.subr.mxu0 %v212
    %338 = vmatpush1.msra.mxu0 %v211
    %339 = vmatprep.subr.mxu0 %v214
    %340 = vmatpush1.msra.mxu0 %v213
    %341 = vmatprep.subr.mxu0 %v216
    %342 = vmatpush1.msra.mxu0 %v215
    %343 = vmatprep.subr.mxu0 0.0
    %344 = vmatpush1.msra.mxu0 0.0
    %345 = vmatprep.subr.mxu0 0.0
    %346 = vmatpush1.msra.mxu0 0.0
    %347 = vmatprep.subr.mxu0 0.0
    %348 = vmatpush1.msra.mxu0 0.0
    %349 = vmatprep.subr.mxu0 0.0
    %350 = vmatpush1.msra.mxu0 0.0
    %351 = vmatprep.subr.mxu0 0.0
    %352 = vmatpush1.msra.mxu0 0.0
    %353 = vmatprep.subr.mxu0 0.0
    %354 = vmatpush1.msra.mxu0 0.0
    %355 = vmatprep.subr.mxu0 0.0
    %356 = vmatpush1.msra.mxu0 0.0
    %357 = vmatprep.subr.mxu0 0.0
    %358 = vmatpush1.msra.mxu0 0.0
    %359 = vmatprep.subr.mxu0 0.0
    %360 = vmatpush1.msra.mxu0 0.0
    %361 = vmatprep.subr.mxu0 0.0
    %362 = vmatpush1.msra.mxu0 0.0
    %363 = vmatprep.subr.mxu0 0.0
    %364 = vmatpush1.msra.mxu0 0.0
    %365 = vmatprep.subr.mxu0 0.0
    %366 = vmatpush1.msra.mxu0 0.0
    %367 = vmatprep.subr.mxu0 0.0
    %368 = vmatpush1.msra.mxu0 0.0
    %369 = vmatprep.subr.mxu0 0.0
    %370 = vmatpush1.msra.mxu0 0.0
    %371 = vmatprep.subr.mxu0 0.0
    %372 = vmatpush1.msra.mxu0 0.0
    %373 = vmatprep.subr.mxu0 0.0
    %374 = vmatpush1.msra.mxu0 0.0
    %375 = vmatprep.subr.mxu0 0.0
    %376 = vmatpush1.msra.mxu0 0.0
    %377 = vmatprep.subr.mxu0 0.0
    %378 = vmatpush1.msra.mxu0 0.0
    %379 = vmatprep.subr.mxu0 0.0
    %380 = vmatpush1.msra.mxu0 0.0
    %381 = vmatprep.subr.mxu0 0.0
    %382 = vmatpush1.msra.mxu0 0.0
    %383 = vmatprep.subr.mxu0 0.0
    %384 = vmatpush1.msra.mxu0 0.0
    %385 = vmatprep.subr.mxu0 0.0
    %386 = vmatpush1.msra.mxu0 0.0
    %387 = vmatprep.subr.mxu0 0.0
    %388 = vmatpush1.msra.mxu0 0.0
    %389 = vmatprep.subr.mxu0 0.0
    %390 = vmatpush1.msra.mxu0 0.0
    %391 = vmatprep.mubr.f32.mxu0 0.0
    %392 = vmatmul.mubr.f32.gmra.mrb[0].mxu0 %v325
    %v393 = vpop.f32.mrb[0].mxu0
    %v394 = vadd.f32 0.0, %v393
    %v395 = vpop.f32.mrb[0].mxu0
    %v396 = vadd.f32 0.0, %v395
    %397 = vdwg.mxu0
    %v398 = vadd.f32 %v167, %v394
    %v399 = vadd.f32 %v169, %v396
    %v400 = vxor.u32 %v398, 2147483648
    %v401 = vxor.u32 %v399, 2147483648
    %v402 = vmul.f32 %v400, 1.442695
    %v403 = vpow.pop %v402
    %v404 = vmul.f32 %v401, 1.442695
    %v405 = vpow.pop %v404
    %v406 = vadd.f32 %v403, 1.0
    %v407 = vadd.f32 %v405, 1.0
    %v408 = vrcp.pop %v406
    %v409 = vmul.f32 1.0, %v408
    %v410 = vrcp.pop %v407
    %v411 = vmul.f32 1.0, %v410
    %v412 = vtanh.pop %v399
    %v413 = vmul.f32 %v409, %v316
    %415 = vrot.lane.b32.xlu0 %v412, 64
    %v416 = vpop.permute.xlu0 %415
    %v418 = vmul.f32 %v409, %v416
    %420 = vrot.lane.b32.xlu0 %v418, 64
    %v421 = vpop.permute.xlu0 %420
    %v423 = vadd.f32 %v413, %v421
    %v424 = vtanh.pop %v423
    %426 = vrot.lane.b32.xlu0 %v424, 64
    %v427 = vpop.permute.xlu0 %426
    %v429 = vmul.f32 %v411, %v427
    %430 = vst.msk [vmem:[#allocation2 + $0x8] sm:$0xff] %vm72, %v429
    %v432 = vsel %vm72, %v429, 0
    %434 = vmatprep.subr.mxu0 %v202
    %435 = vmatpush1.msra.mxu0 %v201
    %436 = vmatprep.subr.mxu0 %v204
    %437 = vmatpush1.msra.mxu0 %v203
    %438 = vmatprep.subr.mxu0 %v206
    %439 = vmatpush1.msra.mxu0 %v205
    %440 = vmatprep.subr.mxu0 %v208
    %441 = vmatpush1.msra.mxu0 %v207
    %442 = vmatprep.subr.mxu0 %v210
    %443 = vmatpush1.msra.mxu0 %v209
    %444 = vmatprep.subr.mxu0 %v212
    %445 = vmatpush1.msra.mxu0 %v211
    %446 = vmatprep.subr.mxu0 %v214
    %447 = vmatpush1.msra.mxu0 %v213
    %448 = vmatprep.subr.mxu0 %v216
    %449 = vmatpush1.msra.mxu0 %v215
    %450 = vmatprep.subr.mxu0 0.0
    %451 = vmatpush1.msra.mxu0 0.0
    %452 = vmatprep.subr.mxu0 0.0
    %453 = vmatpush1.msra.mxu0 0.0
    %454 = vmatprep.subr.mxu0 0.0
    %455 = vmatpush1.msra.mxu0 0.0
    %456 = vmatprep.subr.mxu0 0.0
    %457 = vmatpush1.msra.mxu0 0.0
    %458 = vmatprep.subr.mxu0 0.0
    %459 = vmatpush1.msra.mxu0 0.0
    %460 = vmatprep.subr.mxu0 0.0
    %461 = vmatpush1.msra.mxu0 0.0
    %462 = vmatprep.subr.mxu0 0.0
    %463 = vmatpush1.msra.mxu0 0.0
    %464 = vmatprep.subr.mxu0 0.0
    %465 = vmatpush1.msra.mxu0 0.0
    %466 = vmatprep.subr.mxu0 0.0
    %467 = vmatpush1.msra.mxu0 0.0
    %468 = vmatprep.subr.mxu0 0.0
    %469 = vmatpush1.msra.mxu0 0.0
    %470 = vmatprep.subr.mxu0 0.0
    %471 = vmatpush1.msra.mxu0 0.0
    %472 = vmatprep.subr.mxu0 0.0
    %473 = vmatpush1.msra.mxu0 0.0
    %474 = vmatprep.subr.mxu0 0.0
    %475 = vmatpush1.msra.mxu0 0.0
    %476 = vmatprep.subr.mxu0 0.0
    %477 = vmatpush1.msra.mxu0 0.0
    %478 = vmatprep.subr.mxu0 0.0
    %479 = vmatpush1.msra.mxu0 0.0
    %480 = vmatprep.subr.mxu0 0.0
    %481 = vmatpush1.msra.mxu0 0.0
    %482 = vmatprep.subr.mxu0 0.0
    %483 = vmatpush1.msra.mxu0 0.0
    %484 = vmatprep.subr.mxu0 0.0
    %485 = vmatpush1.msra.mxu0 0.0
    %486 = vmatprep.subr.mxu0 0.0
    %487 = vmatpush1.msra.mxu0 0.0
    %488 = vmatprep.subr.mxu0 0.0
    %489 = vmatpush1.msra.mxu0 0.0
    %490 = vmatprep.subr.mxu0 0.0
    %491 = vmatpush1.msra.mxu0 0.0
    %492 = vmatprep.subr.mxu0 0.0
    %493 = vmatpush1.msra.mxu0 0.0
    %494 = vmatprep.subr.mxu0 0.0
    %495 = vmatpush1.msra.mxu0 0.0
    %496 = vmatprep.subr.mxu0 0.0
    %497 = vmatpush1.msra.mxu0 0.0
    %498 = vmatprep.mubr.f32.mxu0 0.0
    %499 = vmatmul.mubr.f32.gmra.mrb[0].mxu0 %v432
    %v500 = vpop.f32.mrb[0].mxu0
    %v501 = vadd.f32 0.0, %v500
    %v502 = vpop.f32.mrb[0].mxu0
    %v503 = vadd.f32 0.0, %v502
    %504 = vdwg.mxu0
    %v505 = vadd.f32 %v173, %v501
    %v506 = vadd.f32 %v175, %v503
    %v507 = vxor.u32 %v505, 2147483648
    %v508 = vxor.u32 %v506, 2147483648
    %v509 = vmul.f32 %v507, 1.442695
    %v510 = vpow.pop %v509
    %v511 = vmul.f32 %v508, 1.442695
    %v512 = vpow.pop %v511
    %v513 = vadd.f32 %v510, 1.0
    %v514 = vadd.f32 %v512, 1.0
    %v515 = vrcp.pop %v513
    %v516 = vmul.f32 1.0, %v515
    %v517 = vrcp.pop %v514
    %v518 = vmul.f32 1.0, %v517
    %v519 = vtanh.pop %v506
    %v520 = vmul.f32 %v516, %v423
    %522 = vrot.lane.b32.xlu0 %v519, 64
    %v523 = vpop.permute.xlu0 %522
    %v525 = vmul.f32 %v516, %v523
    %527 = vrot.lane.b32.xlu0 %v525, 64
    %v528 = vpop.permute.xlu0 %527
    %v530 = vadd.f32 %v520, %v528
    %v531 = vtanh.pop %v530
    %533 = vrot.lane.b32.xlu0 %v531, 64
    %v534 = vpop.permute.xlu0 %533
    %v536 = vmul.f32 %v518, %v534
    %537 = vst.msk [vmem:[#allocation2 + $0x10] sm:$0xff] %vm72, %v536
    %v539 = vsel %vm72, %v536, 0
    %541 = vmatprep.subr.mxu0 %v202
    %542 = vmatpush1.msra.mxu0 %v201
    %543 = vmatprep.subr.mxu0 %v204
    %544 = vmatpush1.msra.mxu0 %v203
    %545 = vmatprep.subr.mxu0 %v206
    %546 = vmatpush1.msra.mxu0 %v205
    %547 = vmatprep.subr.mxu0 %v208
    %548 = vmatpush1.msra.mxu0 %v207
    %549 = vmatprep.subr.mxu0 %v210
    %550 = vmatpush1.msra.mxu0 %v209
    %551 = vmatprep.subr.mxu0 %v212
    %552 = vmatpush1.msra.mxu0 %v211
    %553 = vmatprep.subr.mxu0 %v214
    %554 = vmatpush1.msra.mxu0 %v213
    %555 = vmatprep.subr.mxu0 %v216
    %556 = vmatpush1.msra.mxu0 %v215
    %557 = vmatprep.subr.mxu0 0.0
    %558 = vmatpush1.msra.mxu0 0.0
    %559 = vmatprep.subr.mxu0 0.0
    %560 = vmatpush1.msra.mxu0 0.0
    %561 = vmatprep.subr.mxu0 0.0
    %562 = vmatpush1.msra.mxu0 0.0
    %563 = vmatprep.subr.mxu0 0.0
    %564 = vmatpush1.msra.mxu0 0.0
    %565 = vmatprep.subr.mxu0 0.0
    %566 = vmatpush1.msra.mxu0 0.0
    %567 = vmatprep.subr.mxu0 0.0
    %568 = vmatpush1.msra.mxu0 0.0
    %569 = vmatprep.subr.mxu0 0.0
    %570 = vmatpush1.msra.mxu0 0.0
    %571 = vmatprep.subr.mxu0 0.0
    %572 = vmatpush1.msra.mxu0 0.0
    %573 = vmatprep.subr.mxu0 0.0
    %574 = vmatpush1.msra.mxu0 0.0
    %575 = vmatprep.subr.mxu0 0.0
    %576 = vmatpush1.msra.mxu0 0.0
    %577 = vmatprep.subr.mxu0 0.0
    %578 = vmatpush1.msra.mxu0 0.0
    %579 = vmatprep.subr.mxu0 0.0
    %580 = vmatpush1.msra.mxu0 0.0
    %581 = vmatprep.subr.mxu0 0.0
    %582 = vmatpush1.msra.mxu0 0.0
    %583 = vmatprep.subr.mxu0 0.0
    %584 = vmatpush1.msra.mxu0 0.0
    %585 = vmatprep.subr.mxu0 0.0
    %586 = vmatpush1.msra.mxu0 0.0
    %587 = vmatprep.subr.mxu0 0.0
    %588 = vmatpush1.msra.mxu0 0.0
    %589 = vmatprep.subr.mxu0 0.0
    %590 = vmatpush1.msra.mxu0 0.0
    %591 = vmatprep.subr.mxu0 0.0
    %592 = vmatpush1.msra.mxu0 0.0
    %593 = vmatprep.subr.mxu0 0.0
    %594 = vmatpush1.msra.mxu0 0.0
    %595 = vmatprep.subr.mxu0 0.0
    %596 = vmatpush1.msra.mxu0 0.0
    %597 = vmatprep.subr.mxu0 0.0
    %598 = vmatpush1.msra.mxu0 0.0
    %599 = vmatprep.subr.mxu0 0.0
    %600 = vmatpush1.msra.mxu0 0.0
    %601 = vmatprep.subr.mxu0 0.0
    %602 = vmatpush1.msra.mxu0 0.0
    %603 = vmatprep.subr.mxu0 0.0
    %604 = vmatpush1.msra.mxu0 0.0
    %605 = vmatprep.mubr.f32.mxu0 0.0
    %606 = vmatmul.mubr.f32.gmra.mrb[0].mxu0 %v539
    %v607 = vpop.f32.mrb[0].mxu0
    %v608 = vadd.f32 0.0, %v607
    %v609 = vpop.f32.mrb[0].mxu0
    %v610 = vadd.f32 0.0, %v609
    %611 = vdwg.mxu0
    %v612 = vadd.f32 %v179, %v608
    %v613 = vadd.f32 %v181, %v610
    %v614 = vxor.u32 %v612, 2147483648
    %v615 = vxor.u32 %v613, 2147483648
    %v616 = vmul.f32 %v614, 1.442695
    %v617 = vpow.pop %v616
    %v618 = vmul.f32 %v615, 1.442695
    %v619 = vpow.pop %v618
    %v620 = vadd.f32 %v617, 1.0
    %v621 = vadd.f32 %v619, 1.0
    %v622 = vrcp.pop %v620
    %v623 = vmul.f32 1.0, %v622
    %v624 = vrcp.pop %v621
    %v625 = vmul.f32 1.0, %v624
    %v626 = vtanh.pop %v613
    %v627 = vmul.f32 %v623, %v530
    %629 = vrot.lane.b32.xlu0 %v626, 64
    %v630 = vpop.permute.xlu0 %629
    %v632 = vmul.f32 %v623, %v630
    %634 = vrot.lane.b32.xlu0 %v632, 64
    %v635 = vpop.permute.xlu0 %634
    %v637 = vadd.f32 %v627, %v635
    %v638 = vtanh.pop %v637
    %640 = vrot.lane.b32.xlu0 %v638, 64
    %v641 = vpop.permute.xlu0 %640
    %v643 = vmul.f32 %v625, %v641
    %644 = vst.msk [vmem:[#allocation2 + $0x18] sm:$0xff] %vm72, %v643
    %v646 = vsel %vm72, %v643, 0
    %648 = vmatprep.subr.mxu0 %v202
    %649 = vmatpush1.msra.mxu0 %v201
    %650 = vmatprep.subr.mxu0 %v204
    %651 = vmatpush1.msra.mxu0 %v203
    %652 = vmatprep.subr.mxu0 %v206
    %653 = vmatpush1.msra.mxu0 %v205
    %654 = vmatprep.subr.mxu0 %v208
    %655 = vmatpush1.msra.mxu0 %v207
    %656 = vmatprep.subr.mxu0 %v210
    %657 = vmatpush1.msra.mxu0 %v209
    %658 = vmatprep.subr.mxu0 %v212
    %659 = vmatpush1.msra.mxu0 %v211
    %660 = vmatprep.subr.mxu0 %v214
    %661 = vmatpush1.msra.mxu0 %v213
    %662 = vmatprep.subr.mxu0 %v216
    %663 = vmatpush1.msra.mxu0 %v215
    %664 = vmatprep.subr.mxu0 0.0
    %665 = vmatpush1.msra.mxu0 0.0
    %666 = vmatprep.subr.mxu0 0.0
    %667 = vmatpush1.msra.mxu0 0.0
    %668 = vmatprep.subr.mxu0 0.0
    %669 = vmatpush1.msra.mxu0 0.0
    %670 = vmatprep.subr.mxu0 0.0
    %671 = vmatpush1.msra.mxu0 0.0
    %672 = vmatprep.subr.mxu0 0.0
    %673 = vmatpush1.msra.mxu0 0.0
    %674 = vmatprep.subr.mxu0 0.0
    %675 = vmatpush1.msra.mxu0 0.0
    %676 = vmatprep.subr.mxu0 0.0
    %677 = vmatpush1.msra.mxu0 0.0
    %678 = vmatprep.subr.mxu0 0.0
    %679 = vmatpush1.msra.mxu0 0.0
    %680 = vmatprep.subr.mxu0 0.0
    %681 = vmatpush1.msra.mxu0 0.0
    %682 = vmatprep.subr.mxu0 0.0
    %683 = vmatpush1.msra.mxu0 0.0
    %684 = vmatprep.subr.mxu0 0.0
    %685 = vmatpush1.msra.mxu0 0.0
    %686 = vmatprep.subr.mxu0 0.0
    %687 = vmatpush1.msra.mxu0 0.0
    %688 = vmatprep.subr.mxu0 0.0
    %689 = vmatpush1.msra.mxu0 0.0
    %690 = vmatprep.subr.mxu0 0.0
    %691 = vmatpush1.msra.mxu0 0.0
    %692 = vmatprep.subr.mxu0 0.0
    %693 = vmatpush1.msra.mxu0 0.0
    %694 = vmatprep.subr.mxu0 0.0
    %695 = vmatpush1.msra.mxu0 0.0
    %696 = vmatprep.subr.mxu0 0.0
    %697 = vmatpush1.msra.mxu0 0.0
    %698 = vmatprep.subr.mxu0 0.0
    %699 = vmatpush1.msra.mxu0 0.0
    %700 = vmatprep.subr.mxu0 0.0
    %701 = vmatpush1.msra.mxu0 0.0
    %702 = vmatprep.subr.mxu0 0.0
    %703 = vmatpush1.msra.mxu0 0.0
    %704 = vmatprep.subr.mxu0 0.0
    %705 = vmatpush1.msra.mxu0 0.0
    %706 = vmatprep.subr.mxu0 0.0
    %707 = vmatpush1.msra.mxu0 0.0
    %708 = vmatprep.subr.mxu0 0.0
    %709 = vmatpush1.msra.mxu0 0.0
    %710 = vmatprep.subr.mxu0 0.0
    %711 = vmatpush1.msra.mxu0 0.0
    %712 = vmatprep.mubr.f32.mxu0 0.0
    %713 = vmatmul.mubr.f32.gmra.mrb[0].mxu0 %v646
    %v714 = vpop.f32.mrb[0].mxu0
    %v715 = vadd.f32 0.0, %v714
    %v716 = vpop.f32.mrb[0].mxu0
    %v717 = vadd.f32 0.0, %v716
    %718 = vdwg.mxu0
    %v719 = vadd.f32 %v185, %v715
    %v720 = vadd.f32 %v187, %v717
    %v721 = vxor.u32 %v719, 2147483648
    %v722 = vxor.u32 %v720, 2147483648
    %v723 = vmul.f32 %v721, 1.442695
    %v724 = vpow.pop %v723
    %v725 = vmul.f32 %v722, 1.442695
    %v726 = vpow.pop %v725
    %v727 = vadd.f32 %v724, 1.0
    %v728 = vadd.f32 %v726, 1.0
    %v729 = vrcp.pop %v727
    %v730 = vmul.f32 1.0, %v729
    %v731 = vrcp.pop %v728
    %v732 = vmul.f32 1.0, %v731
    %v733 = vtanh.pop %v720
    %v734 = vmul.f32 %v730, %v637
    %736 = vrot.lane.b32.xlu0 %v733, 64
    %v737 = vpop.permute.xlu0 %736
    %v739 = vmul.f32 %v730, %v737
    %741 = vrot.lane.b32.xlu0 %v739, 64
    %v742 = vpop.permute.xlu0 %741
    %v744 = vadd.f32 %v734, %v742
    %v745 = vtanh.pop %v744
    %747 = vrot.lane.b32.xlu0 %v745, 64
    %v748 = vpop.permute.xlu0 %747
    %v750 = vmul.f32 %v732, %v748
    %751 = vst.msk [vmem:[#allocation2 + $0x20] sm:$0xff] %vm72, %v750
    %v753 = vsel %vm72, %v750, 0
    %755 = vmatprep.subr.mxu0 %v202
    %756 = vmatpush1.msra.mxu0 %v201
    %757 = vmatprep.subr.mxu0 %v204
    %758 = vmatpush1.msra.mxu0 %v203
    %759 = vmatprep.subr.mxu0 %v206
    %760 = vmatpush1.msra.mxu0 %v205
    %761 = vmatprep.subr.mxu0 %v208
    %762 = vmatpush1.msra.mxu0 %v207
    %763 = vmatprep.subr.mxu0 %v210
    %764 = vmatpush1.msra.mxu0 %v209
    %765 = vmatprep.subr.mxu0 %v212
    %766 = vmatpush1.msra.mxu0 %v211
    %767 = vmatprep.subr.mxu0 %v214
    %768 = vmatpush1.msra.mxu0 %v213
    %769 = vmatprep.subr.mxu0 %v216
    %770 = vmatpush1.msra.mxu0 %v215
    %771 = vmatprep.subr.mxu0 0.0
    %772 = vmatpush1.msra.mxu0 0.0
    %773 = vmatprep.subr.mxu0 0.0
    %774 = vmatpush1.msra.mxu0 0.0
    %775 = vmatprep.subr.mxu0 0.0
    %776 = vmatpush1.msra.mxu0 0.0
    %777 = vmatprep.subr.mxu0 0.0
    %778 = vmatpush1.msra.mxu0 0.0
    %779 = vmatprep.subr.mxu0 0.0
    %780 = vmatpush1.msra.mxu0 0.0
    %781 = vmatprep.subr.mxu0 0.0
    %782 = vmatpush1.msra.mxu0 0.0
    %783 = vmatprep.subr.mxu0 0.0
    %784 = vmatpush1.msra.mxu0 0.0
    %785 = vmatprep.subr.mxu0 0.0
    %786 = vmatpush1.msra.mxu0 0.0
    %787 = vmatprep.subr.mxu0 0.0
    %788 = vmatpush1.msra.mxu0 0.0
    %789 = vmatprep.subr.mxu0 0.0
    %790 = vmatpush1.msra.mxu0 0.0
    %791 = vmatprep.subr.mxu0 0.0
    %792 = vmatpush1.msra.mxu0 0.0
    %793 = vmatprep.subr.mxu0 0.0
    %794 = vmatpush1.msra.mxu0 0.0
    %795 = vmatprep.subr.mxu0 0.0
    %796 = vmatpush1.msra.mxu0 0.0
    %797 = vmatprep.subr.mxu0 0.0
    %798 = vmatpush1.msra.mxu0 0.0
    %799 = vmatprep.subr.mxu0 0.0
    %800 = vmatpush1.msra.mxu0 0.0
    %801 = vmatprep.subr.mxu0 0.0
    %802 = vmatpush1.msra.mxu0 0.0
    %803 = vmatprep.subr.mxu0 0.0
    %804 = vmatpush1.msra.mxu0 0.0
    %805 = vmatprep.subr.mxu0 0.0
    %806 = vmatpush1.msra.mxu0 0.0
    %807 = vmatprep.subr.mxu0 0.0
    %808 = vmatpush1.msra.mxu0 0.0
    %809 = vmatprep.subr.mxu0 0.0
    %810 = vmatpush1.msra.mxu0 0.0
    %811 = vmatprep.subr.mxu0 0.0
    %812 = vmatpush1.msra.mxu0 0.0
    %813 = vmatprep.subr.mxu0 0.0
    %814 = vmatpush1.msra.mxu0 0.0
    %815 = vmatprep.subr.mxu0 0.0
    %816 = vmatpush1.msra.mxu0 0.0
    %817 = vmatprep.subr.mxu0 0.0
    %818 = vmatpush1.msra.mxu0 0.0
    %819 = vmatprep.mubr.f32.mxu0 0.0
    %820 = vmatmul.mubr.f32.gmra.mrb[0].mxu0 %v753
    %v821 = vpop.f32.mrb[0].mxu0
    %v822 = vadd.f32 0.0, %v821
    %v823 = vpop.f32.mrb[0].mxu0
    %v824 = vadd.f32 0.0, %v823
    %825 = vdwg.mxu0
    %v826 = vadd.f32 %v191, %v822
    %v827 = vadd.f32 %v193, %v824
    %v828 = vxor.u32 %v826, 2147483648
    %v829 = vxor.u32 %v827, 2147483648
    %v830 = vmul.f32 %v828, 1.442695
    %v831 = vpow.pop %v830
    %v832 = vmul.f32 %v829, 1.442695
    %v833 = vpow.pop %v832
    %v834 = vadd.f32 %v831, 1.0
    %v835 = vadd.f32 %v833, 1.0
    %v836 = vrcp.pop %v834
    %v837 = vmul.f32 1.0, %v836
    %v838 = vrcp.pop %v835
    %v839 = vmul.f32 1.0, %v838
    %v840 = vtanh.pop %v827
    %v841 = vmul.f32 %v837, %v744
    %843 = vrot.lane.b32.xlu0 %v840, 64
    %v844 = vpop.permute.xlu0 %843
    %v846 = vmul.f32 %v837, %v844
    %848 = vrot.lane.b32.xlu0 %v846, 64
    %v849 = vpop.permute.xlu0 %848
    %v851 = vadd.f32 %v841, %v849
    %v852 = vtanh.pop %v851
    %854 = vrot.lane.b32.xlu0 %v852, 64
    %v855 = vpop.permute.xlu0 %854
    %v857 = vmul.f32 %v839, %v855
    %858 = vst.msk [vmem:[#allocation2 + $0x28] sm:$0xff] %vm72, %v857
    %v860 = vsel %vm72, %v857, 0
    %862 = vmatprep.subr.mxu0 %v202
    %863 = vmatpush1.msra.mxu0 %v201
    %864 = vmatprep.subr.mxu0 %v204
    %865 = vmatpush1.msra.mxu0 %v203
    %866 = vmatprep.subr.mxu0 %v206
    %867 = vmatpush1.msra.mxu0 %v205
    %868 = vmatprep.subr.mxu0 %v208
    %869 = vmatpush1.msra.mxu0 %v207
    %870 = vmatprep.subr.mxu0 %v210
    %871 = vmatpush1.msra.mxu0 %v209
    %872 = vmatprep.subr.mxu0 %v212
    %873 = vmatpush1.msra.mxu0 %v211
    %874 = vmatprep.subr.mxu0 %v214
    %875 = vmatpush1.msra.mxu0 %v213
    %876 = vmatprep.subr.mxu0 %v216
    %877 = vmatpush1.msra.mxu0 %v215
    %878 = vmatprep.subr.mxu0 0.0
    %879 = vmatpush1.msra.mxu0 0.0
    %880 = vmatprep.subr.mxu0 0.0
    %881 = vmatpush1.msra.mxu0 0.0
    %882 = vmatprep.subr.mxu0 0.0
    %883 = vmatpush1.msra.mxu0 0.0
    %884 = vmatprep.subr.mxu0 0.0
    %885 = vmatpush1.msra.mxu0 0.0
    %886 = vmatprep.subr.mxu0 0.0
    %887 = vmatpush1.msra.mxu0 0.0
    %888 = vmatprep.subr.mxu0 0.0
    %889 = vmatpush1.msra.mxu0 0.0
    %890 = vmatprep.subr.mxu0 0.0
    %891 = vmatpush1.msra.mxu0 0.0
    %892 = vmatprep.subr.mxu0 0.0
    %893 = vmatpush1.msra.mxu0 0.0
    %894 = vmatprep.subr.mxu0 0.0
    %895 = vmatpush1.msra.mxu0 0.0
    %896 = vmatprep.subr.mxu0 0.0
    %897 = vmatpush1.msra.mxu0 0.0
    %898 = vmatprep.subr.mxu0 0.0
    %899 = vmatpush1.msra.mxu0 0.0
    %900 = vmatprep.subr.mxu0 0.0
    %901 = vmatpush1.msra.mxu0 0.0
    %902 = vmatprep.subr.mxu0 0.0
    %903 = vmatpush1.msra.mxu0 0.0
    %904 = vmatprep.subr.mxu0 0.0
    %905 = vmatpush1.msra.mxu0 0.0
    %906 = vmatprep.subr.mxu0 0.0
    %907 = vmatpush1.msra.mxu0 0.0
    %908 = vmatprep.subr.mxu0 0.0
    %909 = vmatpush1.msra.mxu0 0.0
    %910 = vmatprep.subr.mxu0 0.0
    %911 = vmatpush1.msra.mxu0 0.0
    %912 = vmatprep.subr.mxu0 0.0
    %913 = vmatpush1.msra.mxu0 0.0
    %914 = vmatprep.subr.mxu0 0.0
    %915 = vmatpush1.msra.mxu0 0.0
    %916 = vmatprep.subr.mxu0 0.0
    %917 = vmatpush1.msra.mxu0 0.0
    %918 = vmatprep.subr.mxu0 0.0
    %919 = vmatpush1.msra.mxu0 0.0
    %920 = vmatprep.subr.mxu0 0.0
    %921 = vmatpush1.msra.mxu0 0.0
    %922 = vmatprep.subr.mxu0 0.0
    %923 = vmatpush1.msra.mxu0 0.0
    %924 = vmatprep.subr.mxu0 0.0
    %925 = vmatpush1.msra.mxu0 0.0
    %926 = vmatprep.mubr.f32.mxu0 0.0
    %927 = vmatmul.mubr.f32.gmra.mrb[0].mxu0 %v860
    %v928 = vpop.f32.mrb[0].mxu0
    %v929 = vadd.f32 0.0, %v928
    %v930 = vpop.f32.mrb[0].mxu0
    %v931 = vadd.f32 0.0, %v930
    %932 = vdwg.mxu0
    %v933 = vadd.f32 %v197, %v929
    %v934 = vadd.f32 %v199, %v931
    %v935 = vxor.u32 %v933, 2147483648
    %v936 = vxor.u32 %v934, 2147483648
    %v937 = vmul.f32 %v935, 1.442695
    %v938 = vpow.pop %v937
    %v939 = vmul.f32 %v936, 1.442695
    %v940 = vpow.pop %v939
    %v941 = vadd.f32 %v938, 1.0
    %v942 = vadd.f32 %v940, 1.0
    %v943 = vrcp.pop %v941
    %v944 = vmul.f32 1.0, %v943
    %v945 = vrcp.pop %v942
    %v946 = vmul.f32 1.0, %v945
    %v947 = vtanh.pop %v934
    %v948 = vmul.f32 %v944, %v851
    %950 = vrot.lane.b32.xlu0 %v947, 64
    %v951 = vpop.permute.xlu0 %950
    %v953 = vmul.f32 %v944, %v951
    %955 = vrot.lane.b32.xlu0 %v953, 64
    %v956 = vpop.permute.xlu0 %955
    %v958 = vadd.f32 %v948, %v956
    %v959 = vtanh.pop %v958
    %961 = vrot.lane.b32.xlu0 %v959, 64
    %v962 = vpop.permute.xlu0 %961
    %v964 = vmul.f32 %v946, %v962
    %965 = vst.msk [vmem:[#allocation2 + $0x30] sm:$0xff] %vm72, %v964
    %v966 = vld [vmem:[#allocation2] sm:$0xff]
    %v967 = vld [vmem:[#allocation2 + $0x8] sm:$0xff]
    %v968 = vld [vmem:[#allocation2 + $0x10] sm:$0xff]
    %v969 = vld [vmem:[#allocation2 + $0x18] sm:$0xff]
    %v970 = vld [vmem:[#allocation2 + $0x20] sm:$0xff]
    %v971 = vld [vmem:[#allocation2 + $0x28] sm:$0xff]
    %v972 = vld [vmem:[#allocation2 + $0x30] sm:$0xff]
    %s973 = scalar_lea.vmem %s1, 128
    %v974 = vld [vmem:[%s973] sm:$0xff]
    %v975 = vld [vmem:[%s973 + $0x8] sm:$0xff]
    %v976 = vld [vmem:[%s973 + $0x10] sm:$0xff]
    %v977 = vld [vmem:[%s973 + $0x18] sm:$0xff]
    %v978 = vld [vmem:[%s973 + $0x20] sm:$0xff]
    %v979 = vld [vmem:[%s973 + $0x28] sm:$0xff]
    %v980 = vld [vmem:[%s973 + $0x30] sm:$0xff]
    %v981 = vld [vmem:[%s973 + $0x38] sm:$0xff]
    %v982 = vld [vmem:[%s973 + $0x40] sm:$0xff]
    %v983 = vld [vmem:[%s973 + $0x48] sm:$0xff]
    %v984 = vld [vmem:[%s973 + $0x50] sm:$0xff]
    %v985 = vld [vmem:[%s973 + $0x58] sm:$0xff]
    %v986 = vld [vmem:[%s973 + $0x60] sm:$0xff]
    %v987 = vld [vmem:[%s973 + $0x68] sm:$0xff]
    %v988 = vld [vmem:[%s973 + $0x70] sm:$0xff]
    %v989 = vld [vmem:[%s973 + $0x78] sm:$0xff]
    %s990 = scalar_lea.vmem %s3, 2
    %v991 = vld [vmem:[%s990] sm:$0x3]
    %v993 = vlaneseq
    %v994 = vshrl.u32 %v993, 7
    %v995 = vsub.s32 0, %v994
    %v996 = vrot.slane %v991, %v995
    %v997 = vlaneseq
    %v998 = vshrl.u32 %v997, 7
    %v999 = vsub.s32 1, %v998
    %v1000 = vrot.slane %v991, %v999
    %v1004 = vsel %vm72, %v966, 0
    %v1007 = vsel %vm72, %v967, 0
    %v1010 = vsel %vm72, %v968, 0
    %v1013 = vsel %vm72, %v969, 0
    %v1016 = vsel %vm72, %v970, 0
    %v1019 = vsel %vm72, %v971, 0
    %v1022 = vsel %vm72, %v972, 0
    %1024 = vmatprep.subr.mxu0 %v975
    %1025 = vmatpush1.msra.mxu0 %v974
    %1026 = vmatprep.subr.mxu0 %v977
    %1027 = vmatpush1.msra.mxu0 %v976
    %1028 = vmatprep.subr.mxu0 %v979
    %1029 = vmatpush1.msra.mxu0 %v978
    %1030 = vmatprep.subr.mxu0 %v981
    %1031 = vmatpush1.msra.mxu0 %v980
    %1032 = vmatprep.subr.mxu0 %v983
    %1033 = vmatpush1.msra.mxu0 %v982
    %1034 = vmatprep.subr.mxu0 %v985
    %1035 = vmatpush1.msra.mxu0 %v984
    %1036 = vmatprep.subr.mxu0 %v987
    %1037 = vmatpush1.msra.mxu0 %v986
    %1038 = vmatprep.subr.mxu0 %v989
    %1039 = vmatpush1.msra.mxu0 %v988
    %1040 = vmatprep.subr.mxu0 0.0
    %1041 = vmatpush1.msra.mxu0 0.0
    %1042 = vmatprep.subr.mxu0 0.0
    %1043 = vmatpush1.msra.mxu0 0.0
    %1044 = vmatprep.subr.mxu0 0.0
    %1045 = vmatpush1.msra.mxu0 0.0
    %1046 = vmatprep.subr.mxu0 0.0
    %1047 = vmatpush1.msra.mxu0 0.0
    %1048 = vmatprep.subr.mxu0 0.0
    %1049 = vmatpush1.msra.mxu0 0.0
    %1050 = vmatprep.subr.mxu0 0.0
    %1051 = vmatpush1.msra.mxu0 0.0
    %1052 = vmatprep.subr.mxu0 0.0
    %1053 = vmatpush1.msra.mxu0 0.0
    %1054 = vmatprep.subr.mxu0 0.0
    %1055 = vmatpush1.msra.mxu0 0.0
    %1056 = vmatprep.subr.mxu0 0.0
    %1057 = vmatpush1.msra.mxu0 0.0
    %1058 = vmatprep.subr.mxu0 0.0
    %1059 = vmatpush1.msra.mxu0 0.0
    %1060 = vmatprep.subr.mxu0 0.0
    %1061 = vmatpush1.msra.mxu0 0.0
    %1062 = vmatprep.subr.mxu0 0.0
    %1063 = vmatpush1.msra.mxu0 0.0
    %1064 = vmatprep.subr.mxu0 0.0
    %1065 = vmatpush1.msra.mxu0 0.0
    %1066 = vmatprep.subr.mxu0 0.0
    %1067 = vmatpush1.msra.mxu0 0.0
    %1068 = vmatprep.subr.mxu0 0.0
    %1069 = vmatpush1.msra.mxu0 0.0
    %1070 = vmatprep.subr.mxu0 0.0
    %1071 = vmatpush1.msra.mxu0 0.0
    %1072 = vmatprep.subr.mxu0 0.0
    %1073 = vmatpush1.msra.mxu0 0.0
    %1074 = vmatprep.subr.mxu0 0.0
    %1075 = vmatpush1.msra.mxu0 0.0
    %1076 = vmatprep.subr.mxu0 0.0
    %1077 = vmatpush1.msra.mxu0 0.0
    %1078 = vmatprep.subr.mxu0 0.0
    %1079 = vmatpush1.msra.mxu0 0.0
    %1080 = vmatprep.subr.mxu0 0.0
    %1081 = vmatpush1.msra.mxu0 0.0
    %1082 = vmatprep.subr.mxu0 0.0
    %1083 = vmatpush1.msra.mxu0 0.0
    %1084 = vmatprep.subr.mxu0 0.0
    %1085 = vmatpush1.msra.mxu0 0.0
    %1086 = vmatprep.subr.mxu0 0.0
    %1087 = vmatpush1.msra.mxu0 0.0
    %1088 = vmatprep.mubr.f32.mxu0 0.0
    %1089 = vmatmul.mubr.f32.gmra.mrb[0].mxu0 %v1004
    %v1090 = vpop.f32.mrb[0].mxu0
    %v1091 = vadd.f32 %v996, %v1090
    %v1092 = vpop.f32.mrb[0].mxu0
    %v1093 = vadd.f32 %v1000, %v1092
    %1094 = vmatprep.mubr.f32.mxu0 0.0
    %1095 = vmatmul.mubr.f32.gmra.mrb[0].mxu0 %v1007
    %v1096 = vpop.f32.mrb[0].mxu0
    %v1097 = vadd.f32 %v996, %v1096
    %v1098 = vpop.f32.mrb[0].mxu0
    %v1099 = vadd.f32 %v1000, %v1098
    %1100 = vmatprep.mubr.f32.mxu0 0.0
    %1101 = vmatmul.mubr.f32.gmra.mrb[0].mxu0 %v1010
    %v1102 = vpop.f32.mrb[0].mxu0
    %v1103 = vadd.f32 %v996, %v1102
    %v1104 = vpop.f32.mrb[0].mxu0
    %v1105 = vadd.f32 %v1000, %v1104
    %1106 = vmatprep.mubr.f32.mxu0 0.0
    %1107 = vmatmul.mubr.f32.gmra.mrb[0].mxu0 %v1013
    %v1108 = vpop.f32.mrb[0].mxu0
    %v1109 = vadd.f32 %v996, %v1108
    %v1110 = vpop.f32.mrb[0].mxu0
    %v1111 = vadd.f32 %v1000, %v1110
    %1112 = vmatprep.mubr.f32.mxu0 0.0
    %1113 = vmatmul.mubr.f32.gmra.mrb[0].mxu0 %v1016
    %v1114 = vpop.f32.mrb[0].mxu0
    %v1115 = vadd.f32 %v996, %v1114
    %v1116 = vpop.f32.mrb[0].mxu0
    %v1117 = vadd.f32 %v1000, %v1116
    %1118 = vmatprep.mubr.f32.mxu0 0.0
    %1119 = vmatmul.mubr.f32.gmra.mrb[0].mxu0 %v1019
    %v1120 = vpop.f32.mrb[0].mxu0
    %v1121 = vadd.f32 %v996, %v1120
    %v1122 = vpop.f32.mrb[0].mxu0
    %v1123 = vadd.f32 %v1000, %v1122
    %1124 = vmatprep.mubr.f32.mxu0 0.0
    %1125 = vmatmul.mubr.f32.gmra.mrb[0].mxu0 %v1022
    %v1126 = vpop.f32.mrb[0].mxu0
    %v1127 = vadd.f32 %v996, %v1126
    %v1128 = vpop.f32.mrb[0].mxu0
    %v1129 = vadd.f32 %v1000, %v1128
    %1130 = vdwg.mxu0
    %s1131 = scalar_lea.vmem %s2, 128
    %v1132 = vld [vmem:[%s1131] sm:$0xff]
    %v1133 = vld [vmem:[%s1131 + $0x8] sm:$0xff]
    %v1134 = vld [vmem:[%s1131 + $0x10] sm:$0xff]
    %v1135 = vld [vmem:[%s1131 + $0x18] sm:$0xff]
    %v1136 = vld [vmem:[%s1131 + $0x20] sm:$0xff]
    %v1137 = vld [vmem:[%s1131 + $0x28] sm:$0xff]
    %v1138 = vld [vmem:[%s1131 + $0x30] sm:$0xff]
    %v1139 = vld [vmem:[%s1131 + $0x38] sm:$0xff]
    %v1140 = vld [vmem:[%s1131 + $0x40] sm:$0xff]
    %v1141 = vld [vmem:[%s1131 + $0x48] sm:$0xff]
    %v1142 = vld [vmem:[%s1131 + $0x50] sm:$0xff]
    %v1143 = vld [vmem:[%s1131 + $0x58] sm:$0xff]
    %v1144 = vld [vmem:[%s1131 + $0x60] sm:$0xff]
    %v1145 = vld [vmem:[%s1131 + $0x68] sm:$0xff]
    %v1146 = vld [vmem:[%s1131 + $0x70] sm:$0xff]
    %v1147 = vld [vmem:[%s1131 + $0x78] sm:$0xff]
    %1148 = vmatprep.subr.mxu0 %v1133
    %1149 = vmatpush1.msra.mxu0 %v1132
    %1150 = vmatprep.subr.mxu0 %v1135
    %1151 = vmatpush1.msra.mxu0 %v1134
    %1152 = vmatprep.subr.mxu0 %v1137
    %1153 = vmatpush1.msra.mxu0 %v1136
    %1154 = vmatprep.subr.mxu0 %v1139
    %1155 = vmatpush1.msra.mxu0 %v1138
    %1156 = vmatprep.subr.mxu0 %v1141
    %1157 = vmatpush1.msra.mxu0 %v1140
    %1158 = vmatprep.subr.mxu0 %v1143
    %1159 = vmatpush1.msra.mxu0 %v1142
    %1160 = vmatprep.subr.mxu0 %v1145
    %1161 = vmatpush1.msra.mxu0 %v1144
    %1162 = vmatprep.subr.mxu0 %v1147
    %1163 = vmatpush1.msra.mxu0 %v1146
    %1164 = vmatprep.subr.mxu0 0.0
    %1165 = vmatpush1.msra.mxu0 0.0
    %1166 = vmatprep.subr.mxu0 0.0
    %1167 = vmatpush1.msra.mxu0 0.0
    %1168 = vmatprep.subr.mxu0 0.0
    %1169 = vmatpush1.msra.mxu0 0.0
    %1170 = vmatprep.subr.mxu0 0.0
    %1171 = vmatpush1.msra.mxu0 0.0
    %1172 = vmatprep.subr.mxu0 0.0
    %1173 = vmatpush1.msra.mxu0 0.0
    %1174 = vmatprep.subr.mxu0 0.0
    %1175 = vmatpush1.msra.mxu0 0.0
    %1176 = vmatprep.subr.mxu0 0.0
    %1177 = vmatpush1.msra.mxu0 0.0
    %1178 = vmatprep.subr.mxu0 0.0
    %1179 = vmatpush1.msra.mxu0 0.0
    %1180 = vmatprep.subr.mxu0 0.0
    %1181 = vmatpush1.msra.mxu0 0.0
    %1182 = vmatprep.subr.mxu0 0.0
    %1183 = vmatpush1.msra.mxu0 0.0
    %1184 = vmatprep.subr.mxu0 0.0
    %1185 = vmatpush1.msra.mxu0 0.0
    %1186 = vmatprep.subr.mxu0 0.0
    %1187 = vmatpush1.msra.mxu0 0.0
    %1188 = vmatprep.subr.mxu0 0.0
    %1189 = vmatpush1.msra.mxu0 0.0
    %1190 = vmatprep.subr.mxu0 0.0
    %1191 = vmatpush1.msra.mxu0 0.0
    %1192 = vmatprep.subr.mxu0 0.0
    %1193 = vmatpush1.msra.mxu0 0.0
    %1194 = vmatprep.subr.mxu0 0.0
    %1195 = vmatpush1.msra.mxu0 0.0
    %1196 = vmatprep.subr.mxu0 0.0
    %1197 = vmatpush1.msra.mxu0 0.0
    %1198 = vmatprep.subr.mxu0 0.0
    %1199 = vmatpush1.msra.mxu0 0.0
    %1200 = vmatprep.subr.mxu0 0.0
    %1201 = vmatpush1.msra.mxu0 0.0
    %1202 = vmatprep.subr.mxu0 0.0
    %1203 = vmatpush1.msra.mxu0 0.0
    %1204 = vmatprep.subr.mxu0 0.0
    %1205 = vmatpush1.msra.mxu0 0.0
    %1206 = vmatprep.subr.mxu0 0.0
    %1207 = vmatpush1.msra.mxu0 0.0
    %1208 = vmatprep.subr.mxu0 0.0
    %1209 = vmatpush1.msra.mxu0 0.0
    %1210 = vmatprep.subr.mxu0 0.0
    %1211 = vmatpush1.msra.mxu0 0.0
    %1212 = vmatprep.mubr.f32.mxu0 0.0
    %1213 = vmatmul.mubr.f32.gmra.mrb[0].mxu0 %v218
    %v1214 = vpop.f32.mrb[0].mxu0
    %v1215 = vadd.f32 0.0, %v1214
    %v1216 = vpop.f32.mrb[0].mxu0
    %v1217 = vadd.f32 0.0, %v1216
    %1218 = vdwg.mxu0
    %v1219 = vadd.f32 %v1091, %v1215
    %v1220 = vadd.f32 %v1093, %v1217
    %v1221 = vxor.u32 %v1219, 2147483648
    %v1222 = vxor.u32 %v1220, 2147483648
    %v1223 = vmul.f32 %v1221, 1.442695
    %v1224 = vpow.pop %v1223
    %v1225 = vmul.f32 %v1222, 1.442695
    %v1226 = vpow.pop %v1225
    %v1227 = vadd.f32 %v1224, 1.0
    %v1228 = vadd.f32 %v1226, 1.0
    %v1229 = vrcp.pop %v1227
    %v1230 = vmul.f32 1.0, %v1229
    %v1231 = vrcp.pop %v1228
    %v1232 = vmul.f32 1.0, %v1231
    %v1233 = vtanh.pop %v1220
    %v1234 = vmul.f32 %v1230, 0.0
    %1236 = vrot.lane.b32.xlu0 %v1233, 64
    %v1237 = vpop.permute.xlu0 %1236
    %v1239 = vmul.f32 %v1230, %v1237
    %1241 = vrot.lane.b32.xlu0 %v1239, 64
    %v1242 = vpop.permute.xlu0 %1241
    %v1244 = vadd.f32 %v1234, %v1242
    %v1245 = vtanh.pop %v1244
    %1247 = vrot.lane.b32.xlu0 %v1245, 64
    %v1248 = vpop.permute.xlu0 %1247
    %v1250 = vmul.f32 %v1232, %v1248
    %1251 = vst.msk [vmem:[#allocation2] sm:$0xff] %vm72, %v1250
    %v1253 = vsel %vm72, %v1250, 0
    %1255 = vmatprep.subr.mxu0 %v1133
    %1256 = vmatpush1.msra.mxu0 %v1132
    %1257 = vmatprep.subr.mxu0 %v1135
    %1258 = vmatpush1.msra.mxu0 %v1134
    %1259 = vmatprep.subr.mxu0 %v1137
    %1260 = vmatpush1.msra.mxu0 %v1136
    %1261 = vmatprep.subr.mxu0 %v1139
    %1262 = vmatpush1.msra.mxu0 %v1138
    %1263 = vmatprep.subr.mxu0 %v1141
    %1264 = vmatpush1.msra.mxu0 %v1140
    %1265 = vmatprep.subr.mxu0 %v1143
    %1266 = vmatpush1.msra.mxu0 %v1142
    %1267 = vmatprep.subr.mxu0 %v1145
    %1268 = vmatpush1.msra.mxu0 %v1144
    %1269 = vmatprep.subr.mxu0 %v1147
    %1270 = vmatpush1.msra.mxu0 %v1146
    %1271 = vmatprep.subr.mxu0 0.0
    %1272 = vmatpush1.msra.mxu0 0.0
    %1273 = vmatprep.subr.mxu0 0.0
    %1274 = vmatpush1.msra.mxu0 0.0
    %1275 = vmatprep.subr.mxu0 0.0
    %1276 = vmatpush1.msra.mxu0 0.0
    %1277 = vmatprep.subr.mxu0 0.0
    %1278 = vmatpush1.msra.mxu0 0.0
    %1279 = vmatprep.subr.mxu0 0.0
    %1280 = vmatpush1.msra.mxu0 0.0
    %1281 = vmatprep.subr.mxu0 0.0
    %1282 = vmatpush1.msra.mxu0 0.0
    %1283 = vmatprep.subr.mxu0 0.0
    %1284 = vmatpush1.msra.mxu0 0.0
    %1285 = vmatprep.subr.mxu0 0.0
    %1286 = vmatpush1.msra.mxu0 0.0
    %1287 = vmatprep.subr.mxu0 0.0
    %1288 = vmatpush1.msra.mxu0 0.0
    %1289 = vmatprep.subr.mxu0 0.0
    %1290 = vmatpush1.msra.mxu0 0.0
    %1291 = vmatprep.subr.mxu0 0.0
    %1292 = vmatpush1.msra.mxu0 0.0
    %1293 = vmatprep.subr.mxu0 0.0
    %1294 = vmatpush1.msra.mxu0 0.0
    %1295 = vmatprep.subr.mxu0 0.0
    %1296 = vmatpush1.msra.mxu0 0.0
    %1297 = vmatprep.subr.mxu0 0.0
    %1298 = vmatpush1.msra.mxu0 0.0
    %1299 = vmatprep.subr.mxu0 0.0
    %1300 = vmatpush1.msra.mxu0 0.0
    %1301 = vmatprep.subr.mxu0 0.0
    %1302 = vmatpush1.msra.mxu0 0.0
    %1303 = vmatprep.subr.mxu0 0.0
    %1304 = vmatpush1.msra.mxu0 0.0
    %1305 = vmatprep.subr.mxu0 0.0
    %1306 = vmatpush1.msra.mxu0 0.0
    %1307 = vmatprep.subr.mxu0 0.0
    %1308 = vmatpush1.msra.mxu0 0.0
    %1309 = vmatprep.subr.mxu0 0.0
    %1310 = vmatpush1.msra.mxu0 0.0
    %1311 = vmatprep.subr.mxu0 0.0
    %1312 = vmatpush1.msra.mxu0 0.0
    %1313 = vmatprep.subr.mxu0 0.0
    %1314 = vmatpush1.msra.mxu0 0.0
    %1315 = vmatprep.subr.mxu0 0.0
    %1316 = vmatpush1.msra.mxu0 0.0
    %1317 = vmatprep.subr.mxu0 0.0
    %1318 = vmatpush1.msra.mxu0 0.0
    %1319 = vmatprep.mubr.f32.mxu0 0.0
    %1320 = vmatmul.mubr.f32.gmra.mrb[0].mxu0 %v1253
    %v1321 = vpop.f32.mrb[0].mxu0
    %v1322 = vadd.f32 0.0, %v1321
    %v1323 = vpop.f32.mrb[0].mxu0
    %v1324 = vadd.f32 0.0, %v1323
    %1325 = vdwg.mxu0
    %v1326 = vadd.f32 %v1097, %v1322
    %v1327 = vadd.f32 %v1099, %v1324
    %v1328 = vxor.u32 %v1326, 2147483648
    %v1329 = vxor.u32 %v1327, 2147483648
    %v1330 = vmul.f32 %v1328, 1.442695
    %v1331 = vpow.pop %v1330
    %v1332 = vmul.f32 %v1329, 1.442695
    %v1333 = vpow.pop %v1332
    %v1334 = vadd.f32 %v1331, 1.0
    %v1335 = vadd.f32 %v1333, 1.0
    %v1336 = vrcp.pop %v1334
    %v1337 = vmul.f32 1.0, %v1336
    %v1338 = vrcp.pop %v1335
    %v1339 = vmul.f32 1.0, %v1338
    %v1340 = vtanh.pop %v1327
    %v1341 = vmul.f32 %v1337, %v1244
    %1343 = vrot.lane.b32.xlu0 %v1340, 64
    %v1344 = vpop.permute.xlu0 %1343
    %v1346 = vmul.f32 %v1337, %v1344
    %1348 = vrot.lane.b32.xlu0 %v1346, 64
    %v1349 = vpop.permute.xlu0 %1348
    %v1351 = vadd.f32 %v1341, %v1349
    %v1352 = vtanh.pop %v1351
    %1354 = vrot.lane.b32.xlu0 %v1352, 64
    %v1355 = vpop.permute.xlu0 %1354
    %v1357 = vmul.f32 %v1339, %v1355
    %1358 = vst.msk [vmem:[#allocation2 + $0x8] sm:$0xff] %vm72, %v1357
    %v1360 = vsel %vm72, %v1357, 0
    %1362 = vmatprep.subr.mxu0 %v1133
    %1363 = vmatpush1.msra.mxu0 %v1132
    %1364 = vmatprep.subr.mxu0 %v1135
    %1365 = vmatpush1.msra.mxu0 %v1134
    %1366 = vmatprep.subr.mxu0 %v1137
    %1367 = vmatpush1.msra.mxu0 %v1136
    %1368 = vmatprep.subr.mxu0 %v1139
    %1369 = vmatpush1.msra.mxu0 %v1138
    %1370 = vmatprep.subr.mxu0 %v1141
    %1371 = vmatpush1.msra.mxu0 %v1140
    %1372 = vmatprep.subr.mxu0 %v1143
    %1373 = vmatpush1.msra.mxu0 %v1142
    %1374 = vmatprep.subr.mxu0 %v1145
    %1375 = vmatpush1.msra.mxu0 %v1144
    %1376 = vmatprep.subr.mxu0 %v1147
    %1377 = vmatpush1.msra.mxu0 %v1146
    %1378 = vmatprep.subr.mxu0 0.0
    %1379 = vmatpush1.msra.mxu0 0.0
    %1380 = vmatprep.subr.mxu0 0.0
    %1381 = vmatpush1.msra.mxu0 0.0
    %1382 = vmatprep.subr.mxu0 0.0
    %1383 = vmatpush1.msra.mxu0 0.0
    %1384 = vmatprep.subr.mxu0 0.0
    %1385 = vmatpush1.msra.mxu0 0.0
    %1386 = vmatprep.subr.mxu0 0.0
    %1387 = vmatpush1.msra.mxu0 0.0
    %1388 = vmatprep.subr.mxu0 0.0
    %1389 = vmatpush1.msra.mxu0 0.0
    %1390 = vmatprep.subr.mxu0 0.0
    %1391 = vmatpush1.msra.mxu0 0.0
    %1392 = vmatprep.subr.mxu0 0.0
    %1393 = vmatpush1.msra.mxu0 0.0
    %1394 = vmatprep.subr.mxu0 0.0
    %1395 = vmatpush1.msra.mxu0 0.0
    %1396 = vmatprep.subr.mxu0 0.0
    %1397 = vmatpush1.msra.mxu0 0.0
    %1398 = vmatprep.subr.mxu0 0.0
    %1399 = vmatpush1.msra.mxu0 0.0
    %1400 = vmatprep.subr.mxu0 0.0
    %1401 = vmatpush1.msra.mxu0 0.0
    %1402 = vmatprep.subr.mxu0 0.0
    %1403 = vmatpush1.msra.mxu0 0.0
    %1404 = vmatprep.subr.mxu0 0.0
    %1405 = vmatpush1.msra.mxu0 0.0
    %1406 = vmatprep.subr.mxu0 0.0
    %1407 = vmatpush1.msra.mxu0 0.0
    %1408 = vmatprep.subr.mxu0 0.0
    %1409 = vmatpush1.msra.mxu0 0.0
    %1410 = vmatprep.subr.mxu0 0.0
    %1411 = vmatpush1.msra.mxu0 0.0
    %1412 = vmatprep.subr.mxu0 0.0
    %1413 = vmatpush1.msra.mxu0 0.0
    %1414 = vmatprep.subr.mxu0 0.0
    %1415 = vmatpush1.msra.mxu0 0.0
    %1416 = vmatprep.subr.mxu0 0.0
    %1417 = vmatpush1.msra.mxu0 0.0
    %1418 = vmatprep.subr.mxu0 0.0
    %1419 = vmatpush1.msra.mxu0 0.0
    %1420 = vmatprep.subr.mxu0 0.0
    %1421 = vmatpush1.msra.mxu0 0.0
    %1422 = vmatprep.subr.mxu0 0.0
    %1423 = vmatpush1.msra.mxu0 0.0
    %1424 = vmatprep.subr.mxu0 0.0
    %1425 = vmatpush1.msra.mxu0 0.0
    %1426 = vmatprep.mubr.f32.mxu0 0.0
    %1427 = vmatmul.mubr.f32.gmra.mrb[0].mxu0 %v1360
    %v1428 = vpop.f32.mrb[0].mxu0
    %v1429 = vadd.f32 0.0, %v1428
    %v1430 = vpop.f32.mrb[0].mxu0
    %v1431 = vadd.f32 0.0, %v1430
    %1432 = vdwg.mxu0
    %v1433 = vadd.f32 %v1103, %v1429
    %v1434 = vadd.f32 %v1105, %v1431
    %v1435 = vxor.u32 %v1433, 2147483648
    %v1436 = vxor.u32 %v1434, 2147483648
    %v1437 = vmul.f32 %v1435, 1.442695
    %v1438 = vpow.pop %v1437
    %v1439 = vmul.f32 %v1436, 1.442695
    %v1440 = vpow.pop %v1439
    %v1441 = vadd.f32 %v1438, 1.0
    %v1442 = vadd.f32 %v1440, 1.0
    %v1443 = vrcp.pop %v1441
    %v1444 = vmul.f32 1.0, %v1443
    %v1445 = vrcp.pop %v1442
    %v1446 = vmul.f32 1.0, %v1445
    %v1447 = vtanh.pop %v1434
    %v1448 = vmul.f32 %v1444, %v1351
    %1450 = vrot.lane.b32.xlu0 %v1447, 64
    %v1451 = vpop.permute.xlu0 %1450
    %v1453 = vmul.f32 %v1444, %v1451
    %1455 = vrot.lane.b32.xlu0 %v1453, 64
    %v1456 = vpop.permute.xlu0 %1455
    %v1458 = vadd.f32 %v1448, %v1456
    %v1459 = vtanh.pop %v1458
    %1461 = vrot.lane.b32.xlu0 %v1459, 64
    %v1462 = vpop.permute.xlu0 %1461
    %v1464 = vmul.f32 %v1446, %v1462
    %1465 = vst.msk [vmem:[#allocation2 + $0x10] sm:$0xff] %vm72, %v1464
    %v1467 = vsel %vm72, %v1464, 0
    %1469 = vmatprep.subr.mxu0 %v1133
    %1470 = vmatpush1.msra.mxu0 %v1132
    %1471 = vmatprep.subr.mxu0 %v1135
    %1472 = vmatpush1.msra.mxu0 %v1134
    %1473 = vmatprep.subr.mxu0 %v1137
    %1474 = vmatpush1.msra.mxu0 %v1136
    %1475 = vmatprep.subr.mxu0 %v1139
    %1476 = vmatpush1.msra.mxu0 %v1138
    %1477 = vmatprep.subr.mxu0 %v1141
    %1478 = vmatpush1.msra.mxu0 %v1140
    %1479 = vmatprep.subr.mxu0 %v1143
    %1480 = vmatpush1.msra.mxu0 %v1142
    %1481 = vmatprep.subr.mxu0 %v1145
    %1482 = vmatpush1.msra.mxu0 %v1144
    %1483 = vmatprep.subr.mxu0 %v1147
    %1484 = vmatpush1.msra.mxu0 %v1146
    %1485 = vmatprep.subr.mxu0 0.0
    %1486 = vmatpush1.msra.mxu0 0.0
    %1487 = vmatprep.subr.mxu0 0.0
    %1488 = vmatpush1.msra.mxu0 0.0
    %1489 = vmatprep.subr.mxu0 0.0
    %1490 = vmatpush1.msra.mxu0 0.0
    %1491 = vmatprep.subr.mxu0 0.0
    %1492 = vmatpush1.msra.mxu0 0.0
    %1493 = vmatprep.subr.mxu0 0.0
    %1494 = vmatpush1.msra.mxu0 0.0
    %1495 = vmatprep.subr.mxu0 0.0
    %1496 = vmatpush1.msra.mxu0 0.0
    %1497 = vmatprep.subr.mxu0 0.0
    %1498 = vmatpush1.msra.mxu0 0.0
    %1499 = vmatprep.subr.mxu0 0.0
    %1500 = vmatpush1.msra.mxu0 0.0
    %1501 = vmatprep.subr.mxu0 0.0
    %1502 = vmatpush1.msra.mxu0 0.0
    %1503 = vmatprep.subr.mxu0 0.0
    %1504 = vmatpush1.msra.mxu0 0.0
    %1505 = vmatprep.subr.mxu0 0.0
    %1506 = vmatpush1.msra.mxu0 0.0
    %1507 = vmatprep.subr.mxu0 0.0
    %1508 = vmatpush1.msra.mxu0 0.0
    %1509 = vmatprep.subr.mxu0 0.0
    %1510 = vmatpush1.msra.mxu0 0.0
    %1511 = vmatprep.subr.mxu0 0.0
    %1512 = vmatpush1.msra.mxu0 0.0
    %1513 = vmatprep.subr.mxu0 0.0
    %1514 = vmatpush1.msra.mxu0 0.0
    %1515 = vmatprep.subr.mxu0 0.0
    %1516 = vmatpush1.msra.mxu0 0.0
    %1517 = vmatprep.subr.mxu0 0.0
    %1518 = vmatpush1.msra.mxu0 0.0
    %1519 = vmatprep.subr.mxu0 0.0
    %1520 = vmatpush1.msra.mxu0 0.0
    %1521 = vmatprep.subr.mxu0 0.0
    %1522 = vmatpush1.msra.mxu0 0.0
    %1523 = vmatprep.subr.mxu0 0.0
    %1524 = vmatpush1.msra.mxu0 0.0
    %1525 = vmatprep.subr.mxu0 0.0
    %1526 = vmatpush1.msra.mxu0 0.0
    %1527 = vmatprep.subr.mxu0 0.0
    %1528 = vmatpush1.msra.mxu0 0.0
    %1529 = vmatprep.subr.mxu0 0.0
    %1530 = vmatpush1.msra.mxu0 0.0
    %1531 = vmatprep.subr.mxu0 0.0
    %1532 = vmatpush1.msra.mxu0 0.0
    %1533 = vmatprep.mubr.f32.mxu0 0.0
    %1534 = vmatmul.mubr.f32.gmra.mrb[0].mxu0 %v1467
    %v1535 = vpop.f32.mrb[0].mxu0
    %v1536 = vadd.f32 0.0, %v1535
    %v1537 = vpop.f32.mrb[0].mxu0
    %v1538 = vadd.f32 0.0, %v1537
    %1539 = vdwg.mxu0
    %v1540 = vadd.f32 %v1109, %v1536
    %v1541 = vadd.f32 %v1111, %v1538
    %v1542 = vxor.u32 %v1540, 2147483648
    %v1543 = vxor.u32 %v1541, 2147483648
    %v1544 = vmul.f32 %v1542, 1.442695
    %v1545 = vpow.pop %v1544
    %v1546 = vmul.f32 %v1543, 1.442695
    %v1547 = vpow.pop %v1546
    %v1548 = vadd.f32 %v1545, 1.0
    %v1549 = vadd.f32 %v1547, 1.0
    %v1550 = vrcp.pop %v1548
    %v1551 = vmul.f32 1.0, %v1550
    %v1552 = vrcp.pop %v1549
    %v1553 = vmul.f32 1.0, %v1552
    %v1554 = vtanh.pop %v1541
    %v1555 = vmul.f32 %v1551, %v1458
    %1557 = vrot.lane.b32.xlu0 %v1554, 64
    %v1558 = vpop.permute.xlu0 %1557
    %v1560 = vmul.f32 %v1551, %v1558
    %1562 = vrot.lane.b32.xlu0 %v1560, 64
    %v1563 = vpop.permute.xlu0 %1562
    %v1565 = vadd.f32 %v1555, %v1563
    %v1566 = vtanh.pop %v1565
    %1568 = vrot.lane.b32.xlu0 %v1566, 64
    %v1569 = vpop.permute.xlu0 %1568
    %v1571 = vmul.f32 %v1553, %v1569
    %1572 = vst.msk [vmem:[#allocation2 + $0x18] sm:$0xff] %vm72, %v1571
    %v1574 = vsel %vm72, %v1571, 0
    %1576 = vmatprep.subr.mxu0 %v1133
    %1577 = vmatpush1.msra.mxu0 %v1132
    %1578 = vmatprep.subr.mxu0 %v1135
    %1579 = vmatpush1.msra.mxu0 %v1134
    %1580 = vmatprep.subr.mxu0 %v1137
    %1581 = vmatpush1.msra.mxu0 %v1136
    %1582 = vmatprep.subr.mxu0 %v1139
    %1583 = vmatpush1.msra.mxu0 %v1138
    %1584 = vmatprep.subr.mxu0 %v1141
    %1585 = vmatpush1.msra.mxu0 %v1140
    %1586 = vmatprep.subr.mxu0 %v1143
    %1587 = vmatpush1.msra.mxu0 %v1142
    %1588 = vmatprep.subr.mxu0 %v1145
    %1589 = vmatpush1.msra.mxu0 %v1144
    %1590 = vmatprep.subr.mxu0 %v1147
    %1591 = vmatpush1.msra.mxu0 %v1146
    %1592 = vmatprep.subr.mxu0 0.0
    %1593 = vmatpush1.msra.mxu0 0.0
    %1594 = vmatprep.subr.mxu0 0.0
    %1595 = vmatpush1.msra.mxu0 0.0
    %1596 = vmatprep.subr.mxu0 0.0
    %1597 = vmatpush1.msra.mxu0 0.0
    %1598 = vmatprep.subr.mxu0 0.0
    %1599 = vmatpush1.msra.mxu0 0.0
    %1600 = vmatprep.subr.mxu0 0.0
    %1601 = vmatpush1.msra.mxu0 0.0
    %1602 = vmatprep.subr.mxu0 0.0
    %1603 = vmatpush1.msra.mxu0 0.0
    %1604 = vmatprep.subr.mxu0 0.0
    %1605 = vmatpush1.msra.mxu0 0.0
    %1606 = vmatprep.subr.mxu0 0.0
    %1607 = vmatpush1.msra.mxu0 0.0
    %1608 = vmatprep.subr.mxu0 0.0
    %1609 = vmatpush1.msra.mxu0 0.0
    %1610 = vmatprep.subr.mxu0 0.0
    %1611 = vmatpush1.msra.mxu0 0.0
    %1612 = vmatprep.subr.mxu0 0.0
    %1613 = vmatpush1.msra.mxu0 0.0
    %1614 = vmatprep.subr.mxu0 0.0
    %1615 = vmatpush1.msra.mxu0 0.0
    %1616 = vmatprep.subr.mxu0 0.0
    %1617 = vmatpush1.msra.mxu0 0.0
    %1618 = vmatprep.subr.mxu0 0.0
    %1619 = vmatpush1.msra.mxu0 0.0
    %1620 = vmatprep.subr.mxu0 0.0
    %1621 = vmatpush1.msra.mxu0 0.0
    %1622 = vmatprep.subr.mxu0 0.0
    %1623 = vmatpush1.msra.mxu0 0.0
    %1624 = vmatprep.subr.mxu0 0.0
    %1625 = vmatpush1.msra.mxu0 0.0
    %1626 = vmatprep.subr.mxu0 0.0
    %1627 = vmatpush1.msra.mxu0 0.0
    %1628 = vmatprep.subr.mxu0 0.0
    %1629 = vmatpush1.msra.mxu0 0.0
    %1630 = vmatprep.subr.mxu0 0.0
    %1631 = vmatpush1.msra.mxu0 0.0
    %1632 = vmatprep.subr.mxu0 0.0
    %1633 = vmatpush1.msra.mxu0 0.0
    %1634 = vmatprep.subr.mxu0 0.0
    %1635 = vmatpush1.msra.mxu0 0.0
    %1636 = vmatprep.subr.mxu0 0.0
    %1637 = vmatpush1.msra.mxu0 0.0
    %1638 = vmatprep.subr.mxu0 0.0
    %1639 = vmatpush1.msra.mxu0 0.0
    %1640 = vmatprep.mubr.f32.mxu0 0.0
    %1641 = vmatmul.mubr.f32.gmra.mrb[0].mxu0 %v1574
    %v1642 = vpop.f32.mrb[0].mxu0
    %v1643 = vadd.f32 0.0, %v1642
    %v1644 = vpop.f32.mrb[0].mxu0
    %v1645 = vadd.f32 0.0, %v1644
    %1646 = vdwg.mxu0
    %v1647 = vadd.f32 %v1115, %v1643
    %v1648 = vadd.f32 %v1117, %v1645
    %v1649 = vxor.u32 %v1647, 2147483648
    %v1650 = vxor.u32 %v1648, 2147483648
    %v1651 = vmul.f32 %v1649, 1.442695
    %v1652 = vpow.pop %v1651
    %v1653 = vmul.f32 %v1650, 1.442695
    %v1654 = vpow.pop %v1653
    %v1655 = vadd.f32 %v1652, 1.0
    %v1656 = vadd.f32 %v1654, 1.0
    %v1657 = vrcp.pop %v1655
    %v1658 = vmul.f32 1.0, %v1657
    %v1659 = vrcp.pop %v1656
    %v1660 = vmul.f32 1.0, %v1659
    %v1661 = vtanh.pop %v1648
    %v1662 = vmul.f32 %v1658, %v1565
    %1664 = vrot.lane.b32.xlu0 %v1661, 64
    %v1665 = vpop.permute.xlu0 %1664
    %v1667 = vmul.f32 %v1658, %v1665
    %1669 = vrot.lane.b32.xlu0 %v1667, 64
    %v1670 = vpop.permute.xlu0 %1669
    %v1672 = vadd.f32 %v1662, %v1670
    %v1673 = vtanh.pop %v1672
    %1675 = vrot.lane.b32.xlu0 %v1673, 64
    %v1676 = vpop.permute.xlu0 %1675
    %v1678 = vmul.f32 %v1660, %v1676
    %1679 = vst.msk [vmem:[#allocation2 + $0x20] sm:$0xff] %vm72, %v1678
    %v1681 = vsel %vm72, %v1678, 0
    %1683 = vmatprep.subr.mxu0 %v1133
    %1684 = vmatpush1.msra.mxu0 %v1132
    %1685 = vmatprep.subr.mxu0 %v1135
    %1686 = vmatpush1.msra.mxu0 %v1134
    %1687 = vmatprep.subr.mxu0 %v1137
    %1688 = vmatpush1.msra.mxu0 %v1136
    %1689 = vmatprep.subr.mxu0 %v1139
    %1690 = vmatpush1.msra.mxu0 %v1138
    %1691 = vmatprep.subr.mxu0 %v1141
    %1692 = vmatpush1.msra.mxu0 %v1140
    %1693 = vmatprep.subr.mxu0 %v1143
    %1694 = vmatpush1.msra.mxu0 %v1142
    %1695 = vmatprep.subr.mxu0 %v1145
    %1696 = vmatpush1.msra.mxu0 %v1144
    %1697 = vmatprep.subr.mxu0 %v1147
    %1698 = vmatpush1.msra.mxu0 %v1146
    %1699 = vmatprep.subr.mxu0 0.0
    %1700 = vmatpush1.msra.mxu0 0.0
    %1701 = vmatprep.subr.mxu0 0.0
    %1702 = vmatpush1.msra.mxu0 0.0
    %1703 = vmatprep.subr.mxu0 0.0
    %1704 = vmatpush1.msra.mxu0 0.0
    %1705 = vmatprep.subr.mxu0 0.0
    %1706 = vmatpush1.msra.mxu0 0.0
    %1707 = vmatprep.subr.mxu0 0.0
    %1708 = vmatpush1.msra.mxu0 0.0
    %1709 = vmatprep.subr.mxu0 0.0
    %1710 = vmatpush1.msra.mxu0 0.0
    %1711 = vmatprep.subr.mxu0 0.0
    %1712 = vmatpush1.msra.mxu0 0.0
    %1713 = vmatprep.subr.mxu0 0.0
    %1714 = vmatpush1.msra.mxu0 0.0
    %1715 = vmatprep.subr.mxu0 0.0
    %1716 = vmatpush1.msra.mxu0 0.0
    %1717 = vmatprep.subr.mxu0 0.0
    %1718 = vmatpush1.msra.mxu0 0.0
    %1719 = vmatprep.subr.mxu0 0.0
    %1720 = vmatpush1.msra.mxu0 0.0
    %1721 = vmatprep.subr.mxu0 0.0
    %1722 = vmatpush1.msra.mxu0 0.0
    %1723 = vmatprep.subr.mxu0 0.0
    %1724 = vmatpush1.msra.mxu0 0.0
    %1725 = vmatprep.subr.mxu0 0.0
    %1726 = vmatpush1.msra.mxu0 0.0
    %1727 = vmatprep.subr.mxu0 0.0
    %1728 = vmatpush1.msra.mxu0 0.0
    %1729 = vmatprep.subr.mxu0 0.0
    %1730 = vmatpush1.msra.mxu0 0.0
    %1731 = vmatprep.subr.mxu0 0.0
    %1732 = vmatpush1.msra.mxu0 0.0
    %1733 = vmatprep.subr.mxu0 0.0
    %1734 = vmatpush1.msra.mxu0 0.0
    %1735 = vmatprep.subr.mxu0 0.0
    %1736 = vmatpush1.msra.mxu0 0.0
    %1737 = vmatprep.subr.mxu0 0.0
    %1738 = vmatpush1.msra.mxu0 0.0
    %1739 = vmatprep.subr.mxu0 0.0
    %1740 = vmatpush1.msra.mxu0 0.0
    %1741 = vmatprep.subr.mxu0 0.0
    %1742 = vmatpush1.msra.mxu0 0.0
    %1743 = vmatprep.subr.mxu0 0.0
    %1744 = vmatpush1.msra.mxu0 0.0
    %1745 = vmatprep.subr.mxu0 0.0
    %1746 = vmatpush1.msra.mxu0 0.0
    %1747 = vmatprep.mubr.f32.mxu0 0.0
    %1748 = vmatmul.mubr.f32.gmra.mrb[0].mxu0 %v1681
    %v1749 = vpop.f32.mrb[0].mxu0
    %v1750 = vadd.f32 0.0, %v1749
    %v1751 = vpop.f32.mrb[0].mxu0
    %v1752 = vadd.f32 0.0, %v1751
    %1753 = vdwg.mxu0
    %v1754 = vadd.f32 %v1121, %v1750
    %v1755 = vadd.f32 %v1123, %v1752
    %v1756 = vxor.u32 %v1754, 2147483648
    %v1757 = vxor.u32 %v1755, 2147483648
    %v1758 = vmul.f32 %v1756, 1.442695
    %v1759 = vpow.pop %v1758
    %v1760 = vmul.f32 %v1757, 1.442695
    %v1761 = vpow.pop %v1760
    %v1762 = vadd.f32 %v1759, 1.0
    %v1763 = vadd.f32 %v1761, 1.0
    %v1764 = vrcp.pop %v1762
    %v1765 = vmul.f32 1.0, %v1764
    %v1766 = vrcp.pop %v1763
    %v1767 = vmul.f32 1.0, %v1766
    %v1768 = vtanh.pop %v1755
    %v1769 = vmul.f32 %v1765, %v1672
    %1771 = vrot.lane.b32.xlu0 %v1768, 64
    %v1772 = vpop.permute.xlu0 %1771
    %v1774 = vmul.f32 %v1765, %v1772
    %1776 = vrot.lane.b32.xlu0 %v1774, 64
    %v1777 = vpop.permute.xlu0 %1776
    %v1779 = vadd.f32 %v1769, %v1777
    %v1780 = vtanh.pop %v1779
    %1782 = vrot.lane.b32.xlu0 %v1780, 64
    %v1783 = vpop.permute.xlu0 %1782
    %v1785 = vmul.f32 %v1767, %v1783
    %1786 = vst.msk [vmem:[#allocation2 + $0x28] sm:$0xff] %vm72, %v1785
    %v1788 = vsel %vm72, %v1785, 0
    %1790 = vmatprep.subr.mxu0 %v1133
    %1791 = vmatpush1.msra.mxu0 %v1132
    %1792 = vmatprep.subr.mxu0 %v1135
    %1793 = vmatpush1.msra.mxu0 %v1134
    %1794 = vmatprep.subr.mxu0 %v1137
    %1795 = vmatpush1.msra.mxu0 %v1136
    %1796 = vmatprep.subr.mxu0 %v1139
    %1797 = vmatpush1.msra.mxu0 %v1138
    %1798 = vmatprep.subr.mxu0 %v1141
    %1799 = vmatpush1.msra.mxu0 %v1140
    %1800 = vmatprep.subr.mxu0 %v1143
    %1801 = vmatpush1.msra.mxu0 %v1142
    %1802 = vmatprep.subr.mxu0 %v1145
    %1803 = vmatpush1.msra.mxu0 %v1144
    %1804 = vmatprep.subr.mxu0 %v1147
    %1805 = vmatpush1.msra.mxu0 %v1146
    %1806 = vmatprep.subr.mxu0 0.0
    %1807 = vmatpush1.msra.mxu0 0.0
    %1808 = vmatprep.subr.mxu0 0.0
    %1809 = vmatpush1.msra.mxu0 0.0
    %1810 = vmatprep.subr.mxu0 0.0
    %1811 = vmatpush1.msra.mxu0 0.0
    %1812 = vmatprep.subr.mxu0 0.0
    %1813 = vmatpush1.msra.mxu0 0.0
    %1814 = vmatprep.subr.mxu0 0.0
    %1815 = vmatpush1.msra.mxu0 0.0
    %1816 = vmatprep.subr.mxu0 0.0
    %1817 = vmatpush1.msra.mxu0 0.0
    %1818 = vmatprep.subr.mxu0 0.0
    %1819 = vmatpush1.msra.mxu0 0.0
    %1820 = vmatprep.subr.mxu0 0.0
    %1821 = vmatpush1.msra.mxu0 0.0
    %1822 = vmatprep.subr.mxu0 0.0
    %1823 = vmatpush1.msra.mxu0 0.0
    %1824 = vmatprep.subr.mxu0 0.0
    %1825 = vmatpush1.msra.mxu0 0.0
    %1826 = vmatprep.subr.mxu0 0.0
    %1827 = vmatpush1.msra.mxu0 0.0
    %1828 = vmatprep.subr.mxu0 0.0
    %1829 = vmatpush1.msra.mxu0 0.0
    %1830 = vmatprep.subr.mxu0 0.0
    %1831 = vmatpush1.msra.mxu0 0.0
    %1832 = vmatprep.subr.mxu0 0.0
    %1833 = vmatpush1.msra.mxu0 0.0
    %1834 = vmatprep.subr.mxu0 0.0
    %1835 = vmatpush1.msra.mxu0 0.0
    %1836 = vmatprep.subr.mxu0 0.0
    %1837 = vmatpush1.msra.mxu0 0.0
    %1838 = vmatprep.subr.mxu0 0.0
    %1839 = vmatpush1.msra.mxu0 0.0
    %1840 = vmatprep.subr.mxu0 0.0
    %1841 = vmatpush1.msra.mxu0 0.0
    %1842 = vmatprep.subr.mxu0 0.0
    %1843 = vmatpush1.msra.mxu0 0.0
    %1844 = vmatprep.subr.mxu0 0.0
    %1845 = vmatpush1.msra.mxu0 0.0
    %1846 = vmatprep.subr.mxu0 0.0
    %1847 = vmatpush1.msra.mxu0 0.0
    %1848 = vmatprep.subr.mxu0 0.0
    %1849 = vmatpush1.msra.mxu0 0.0
    %1850 = vmatprep.subr.mxu0 0.0
    %1851 = vmatpush1.msra.mxu0 0.0
    %1852 = vmatprep.subr.mxu0 0.0
    %1853 = vmatpush1.msra.mxu0 0.0
    %1854 = vmatprep.mubr.f32.mxu0 0.0
    %1855 = vmatmul.mubr.f32.gmra.mrb[0].mxu0 %v1788
    %v1856 = vpop.f32.mrb[0].mxu0
    %v1857 = vadd.f32 0.0, %v1856
    %v1858 = vpop.f32.mrb[0].mxu0
    %v1859 = vadd.f32 0.0, %v1858
    %1860 = vdwg.mxu0
    %v1861 = vadd.f32 %v1127, %v1857
    %v1862 = vadd.f32 %v1129, %v1859
    %v1863 = vxor.u32 %v1861, 2147483648
    %v1864 = vxor.u32 %v1862, 2147483648
    %v1865 = vmul.f32 %v1863, 1.442695
    %v1866 = vpow.pop %v1865
    %v1867 = vmul.f32 %v1864, 1.442695
    %v1868 = vpow.pop %v1867
    %v1869 = vadd.f32 %v1866, 1.0
    %v1870 = vadd.f32 %v1868, 1.0
    %v1871 = vrcp.pop %v1869
    %v1872 = vmul.f32 1.0, %v1871
    %v1873 = vrcp.pop %v1870
    %v1874 = vmul.f32 1.0, %v1873
    %v1875 = vtanh.pop %v1862
    %v1876 = vmul.f32 %v1872, %v1779
    %1878 = vrot.lane.b32.xlu0 %v1875, 64
    %v1879 = vpop.permute.xlu0 %1878
    %v1881 = vmul.f32 %v1872, %v1879
    %1883 = vrot.lane.b32.xlu0 %v1881, 64
    %v1884 = vpop.permute.xlu0 %1883
    %v1886 = vadd.f32 %v1876, %v1884
    %v1887 = vtanh.pop %v1886
    %1889 = vrot.lane.b32.xlu0 %v1887, 64
    %v1890 = vpop.permute.xlu0 %1889
    %v1892 = vmul.f32 %v1874, %v1890
    %1893 = vst.msk [vmem:[#allocation2 + $0x30] sm:$0xff] %vm72, %v1892
    %v1894 = vld [vmem:[#allocation2] sm:$0xff]
    %v1895 = vld [vmem:[#allocation2 + $0x8] sm:$0xff]
    %v1896 = vld [vmem:[#allocation2 + $0x10] sm:$0xff]
    %v1897 = vld [vmem:[#allocation2 + $0x18] sm:$0xff]
    %v1898 = vld [vmem:[#allocation2 + $0x20] sm:$0xff]
    %v1899 = vld [vmem:[#allocation2 + $0x28] sm:$0xff]
    %v1900 = vld [vmem:[#allocation2 + $0x30] sm:$0xff]
    %s1901 = scalar_lea.vmem %s1, 256
    %v1902 = vld [vmem:[%s1901] sm:$0xff]
    %v1903 = vld [vmem:[%s1901 + $0x8] sm:$0xff]
    %v1904 = vld [vmem:[%s1901 + $0x10] sm:$0xff]
    %v1905 = vld [vmem:[%s1901 + $0x18] sm:$0xff]
    %v1906 = vld [vmem:[%s1901 + $0x20] sm:$0xff]
    %v1907 = vld [vmem:[%s1901 + $0x28] sm:$0xff]
    %v1908 = vld [vmem:[%s1901 + $0x30] sm:$0xff]
    %v1909 = vld [vmem:[%s1901 + $0x38] sm:$0xff]
    %v1910 = vld [vmem:[%s1901 + $0x40] sm:$0xff]
    %v1911 = vld [vmem:[%s1901 + $0x48] sm:$0xff]
    %v1912 = vld [vmem:[%s1901 + $0x50] sm:$0xff]
    %v1913 = vld [vmem:[%s1901 + $0x58] sm:$0xff]
    %v1914 = vld [vmem:[%s1901 + $0x60] sm:$0xff]
    %v1915 = vld [vmem:[%s1901 + $0x68] sm:$0xff]
    %v1916 = vld [vmem:[%s1901 + $0x70] sm:$0xff]
    %v1917 = vld [vmem:[%s1901 + $0x78] sm:$0xff]
    %s1918 = scalar_lea.vmem %s3, 4
    %v1919 = vld [vmem:[%s1918] sm:$0x3]
    %v1921 = vlaneseq
    %v1922 = vshrl.u32 %v1921, 7
    %v1923 = vsub.s32 0, %v1922
    %v1924 = vrot.slane %v1919, %v1923
    %v1925 = vlaneseq
    %v1926 = vshrl.u32 %v1925, 7
    %v1927 = vsub.s32 1, %v1926
    %v1928 = vrot.slane %v1919, %v1927
    %v1932 = vsel %vm72, %v1894, 0
    %v1935 = vsel %vm72, %v1895, 0
    %v1938 = vsel %vm72, %v1896, 0
    %v1941 = vsel %vm72, %v1897, 0
    %v1944 = vsel %vm72, %v1898, 0
    %v1947 = vsel %vm72, %v1899, 0
    %v1950 = vsel %vm72, %v1900, 0
    %1952 = vmatprep.subr.mxu0 %v1903
    %1953 = vmatpush1.msra.mxu0 %v1902
    %1954 = vmatprep.subr.mxu0 %v1905
    %1955 = vmatpush1.msra.mxu0 %v1904
    %1956 = vmatprep.subr.mxu0 %v1907
    %1957 = vmatpush1.msra.mxu0 %v1906
    %1958 = vmatprep.subr.mxu0 %v1909
    %1959 = vmatpush1.msra.mxu0 %v1908
    %1960 = vmatprep.subr.mxu0 %v1911
    %1961 = vmatpush1.msra.mxu0 %v1910
    %1962 = vmatprep.subr.mxu0 %v1913
    %1963 = vmatpush1.msra.mxu0 %v1912
    %1964 = vmatprep.subr.mxu0 %v1915
    %1965 = vmatpush1.msra.mxu0 %v1914
    %1966 = vmatprep.subr.mxu0 %v1917
    %1967 = vmatpush1.msra.mxu0 %v1916
    %1968 = vmatprep.subr.mxu0 0.0
    %1969 = vmatpush1.msra.mxu0 0.0
    %1970 = vmatprep.subr.mxu0 0.0
    %1971 = vmatpush1.msra.mxu0 0.0
    %1972 = vmatprep.subr.mxu0 0.0
    %1973 = vmatpush1.msra.mxu0 0.0
    %1974 = vmatprep.subr.mxu0 0.0
    %1975 = vmatpush1.msra.mxu0 0.0
    %1976 = vmatprep.subr.mxu0 0.0
    %1977 = vmatpush1.msra.mxu0 0.0
    %1978 = vmatprep.subr.mxu0 0.0
    %1979 = vmatpush1.msra.mxu0 0.0
    %1980 = vmatprep.subr.mxu0 0.0
    %1981 = vmatpush1.msra.mxu0 0.0
    %1982 = vmatprep.subr.mxu0 0.0
    %1983 = vmatpush1.msra.mxu0 0.0
    %1984 = vmatprep.subr.mxu0 0.0
    %1985 = vmatpush1.msra.mxu0 0.0
    %1986 = vmatprep.subr.mxu0 0.0
    %1987 = vmatpush1.msra.mxu0 0.0
    %1988 = vmatprep.subr.mxu0 0.0
    %1989 = vmatpush1.msra.mxu0 0.0
    %1990 = vmatprep.subr.mxu0 0.0
    %1991 = vmatpush1.msra.mxu0 0.0
    %1992 = vmatprep.subr.mxu0 0.0
    %1993 = vmatpush1.msra.mxu0 0.0
    %1994 = vmatprep.subr.mxu0 0.0
    %1995 = vmatpush1.msra.mxu0 0.0
    %1996 = vmatprep.subr.mxu0 0.0
    %1997 = vmatpush1.msra.mxu0 0.0
    %1998 = vmatprep.subr.mxu0 0.0
    %1999 = vmatpush1.msra.mxu0 0.0
    %2000 = vmatprep.subr.mxu0 0.0
    %2001 = vmatpush1.msra.mxu0 0.0
    %2002 = vmatprep.subr.mxu0 0.0
    %2003 = vmatpush1.msra.mxu0 0.0
    %2004 = vmatprep.subr.mxu0 0.0
    %2005 = vmatpush1.msra.mxu0 0.0
    %2006 = vmatprep.subr.mxu0 0.0
    %2007 = vmatpush1.msra.mxu0 0.0
    %2008 = vmatprep.subr.mxu0 0.0
    %2009 = vmatpush1.msra.mxu0 0.0
    %2010 = vmatprep.subr.mxu0 0.0
    %2011 = vmatpush1.msra.mxu0 0.0
    %2012 = vmatprep.subr.mxu0 0.0
    %2013 = vmatpush1.msra.mxu0 0.0
    %2014 = vmatprep.subr.mxu0 0.0
    %2015 = vmatpush1.msra.mxu0 0.0
    %2016 = vmatprep.mubr.f32.mxu0 0.0
    %2017 = vmatmul.mubr.f32.gmra.mrb[0].mxu0 %v1932
    %v2018 = vpop.f32.mrb[0].mxu0
    %v2019 = vadd.f32 %v1924, %v2018
    %v2020 = vpop.f32.mrb[0].mxu0
    %v2021 = vadd.f32 %v1928, %v2020
    %2022 = vmatprep.mubr.f32.mxu0 0.0
    %2023 = vmatmul.mubr.f32.gmra.mrb[0].mxu0 %v1935
    %v2024 = vpop.f32.mrb[0].mxu0
    %v2025 = vadd.f32 %v1924, %v2024
    %v2026 = vpop.f32.mrb[0].mxu0
    %v2027 = vadd.f32 %v1928, %v2026
    %2028 = vmatprep.mubr.f32.mxu0 0.0
    %2029 = vmatmul.mubr.f32.gmra.mrb[0].mxu0 %v1938
    %v2030 = vpop.f32.mrb[0].mxu0
    %v2031 = vadd.f32 %v1924, %v2030
    %v2032 = vpop.f32.mrb[0].mxu0
    %v2033 = vadd.f32 %v1928, %v2032
    %2034 = vmatprep.mubr.f32.mxu0 0.0
    %2035 = vmatmul.mubr.f32.gmra.mrb[0].mxu0 %v1941
    %v2036 = vpop.f32.mrb[0].mxu0
    %v2037 = vadd.f32 %v1924, %v2036
    %v2038 = vpop.f32.mrb[0].mxu0
    %v2039 = vadd.f32 %v1928, %v2038
    %2040 = vmatprep.mubr.f32.mxu0 0.0
    %2041 = vmatmul.mubr.f32.gmra.mrb[0].mxu0 %v1944
    %v2042 = vpop.f32.mrb[0].mxu0
    %v2043 = vadd.f32 %v1924, %v2042
    %v2044 = vpop.f32.mrb[0].mxu0
    %v2045 = vadd.f32 %v1928, %v2044
    %2046 = vmatprep.mubr.f32.mxu0 0.0
    %2047 = vmatmul.mubr.f32.gmra.mrb[0].mxu0 %v1947
    %v2048 = vpop.f32.mrb[0].mxu0
    %v2049 = vadd.f32 %v1924, %v2048
    %v2050 = vpop.f32.mrb[0].mxu0
    %v2051 = vadd.f32 %v1928, %v2050
    %2052 = vmatprep.mubr.f32.mxu0 0.0
    %2053 = vmatmul.mubr.f32.gmra.mrb[0].mxu0 %v1950
    %v2054 = vpop.f32.mrb[0].mxu0
    %v2055 = vadd.f32 %v1924, %v2054
    %v2056 = vpop.f32.mrb[0].mxu0
    %v2057 = vadd.f32 %v1928, %v2056
    %2058 = vdwg.mxu0
    %s2059 = scalar_lea.vmem %s2, 256
    %v2060 = vld [vmem:[%s2059] sm:$0xff]
    %v2061 = vld [vmem:[%s2059 + $0x8] sm:$0xff]
    %v2062 = vld [vmem:[%s2059 + $0x10] sm:$0xff]
    %v2063 = vld [vmem:[%s2059 + $0x18] sm:$0xff]
    %v2064 = vld [vmem:[%s2059 + $0x20] sm:$0xff]
    %v2065 = vld [vmem:[%s2059 + $0x28] sm:$0xff]
    %v2066 = vld [vmem:[%s2059 + $0x30] sm:$0xff]
    %v2067 = vld [vmem:[%s2059 + $0x38] sm:$0xff]
    %v2068 = vld [vmem:[%s2059 + $0x40] sm:$0xff]
    %v2069 = vld [vmem:[%s2059 + $0x48] sm:$0xff]
    %v2070 = vld [vmem:[%s2059 + $0x50] sm:$0xff]
    %v2071 = vld [vmem:[%s2059 + $0x58] sm:$0xff]
    %v2072 = vld [vmem:[%s2059 + $0x60] sm:$0xff]
    %v2073 = vld [vmem:[%s2059 + $0x68] sm:$0xff]
    %v2074 = vld [vmem:[%s2059 + $0x70] sm:$0xff]
    %v2075 = vld [vmem:[%s2059 + $0x78] sm:$0xff]
    %2076 = vmatprep.subr.mxu0 %v2061
    %2077 = vmatpush1.msra.mxu0 %v2060
    %2078 = vmatprep.subr.mxu0 %v2063
    %2079 = vmatpush1.msra.mxu0 %v2062
    %2080 = vmatprep.subr.mxu0 %v2065
    %2081 = vmatpush1.msra.mxu0 %v2064
    %2082 = vmatprep.subr.mxu0 %v2067
    %2083 = vmatpush1.msra.mxu0 %v2066
    %2084 = vmatprep.subr.mxu0 %v2069
    %2085 = vmatpush1.msra.mxu0 %v2068
    %2086 = vmatprep.subr.mxu0 %v2071
    %2087 = vmatpush1.msra.mxu0 %v2070
    %2088 = vmatprep.subr.mxu0 %v2073
    %2089 = vmatpush1.msra.mxu0 %v2072
    %2090 = vmatprep.subr.mxu0 %v2075
    %2091 = vmatpush1.msra.mxu0 %v2074
    %2092 = vmatprep.subr.mxu0 0.0
    %2093 = vmatpush1.msra.mxu0 0.0
    %2094 = vmatprep.subr.mxu0 0.0
    %2095 = vmatpush1.msra.mxu0 0.0
    %2096 = vmatprep.subr.mxu0 0.0
    %2097 = vmatpush1.msra.mxu0 0.0
    %2098 = vmatprep.subr.mxu0 0.0
    %2099 = vmatpush1.msra.mxu0 0.0
    %2100 = vmatprep.subr.mxu0 0.0
    %2101 = vmatpush1.msra.mxu0 0.0
    %2102 = vmatprep.subr.mxu0 0.0
    %2103 = vmatpush1.msra.mxu0 0.0
    %2104 = vmatprep.subr.mxu0 0.0
    %2105 = vmatpush1.msra.mxu0 0.0
    %2106 = vmatprep.subr.mxu0 0.0
    %2107 = vmatpush1.msra.mxu0 0.0
    %2108 = vmatprep.subr.mxu0 0.0
    %2109 = vmatpush1.msra.mxu0 0.0
    %2110 = vmatprep.subr.mxu0 0.0
    %2111 = vmatpush1.msra.mxu0 0.0
    %2112 = vmatprep.subr.mxu0 0.0
    %2113 = vmatpush1.msra.mxu0 0.0
    %2114 = vmatprep.subr.mxu0 0.0
    %2115 = vmatpush1.msra.mxu0 0.0
    %2116 = vmatprep.subr.mxu0 0.0
    %2117 = vmatpush1.msra.mxu0 0.0
    %2118 = vmatprep.subr.mxu0 0.0
    %2119 = vmatpush1.msra.mxu0 0.0
    %2120 = vmatprep.subr.mxu0 0.0
    %2121 = vmatpush1.msra.mxu0 0.0
    %2122 = vmatprep.subr.mxu0 0.0
    %2123 = vmatpush1.msra.mxu0 0.0
    %2124 = vmatprep.subr.mxu0 0.0
    %2125 = vmatpush1.msra.mxu0 0.0
    %2126 = vmatprep.subr.mxu0 0.0
    %2127 = vmatpush1.msra.mxu0 0.0
    %2128 = vmatprep.subr.mxu0 0.0
    %2129 = vmatpush1.msra.mxu0 0.0
    %2130 = vmatprep.subr.mxu0 0.0
    %2131 = vmatpush1.msra.mxu0 0.0
    %2132 = vmatprep.subr.mxu0 0.0
    %2133 = vmatpush1.msra.mxu0 0.0
    %2134 = vmatprep.subr.mxu0 0.0
    %2135 = vmatpush1.msra.mxu0 0.0
    %2136 = vmatprep.subr.mxu0 0.0
    %2137 = vmatpush1.msra.mxu0 0.0
    %2138 = vmatprep.subr.mxu0 0.0
    %2139 = vmatpush1.msra.mxu0 0.0
    %2140 = vmatprep.mubr.f32.mxu0 0.0
    %2141 = vmatmul.mubr.f32.gmra.mrb[0].mxu0 %v218
    %v2142 = vpop.f32.mrb[0].mxu0
    %v2143 = vadd.f32 0.0, %v2142
    %v2144 = vpop.f32.mrb[0].mxu0
    %v2145 = vadd.f32 0.0, %v2144
    %2146 = vdwg.mxu0
    %v2147 = vadd.f32 %v2019, %v2143
    %v2148 = vadd.f32 %v2021, %v2145
    %v2149 = vxor.u32 %v2147, 2147483648
    %v2150 = vxor.u32 %v2148, 2147483648
    %v2151 = vmul.f32 %v2149, 1.442695
    %v2152 = vpow.pop %v2151
    %v2153 = vmul.f32 %v2150, 1.442695
    %v2154 = vpow.pop %v2153
    %v2155 = vadd.f32 %v2152, 1.0
    %v2156 = vadd.f32 %v2154, 1.0
    %v2157 = vrcp.pop %v2155
    %v2158 = vmul.f32 1.0, %v2157
    %v2159 = vrcp.pop %v2156
    %v2160 = vmul.f32 1.0, %v2159
    %v2161 = vtanh.pop %v2148
    %v2162 = vmul.f32 %v2158, 0.0
    %2164 = vrot.lane.b32.xlu0 %v2161, 64
    %v2165 = vpop.permute.xlu0 %2164
    %v2167 = vmul.f32 %v2158, %v2165
    %2169 = vrot.lane.b32.xlu0 %v2167, 64
    %v2170 = vpop.permute.xlu0 %2169
    %v2172 = vadd.f32 %v2162, %v2170
    %v2173 = vtanh.pop %v2172
    %2175 = vrot.lane.b32.xlu0 %v2173, 64
    %v2176 = vpop.permute.xlu0 %2175
    %v2178 = vmul.f32 %v2160, %v2176
    %2179 = vst.msk [vmem:[#allocation2] sm:$0xff] %vm72, %v2178
    %v2181 = vsel %vm72, %v2178, 0
    %2183 = vmatprep.subr.mxu0 %v2061
    %2184 = vmatpush1.msra.mxu0 %v2060
    %2185 = vmatprep.subr.mxu0 %v2063
    %2186 = vmatpush1.msra.mxu0 %v2062
    %2187 = vmatprep.subr.mxu0 %v2065
    %2188 = vmatpush1.msra.mxu0 %v2064
    %2189 = vmatprep.subr.mxu0 %v2067
    %2190 = vmatpush1.msra.mxu0 %v2066
    %2191 = vmatprep.subr.mxu0 %v2069
    %2192 = vmatpush1.msra.mxu0 %v2068
    %2193 = vmatprep.subr.mxu0 %v2071
    %2194 = vmatpush1.msra.mxu0 %v2070
    %2195 = vmatprep.subr.mxu0 %v2073
    %2196 = vmatpush1.msra.mxu0 %v2072
    %2197 = vmatprep.subr.mxu0 %v2075
    %2198 = vmatpush1.msra.mxu0 %v2074
    %2199 = vmatprep.subr.mxu0 0.0
    %2200 = vmatpush1.msra.mxu0 0.0
    %2201 = vmatprep.subr.mxu0 0.0
    %2202 = vmatpush1.msra.mxu0 0.0
    %2203 = vmatprep.subr.mxu0 0.0
    %2204 = vmatpush1.msra.mxu0 0.0
    %2205 = vmatprep.subr.mxu0 0.0
    %2206 = vmatpush1.msra.mxu0 0.0
    %2207 = vmatprep.subr.mxu0 0.0
    %2208 = vmatpush1.msra.mxu0 0.0
    %2209 = vmatprep.subr.mxu0 0.0
    %2210 = vmatpush1.msra.mxu0 0.0
    %2211 = vmatprep.subr.mxu0 0.0
    %2212 = vmatpush1.msra.mxu0 0.0
    %2213 = vmatprep.subr.mxu0 0.0
    %2214 = vmatpush1.msra.mxu0 0.0
    %2215 = vmatprep.subr.mxu0 0.0
    %2216 = vmatpush1.msra.mxu0 0.0
    %2217 = vmatprep.subr.mxu0 0.0
    %2218 = vmatpush1.msra.mxu0 0.0
    %2219 = vmatprep.subr.mxu0 0.0
    %2220 = vmatpush1.msra.mxu0 0.0
    %2221 = vmatprep.subr.mxu0 0.0
    %2222 = vmatpush1.msra.mxu0 0.0
    %2223 = vmatprep.subr.mxu0 0.0
    %2224 = vmatpush1.msra.mxu0 0.0
    %2225 = vmatprep.subr.mxu0 0.0
    %2226 = vmatpush1.msra.mxu0 0.0
    %2227 = vmatprep.subr.mxu0 0.0
    %2228 = vmatpush1.msra.mxu0 0.0
    %2229 = vmatprep.subr.mxu0 0.0
    %2230 = vmatpush1.msra.mxu0 0.0
    %2231 = vmatprep.subr.mxu0 0.0
    %2232 = vmatpush1.msra.mxu0 0.0
    %2233 = vmatprep.subr.mxu0 0.0
    %2234 = vmatpush1.msra.mxu0 0.0
    %2235 = vmatprep.subr.mxu0 0.0
    %2236 = vmatpush1.msra.mxu0 0.0
    %2237 = vmatprep.subr.mxu0 0.0
    %2238 = vmatpush1.msra.mxu0 0.0
    %2239 = vmatprep.subr.mxu0 0.0
    %2240 = vmatpush1.msra.mxu0 0.0
    %2241 = vmatprep.subr.mxu0 0.0
    %2242 = vmatpush1.msra.mxu0 0.0
    %2243 = vmatprep.subr.mxu0 0.0
    %2244 = vmatpush1.msra.mxu0 0.0
    %2245 = vmatprep.subr.mxu0 0.0
    %2246 = vmatpush1.msra.mxu0 0.0
    %2247 = vmatprep.mubr.f32.mxu0 0.0
    %2248 = vmatmul.mubr.f32.gmra.mrb[0].mxu0 %v2181
    %v2249 = vpop.f32.mrb[0].mxu0
    %v2250 = vadd.f32 0.0, %v2249
    %v2251 = vpop.f32.mrb[0].mxu0
    %v2252 = vadd.f32 0.0, %v2251
    %2253 = vdwg.mxu0
    %v2254 = vadd.f32 %v2025, %v2250
    %v2255 = vadd.f32 %v2027, %v2252
    %v2256 = vxor.u32 %v2254, 2147483648
    %v2257 = vxor.u32 %v2255, 2147483648
    %v2258 = vmul.f32 %v2256, 1.442695
    %v2259 = vpow.pop %v2258
    %v2260 = vmul.f32 %v2257, 1.442695
    %v2261 = vpow.pop %v2260
    %v2262 = vadd.f32 %v2259, 1.0
    %v2263 = vadd.f32 %v2261, 1.0
    %v2264 = vrcp.pop %v2262
    %v2265 = vmul.f32 1.0, %v2264
    %v2266 = vrcp.pop %v2263
    %v2267 = vmul.f32 1.0, %v2266
    %v2268 = vtanh.pop %v2255
    %v2269 = vmul.f32 %v2265, %v2172
    %2271 = vrot.lane.b32.xlu0 %v2268, 64
    %v2272 = vpop.permute.xlu0 %2271
    %v2274 = vmul.f32 %v2265, %v2272
    %2276 = vrot.lane.b32.xlu0 %v2274, 64
    %v2277 = vpop.permute.xlu0 %2276
    %v2279 = vadd.f32 %v2269, %v2277
    %v2280 = vtanh.pop %v2279
    %2282 = vrot.lane.b32.xlu0 %v2280, 64
    %v2283 = vpop.permute.xlu0 %2282
    %v2285 = vmul.f32 %v2267, %v2283
    %2286 = vst.msk [vmem:[#allocation2 + $0x8] sm:$0xff] %vm72, %v2285
    %v2288 = vsel %vm72, %v2285, 0
    %2290 = vmatprep.subr.mxu0 %v2061
    %2291 = vmatpush1.msra.mxu0 %v2060
    %2292 = vmatprep.subr.mxu0 %v2063
    %2293 = vmatpush1.msra.mxu0 %v2062
    %2294 = vmatprep.subr.mxu0 %v2065
    %2295 = vmatpush1.msra.mxu0 %v2064
    %2296 = vmatprep.subr.mxu0 %v2067
    %2297 = vmatpush1.msra.mxu0 %v2066
    %2298 = vmatprep.subr.mxu0 %v2069
    %2299 = vmatpush1.msra.mxu0 %v2068
    %2300 = vmatprep.subr.mxu0 %v2071
    %2301 = vmatpush1.msra.mxu0 %v2070
    %2302 = vmatprep.subr.mxu0 %v2073
    %2303 = vmatpush1.msra.mxu0 %v2072
    %2304 = vmatprep.subr.mxu0 %v2075
    %2305 = vmatpush1.msra.mxu0 %v2074
    %2306 = vmatprep.subr.mxu0 0.0
    %2307 = vmatpush1.msra.mxu0 0.0
    %2308 = vmatprep.subr.mxu0 0.0
    %2309 = vmatpush1.msra.mxu0 0.0
    %2310 = vmatprep.subr.mxu0 0.0
    %2311 = vmatpush1.msra.mxu0 0.0
    %2312 = vmatprep.subr.mxu0 0.0
    %2313 = vmatpush1.msra.mxu0 0.0
    %2314 = vmatprep.subr.mxu0 0.0
    %2315 = vmatpush1.msra.mxu0 0.0
    %2316 = vmatprep.subr.mxu0 0.0
    %2317 = vmatpush1.msra.mxu0 0.0
    %2318 = vmatprep.subr.mxu0 0.0
    %2319 = vmatpush1.msra.mxu0 0.0
    %2320 = vmatprep.subr.mxu0 0.0
    %2321 = vmatpush1.msra.mxu0 0.0
    %2322 = vmatprep.subr.mxu0 0.0
    %2323 = vmatpush1.msra.mxu0 0.0
    %2324 = vmatprep.subr.mxu0 0.0
    %2325 = vmatpush1.msra.mxu0 0.0
    %2326 = vmatprep.subr.mxu0 0.0
    %2327 = vmatpush1.msra.mxu0 0.0
    %2328 = vmatprep.subr.mxu0 0.0
    %2329 = vmatpush1.msra.mxu0 0.0
    %2330 = vmatprep.subr.mxu0 0.0
    %2331 = vmatpush1.msra.mxu0 0.0
    %2332 = vmatprep.subr.mxu0 0.0
    %2333 = vmatpush1.msra.mxu0 0.0
    %2334 = vmatprep.subr.mxu0 0.0
    %2335 = vmatpush1.msra.mxu0 0.0
    %2336 = vmatprep.subr.mxu0 0.0
    %2337 = vmatpush1.msra.mxu0 0.0
    %2338 = vmatprep.subr.mxu0 0.0
    %2339 = vmatpush1.msra.mxu0 0.0
    %2340 = vmatprep.subr.mxu0 0.0
    %2341 = vmatpush1.msra.mxu0 0.0
    %2342 = vmatprep.subr.mxu0 0.0
    %2343 = vmatpush1.msra.mxu0 0.0
    %2344 = vmatprep.subr.mxu0 0.0
    %2345 = vmatpush1.msra.mxu0 0.0
    %2346 = vmatprep.subr.mxu0 0.0
    %2347 = vmatpush1.msra.mxu0 0.0
    %2348 = vmatprep.subr.mxu0 0.0
    %2349 = vmatpush1.msra.mxu0 0.0
    %2350 = vmatprep.subr.mxu0 0.0
    %2351 = vmatpush1.msra.mxu0 0.0
    %2352 = vmatprep.subr.mxu0 0.0
    %2353 = vmatpush1.msra.mxu0 0.0
    %2354 = vmatprep.mubr.f32.mxu0 0.0
    %2355 = vmatmul.mubr.f32.gmra.mrb[0].mxu0 %v2288
    %v2356 = vpop.f32.mrb[0].mxu0
    %v2357 = vadd.f32 0.0, %v2356
    %v2358 = vpop.f32.mrb[0].mxu0
    %v2359 = vadd.f32 0.0, %v2358
    %2360 = vdwg.mxu0
    %v2361 = vadd.f32 %v2031, %v2357
    %v2362 = vadd.f32 %v2033, %v2359
    %v2363 = vxor.u32 %v2361, 2147483648
    %v2364 = vxor.u32 %v2362, 2147483648
    %v2365 = vmul.f32 %v2363, 1.442695
    %v2366 = vpow.pop %v2365
    %v2367 = vmul.f32 %v2364, 1.442695
    %v2368 = vpow.pop %v2367
    %v2369 = vadd.f32 %v2366, 1.0
    %v2370 = vadd.f32 %v2368, 1.0
    %v2371 = vrcp.pop %v2369
    %v2372 = vmul.f32 1.0, %v2371
    %v2373 = vrcp.pop %v2370
    %v2374 = vmul.f32 1.0, %v2373
    %v2375 = vtanh.pop %v2362
    %v2376 = vmul.f32 %v2372, %v2279
    %2378 = vrot.lane.b32.xlu0 %v2375, 64
    %v2379 = vpop.permute.xlu0 %2378
    %v2381 = vmul.f32 %v2372, %v2379
    %2383 = vrot.lane.b32.xlu0 %v2381, 64
    %v2384 = vpop.permute.xlu0 %2383
    %v2386 = vadd.f32 %v2376, %v2384
    %v2387 = vtanh.pop %v2386
    %2389 = vrot.lane.b32.xlu0 %v2387, 64
    %v2390 = vpop.permute.xlu0 %2389
    %v2392 = vmul.f32 %v2374, %v2390
    %2393 = vst.msk [vmem:[#allocation2 + $0x10] sm:$0xff] %vm72, %v2392
    %v2395 = vsel %vm72, %v2392, 0
    %2397 = vmatprep.subr.mxu0 %v2061
    %2398 = vmatpush1.msra.mxu0 %v2060
    %2399 = vmatprep.subr.mxu0 %v2063
    %2400 = vmatpush1.msra.mxu0 %v2062
    %2401 = vmatprep.subr.mxu0 %v2065
    %2402 = vmatpush1.msra.mxu0 %v2064
    %2403 = vmatprep.subr.mxu0 %v2067
    %2404 = vmatpush1.msra.mxu0 %v2066
    %2405 = vmatprep.subr.mxu0 %v2069
    %2406 = vmatpush1.msra.mxu0 %v2068
    %2407 = vmatprep.subr.mxu0 %v2071
    %2408 = vmatpush1.msra.mxu0 %v2070
    %2409 = vmatprep.subr.mxu0 %v2073
    %2410 = vmatpush1.msra.mxu0 %v2072
    %2411 = vmatprep.subr.mxu0 %v2075
    %2412 = vmatpush1.msra.mxu0 %v2074
    %2413 = vmatprep.subr.mxu0 0.0
    %2414 = vmatpush1.msra.mxu0 0.0
    %2415 = vmatprep.subr.mxu0 0.0
    %2416 = vmatpush1.msra.mxu0 0.0
    %2417 = vmatprep.subr.mxu0 0.0
    %2418 = vmatpush1.msra.mxu0 0.0
    %2419 = vmatprep.subr.mxu0 0.0
    %2420 = vmatpush1.msra.mxu0 0.0
    %2421 = vmatprep.subr.mxu0 0.0
    %2422 = vmatpush1.msra.mxu0 0.0
    %2423 = vmatprep.subr.mxu0 0.0
    %2424 = vmatpush1.msra.mxu0 0.0
    %2425 = vmatprep.subr.mxu0 0.0
    %2426 = vmatpush1.msra.mxu0 0.0
    %2427 = vmatprep.subr.mxu0 0.0
    %2428 = vmatpush1.msra.mxu0 0.0
    %2429 = vmatprep.subr.mxu0 0.0
    %2430 = vmatpush1.msra.mxu0 0.0
    %2431 = vmatprep.subr.mxu0 0.0
    %2432 = vmatpush1.msra.mxu0 0.0
    %2433 = vmatprep.subr.mxu0 0.0
    %2434 = vmatpush1.msra.mxu0 0.0
    %2435 = vmatprep.subr.mxu0 0.0
    %2436 = vmatpush1.msra.mxu0 0.0
    %2437 = vmatprep.subr.mxu0 0.0
    %2438 = vmatpush1.msra.mxu0 0.0
    %2439 = vmatprep.subr.mxu0 0.0
    %2440 = vmatpush1.msra.mxu0 0.0
    %2441 = vmatprep.subr.mxu0 0.0
    %2442 = vmatpush1.msra.mxu0 0.0
    %2443 = vmatprep.subr.mxu0 0.0
    %2444 = vmatpush1.msra.mxu0 0.0
    %2445 = vmatprep.subr.mxu0 0.0
    %2446 = vmatpush1.msra.mxu0 0.0
    %2447 = vmatprep.subr.mxu0 0.0
    %2448 = vmatpush1.msra.mxu0 0.0
    %2449 = vmatprep.subr.mxu0 0.0
    %2450 = vmatpush1.msra.mxu0 0.0
    %2451 = vmatprep.subr.mxu0 0.0
    %2452 = vmatpush1.msra.mxu0 0.0
    %2453 = vmatprep.subr.mxu0 0.0
    %2454 = vmatpush1.msra.mxu0 0.0
    %2455 = vmatprep.subr.mxu0 0.0
    %2456 = vmatpush1.msra.mxu0 0.0
    %2457 = vmatprep.subr.mxu0 0.0
    %2458 = vmatpush1.msra.mxu0 0.0
    %2459 = vmatprep.subr.mxu0 0.0
    %2460 = vmatpush1.msra.mxu0 0.0
    %2461 = vmatprep.mubr.f32.mxu0 0.0
    %2462 = vmatmul.mubr.f32.gmra.mrb[0].mxu0 %v2395
    %v2463 = vpop.f32.mrb[0].mxu0
    %v2464 = vadd.f32 0.0, %v2463
    %v2465 = vpop.f32.mrb[0].mxu0
    %v2466 = vadd.f32 0.0, %v2465
    %2467 = vdwg.mxu0
    %v2468 = vadd.f32 %v2037, %v2464
    %v2469 = vadd.f32 %v2039, %v2466
    %v2470 = vxor.u32 %v2468, 2147483648
    %v2471 = vxor.u32 %v2469, 2147483648
    %v2472 = vmul.f32 %v2470, 1.442695
    %v2473 = vpow.pop %v2472
    %v2474 = vmul.f32 %v2471, 1.442695
    %v2475 = vpow.pop %v2474
    %v2476 = vadd.f32 %v2473, 1.0
    %v2477 = vadd.f32 %v2475, 1.0
    %v2478 = vrcp.pop %v2476
    %v2479 = vmul.f32 1.0, %v2478
    %v2480 = vrcp.pop %v2477
    %v2481 = vmul.f32 1.0, %v2480
    %v2482 = vtanh.pop %v2469
    %v2483 = vmul.f32 %v2479, %v2386
    %2485 = vrot.lane.b32.xlu0 %v2482, 64
    %v2486 = vpop.permute.xlu0 %2485
    %v2488 = vmul.f32 %v2479, %v2486
    %2490 = vrot.lane.b32.xlu0 %v2488, 64
    %v2491 = vpop.permute.xlu0 %2490
    %v2493 = vadd.f32 %v2483, %v2491
    %v2494 = vtanh.pop %v2493
    %2496 = vrot.lane.b32.xlu0 %v2494, 64
    %v2497 = vpop.permute.xlu0 %2496
    %v2499 = vmul.f32 %v2481, %v2497
    %2500 = vst.msk [vmem:[#allocation2 + $0x18] sm:$0xff] %vm72, %v2499
    %v2502 = vsel %vm72, %v2499, 0
    %2504 = vmatprep.subr.mxu0 %v2061
    %2505 = vmatpush1.msra.mxu0 %v2060
    %2506 = vmatprep.subr.mxu0 %v2063
    %2507 = vmatpush1.msra.mxu0 %v2062
    %2508 = vmatprep.subr.mxu0 %v2065
    %2509 = vmatpush1.msra.mxu0 %v2064
    %2510 = vmatprep.subr.mxu0 %v2067
    %2511 = vmatpush1.msra.mxu0 %v2066
    %2512 = vmatprep.subr.mxu0 %v2069
    %2513 = vmatpush1.msra.mxu0 %v2068
    %2514 = vmatprep.subr.mxu0 %v2071
    %2515 = vmatpush1.msra.mxu0 %v2070
    %2516 = vmatprep.subr.mxu0 %v2073
    %2517 = vmatpush1.msra.mxu0 %v2072
    %2518 = vmatprep.subr.mxu0 %v2075
    %2519 = vmatpush1.msra.mxu0 %v2074
    %2520 = vmatprep.subr.mxu0 0.0
    %2521 = vmatpush1.msra.mxu0 0.0
    %2522 = vmatprep.subr.mxu0 0.0
    %2523 = vmatpush1.msra.mxu0 0.0
    %2524 = vmatprep.subr.mxu0 0.0
    %2525 = vmatpush1.msra.mxu0 0.0
    %2526 = vmatprep.subr.mxu0 0.0
    %2527 = vmatpush1.msra.mxu0 0.0
    %2528 = vmatprep.subr.mxu0 0.0
    %2529 = vmatpush1.msra.mxu0 0.0
    %2530 = vmatprep.subr.mxu0 0.0
    %2531 = vmatpush1.msra.mxu0 0.0
    %2532 = vmatprep.subr.mxu0 0.0
    %2533 = vmatpush1.msra.mxu0 0.0
    %2534 = vmatprep.subr.mxu0 0.0
    %2535 = vmatpush1.msra.mxu0 0.0
    %2536 = vmatprep.subr.mxu0 0.0
    %2537 = vmatpush1.msra.mxu0 0.0
    %2538 = vmatprep.subr.mxu0 0.0
    %2539 = vmatpush1.msra.mxu0 0.0
    %2540 = vmatprep.subr.mxu0 0.0
    %2541 = vmatpush1.msra.mxu0 0.0
    %2542 = vmatprep.subr.mxu0 0.0
    %2543 = vmatpush1.msra.mxu0 0.0
    %2544 = vmatprep.subr.mxu0 0.0
    %2545 = vmatpush1.msra.mxu0 0.0
    %2546 = vmatprep.subr.mxu0 0.0
    %2547 = vmatpush1.msra.mxu0 0.0
    %2548 = vmatprep.subr.mxu0 0.0
    %2549 = vmatpush1.msra.mxu0 0.0
    %2550 = vmatprep.subr.mxu0 0.0
    %2551 = vmatpush1.msra.mxu0 0.0
    %2552 = vmatprep.subr.mxu0 0.0
    %2553 = vmatpush1.msra.mxu0 0.0
    %2554 = vmatprep.subr.mxu0 0.0
    %2555 = vmatpush1.msra.mxu0 0.0
    %2556 = vmatprep.subr.mxu0 0.0
    %2557 = vmatpush1.msra.mxu0 0.0
    %2558 = vmatprep.subr.mxu0 0.0
    %2559 = vmatpush1.msra.mxu0 0.0
    %2560 = vmatprep.subr.mxu0 0.0
    %2561 = vmatpush1.msra.mxu0 0.0
    %2562 = vmatprep.subr.mxu0 0.0
    %2563 = vmatpush1.msra.mxu0 0.0
    %2564 = vmatprep.subr.mxu0 0.0
    %2565 = vmatpush1.msra.mxu0 0.0
    %2566 = vmatprep.subr.mxu0 0.0
    %2567 = vmatpush1.msra.mxu0 0.0
    %2568 = vmatprep.mubr.f32.mxu0 0.0
    %2569 = vmatmul.mubr.f32.gmra.mrb[0].mxu0 %v2502
    %v2570 = vpop.f32.mrb[0].mxu0
    %v2571 = vadd.f32 0.0, %v2570
    %v2572 = vpop.f32.mrb[0].mxu0
    %v2573 = vadd.f32 0.0, %v2572
    %2574 = vdwg.mxu0
    %v2575 = vadd.f32 %v2043, %v2571
    %v2576 = vadd.f32 %v2045, %v2573
    %v2577 = vxor.u32 %v2575, 2147483648
    %v2578 = vxor.u32 %v2576, 2147483648
    %v2579 = vmul.f32 %v2577, 1.442695
    %v2580 = vpow.pop %v2579
    %v2581 = vmul.f32 %v2578, 1.442695
    %v2582 = vpow.pop %v2581
    %v2583 = vadd.f32 %v2580, 1.0
    %v2584 = vadd.f32 %v2582, 1.0
    %v2585 = vrcp.pop %v2583
    %v2586 = vmul.f32 1.0, %v2585
    %v2587 = vrcp.pop %v2584
    %v2588 = vmul.f32 1.0, %v2587
    %v2589 = vtanh.pop %v2576
    %v2590 = vmul.f32 %v2586, %v2493
    %2592 = vrot.lane.b32.xlu0 %v2589, 64
    %v2593 = vpop.permute.xlu0 %2592
    %v2595 = vmul.f32 %v2586, %v2593
    %2597 = vrot.lane.b32.xlu0 %v2595, 64
    %v2598 = vpop.permute.xlu0 %2597
    %v2600 = vadd.f32 %v2590, %v2598
    %v2601 = vtanh.pop %v2600
    %2603 = vrot.lane.b32.xlu0 %v2601, 64
    %v2604 = vpop.permute.xlu0 %2603
    %v2606 = vmul.f32 %v2588, %v2604
    %2607 = vst.msk [vmem:[#allocation2 + $0x20] sm:$0xff] %vm72, %v2606
    %v2609 = vsel %vm72, %v2606, 0
    %2611 = vmatprep.subr.mxu0 %v2061
    %2612 = vmatpush1.msra.mxu0 %v2060
    %2613 = vmatprep.subr.mxu0 %v2063
    %2614 = vmatpush1.msra.mxu0 %v2062
    %2615 = vmatprep.subr.mxu0 %v2065
    %2616 = vmatpush1.msra.mxu0 %v2064
    %2617 = vmatprep.subr.mxu0 %v2067
    %2618 = vmatpush1.msra.mxu0 %v2066
    %2619 = vmatprep.subr.mxu0 %v2069
    %2620 = vmatpush1.msra.mxu0 %v2068
    %2621 = vmatprep.subr.mxu0 %v2071
    %2622 = vmatpush1.msra.mxu0 %v2070
    %2623 = vmatprep.subr.mxu0 %v2073
    %2624 = vmatpush1.msra.mxu0 %v2072
    %2625 = vmatprep.subr.mxu0 %v2075
    %2626 = vmatpush1.msra.mxu0 %v2074
    %2627 = vmatprep.subr.mxu0 0.0
    %2628 = vmatpush1.msra.mxu0 0.0
    %2629 = vmatprep.subr.mxu0 0.0
    %2630 = vmatpush1.msra.mxu0 0.0
    %2631 = vmatprep.subr.mxu0 0.0
    %2632 = vmatpush1.msra.mxu0 0.0
    %2633 = vmatprep.subr.mxu0 0.0
    %2634 = vmatpush1.msra.mxu0 0.0
    %2635 = vmatprep.subr.mxu0 0.0
    %2636 = vmatpush1.msra.mxu0 0.0
    %2637 = vmatprep.subr.mxu0 0.0
    %2638 = vmatpush1.msra.mxu0 0.0
    %2639 = vmatprep.subr.mxu0 0.0
    %2640 = vmatpush1.msra.mxu0 0.0
    %2641 = vmatprep.subr.mxu0 0.0
    %2642 = vmatpush1.msra.mxu0 0.0
    %2643 = vmatprep.subr.mxu0 0.0
    %2644 = vmatpush1.msra.mxu0 0.0
    %2645 = vmatprep.subr.mxu0 0.0
    %2646 = vmatpush1.msra.mxu0 0.0
    %2647 = vmatprep.subr.mxu0 0.0
    %2648 = vmatpush1.msra.mxu0 0.0
    %2649 = vmatprep.subr.mxu0 0.0
    %2650 = vmatpush1.msra.mxu0 0.0
    %2651 = vmatprep.subr.mxu0 0.0
    %2652 = vmatpush1.msra.mxu0 0.0
    %2653 = vmatprep.subr.mxu0 0.0
    %2654 = vmatpush1.msra.mxu0 0.0
    %2655 = vmatprep.subr.mxu0 0.0
    %2656 = vmatpush1.msra.mxu0 0.0
    %2657 = vmatprep.subr.mxu0 0.0
    %2658 = vmatpush1.msra.mxu0 0.0
    %2659 = vmatprep.subr.mxu0 0.0
    %2660 = vmatpush1.msra.mxu0 0.0
    %2661 = vmatprep.subr.mxu0 0.0
    %2662 = vmatpush1.msra.mxu0 0.0
    %2663 = vmatprep.subr.mxu0 0.0
    %2664 = vmatpush1.msra.mxu0 0.0
    %2665 = vmatprep.subr.mxu0 0.0
    %2666 = vmatpush1.msra.mxu0 0.0
    %2667 = vmatprep.subr.mxu0 0.0
    %2668 = vmatpush1.msra.mxu0 0.0
    %2669 = vmatprep.subr.mxu0 0.0
    %2670 = vmatpush1.msra.mxu0 0.0
    %2671 = vmatprep.subr.mxu0 0.0
    %2672 = vmatpush1.msra.mxu0 0.0
    %2673 = vmatprep.subr.mxu0 0.0
    %2674 = vmatpush1.msra.mxu0 0.0
    %2675 = vmatprep.mubr.f32.mxu0 0.0
    %2676 = vmatmul.mubr.f32.gmra.mrb[0].mxu0 %v2609
    %v2677 = vpop.f32.mrb[0].mxu0
    %v2678 = vadd.f32 0.0, %v2677
    %v2679 = vpop.f32.mrb[0].mxu0
    %v2680 = vadd.f32 0.0, %v2679
    %2681 = vdwg.mxu0
    %v2682 = vadd.f32 %v2049, %v2678
    %v2683 = vadd.f32 %v2051, %v2680
    %v2684 = vxor.u32 %v2682, 2147483648
    %v2685 = vxor.u32 %v2683, 2147483648
    %v2686 = vmul.f32 %v2684, 1.442695
    %v2687 = vpow.pop %v2686
    %v2688 = vmul.f32 %v2685, 1.442695
    %v2689 = vpow.pop %v2688
    %v2690 = vadd.f32 %v2687, 1.0
    %v2691 = vadd.f32 %v2689, 1.0
    %v2692 = vrcp.pop %v2690
    %v2693 = vmul.f32 1.0, %v2692
    %v2694 = vrcp.pop %v2691
    %v2695 = vmul.f32 1.0, %v2694
    %v2696 = vtanh.pop %v2683
    %v2697 = vmul.f32 %v2693, %v2600
    %2699 = vrot.lane.b32.xlu0 %v2696, 64
    %v2700 = vpop.permute.xlu0 %2699
    %v2702 = vmul.f32 %v2693, %v2700
    %2704 = vrot.lane.b32.xlu0 %v2702, 64
    %v2705 = vpop.permute.xlu0 %2704
    %v2707 = vadd.f32 %v2697, %v2705
    %v2708 = vtanh.pop %v2707
    %2710 = vrot.lane.b32.xlu0 %v2708, 64
    %v2711 = vpop.permute.xlu0 %2710
    %v2713 = vmul.f32 %v2695, %v2711
    %2714 = vst.msk [vmem:[#allocation2 + $0x28] sm:$0xff] %vm72, %v2713
    %v2716 = vsel %vm72, %v2713, 0
    %2718 = vmatprep.subr.mxu0 %v2061
    %2719 = vmatpush1.msra.mxu0 %v2060
    %2720 = vmatprep.subr.mxu0 %v2063
    %2721 = vmatpush1.msra.mxu0 %v2062
    %2722 = vmatprep.subr.mxu0 %v2065
    %2723 = vmatpush1.msra.mxu0 %v2064
    %2724 = vmatprep.subr.mxu0 %v2067
    %2725 = vmatpush1.msra.mxu0 %v2066
    %2726 = vmatprep.subr.mxu0 %v2069
    %2727 = vmatpush1.msra.mxu0 %v2068
    %2728 = vmatprep.subr.mxu0 %v2071
    %2729 = vmatpush1.msra.mxu0 %v2070
    %2730 = vmatprep.subr.mxu0 %v2073
    %2731 = vmatpush1.msra.mxu0 %v2072
    %2732 = vmatprep.subr.mxu0 %v2075
    %2733 = vmatpush1.msra.mxu0 %v2074
    %2734 = vmatprep.subr.mxu0 0.0
    %2735 = vmatpush1.msra.mxu0 0.0
    %2736 = vmatprep.subr.mxu0 0.0
    %2737 = vmatpush1.msra.mxu0 0.0
    %2738 = vmatprep.subr.mxu0 0.0
    %2739 = vmatpush1.msra.mxu0 0.0
    %2740 = vmatprep.subr.mxu0 0.0
    %2741 = vmatpush1.msra.mxu0 0.0
    %2742 = vmatprep.subr.mxu0 0.0
    %2743 = vmatpush1.msra.mxu0 0.0
    %2744 = vmatprep.subr.mxu0 0.0
    %2745 = vmatpush1.msra.mxu0 0.0
    %2746 = vmatprep.subr.mxu0 0.0
    %2747 = vmatpush1.msra.mxu0 0.0
    %2748 = vmatprep.subr.mxu0 0.0
    %2749 = vmatpush1.msra.mxu0 0.0
    %2750 = vmatprep.subr.mxu0 0.0
    %2751 = vmatpush1.msra.mxu0 0.0
    %2752 = vmatprep.subr.mxu0 0.0
    %2753 = vmatpush1.msra.mxu0 0.0
    %2754 = vmatprep.subr.mxu0 0.0
    %2755 = vmatpush1.msra.mxu0 0.0
    %2756 = vmatprep.subr.mxu0 0.0
    %2757 = vmatpush1.msra.mxu0 0.0
    %2758 = vmatprep.subr.mxu0 0.0
    %2759 = vmatpush1.msra.mxu0 0.0
    %2760 = vmatprep.subr.mxu0 0.0
    %2761 = vmatpush1.msra.mxu0 0.0
    %2762 = vmatprep.subr.mxu0 0.0
    %2763 = vmatpush1.msra.mxu0 0.0
    %2764 = vmatprep.subr.mxu0 0.0
    %2765 = vmatpush1.msra.mxu0 0.0
    %2766 = vmatprep.subr.mxu0 0.0
    %2767 = vmatpush1.msra.mxu0 0.0
    %2768 = vmatprep.subr.mxu0 0.0
    %2769 = vmatpush1.msra.mxu0 0.0
    %2770 = vmatprep.subr.mxu0 0.0
    %2771 = vmatpush1.msra.mxu0 0.0
    %2772 = vmatprep.subr.mxu0 0.0
    %2773 = vmatpush1.msra.mxu0 0.0
    %2774 = vmatprep.subr.mxu0 0.0
    %2775 = vmatpush1.msra.mxu0 0.0
    %2776 = vmatprep.subr.mxu0 0.0
    %2777 = vmatpush1.msra.mxu0 0.0
    %2778 = vmatprep.subr.mxu0 0.0
    %2779 = vmatpush1.msra.mxu0 0.0
    %2780 = vmatprep.subr.mxu0 0.0
    %2781 = vmatpush1.msra.mxu0 0.0
    %2782 = vmatprep.mubr.f32.mxu0 0.0
    %2783 = vmatmul.mubr.f32.gmra.mrb[0].mxu0 %v2716
    %v2784 = vpop.f32.mrb[0].mxu0
    %v2785 = vadd.f32 0.0, %v2784
    %v2786 = vpop.f32.mrb[0].mxu0
    %v2787 = vadd.f32 0.0, %v2786
    %2788 = vdwg.mxu0
    %v2789 = vadd.f32 %v2055, %v2785
    %v2790 = vadd.f32 %v2057, %v2787
    %v2791 = vxor.u32 %v2789, 2147483648
    %v2792 = vxor.u32 %v2790, 2147483648
    %v2793 = vmul.f32 %v2791, 1.442695
    %v2794 = vpow.pop %v2793
    %v2795 = vmul.f32 %v2792, 1.442695
    %v2796 = vpow.pop %v2795
    %v2797 = vadd.f32 %v2794, 1.0
    %v2798 = vadd.f32 %v2796, 1.0
    %v2799 = vrcp.pop %v2797
    %v2800 = vmul.f32 1.0, %v2799
    %v2801 = vrcp.pop %v2798
    %v2802 = vmul.f32 1.0, %v2801
    %v2803 = vtanh.pop %v2790
    %v2804 = vmul.f32 %v2800, %v2707
    %2806 = vrot.lane.b32.xlu0 %v2803, 64
    %v2807 = vpop.permute.xlu0 %2806
    %v2809 = vmul.f32 %v2800, %v2807
    %2811 = vrot.lane.b32.xlu0 %v2809, 64
    %v2812 = vpop.permute.xlu0 %2811
    %v2814 = vadd.f32 %v2804, %v2812
    %v2815 = vtanh.pop %v2814
    %2817 = vrot.lane.b32.xlu0 %v2815, 64
    %v2818 = vpop.permute.xlu0 %2817
    %v2820 = vmul.f32 %v2802, %v2818
    %2821 = vst.msk [vmem:[#allocation2 + $0x30] sm:$0xff] %vm72, %v2820
    %v2822 = vld [vmem:[#allocation2] sm:$0xff]
    %v2823 = vld [vmem:[#allocation2 + $0x8] sm:$0xff]
    %v2824 = vld [vmem:[#allocation2 + $0x10] sm:$0xff]
    %v2825 = vld [vmem:[#allocation2 + $0x18] sm:$0xff]
    %v2826 = vld [vmem:[#allocation2 + $0x20] sm:$0xff]
    %v2827 = vld [vmem:[#allocation2 + $0x28] sm:$0xff]
    %v2828 = vld [vmem:[#allocation2 + $0x30] sm:$0xff]
    %s2829 = scalar_lea.vmem %s1, 384
    %v2830 = vld [vmem:[%s2829] sm:$0xff]
    %v2831 = vld [vmem:[%s2829 + $0x8] sm:$0xff]
    %v2832 = vld [vmem:[%s2829 + $0x10] sm:$0xff]
    %v2833 = vld [vmem:[%s2829 + $0x18] sm:$0xff]
    %v2834 = vld [vmem:[%s2829 + $0x20] sm:$0xff]
    %v2835 = vld [vmem:[%s2829 + $0x28] sm:$0xff]
    %v2836 = vld [vmem:[%s2829 + $0x30] sm:$0xff]
    %v2837 = vld [vmem:[%s2829 + $0x38] sm:$0xff]
    %v2838 = vld [vmem:[%s2829 + $0x40] sm:$0xff]
    %v2839 = vld [vmem:[%s2829 + $0x48] sm:$0xff]
    %v2840 = vld [vmem:[%s2829 + $0x50] sm:$0xff]
    %v2841 = vld [vmem:[%s2829 + $0x58] sm:$0xff]
    %v2842 = vld [vmem:[%s2829 + $0x60] sm:$0xff]
    %v2843 = vld [vmem:[%s2829 + $0x68] sm:$0xff]
    %v2844 = vld [vmem:[%s2829 + $0x70] sm:$0xff]
    %v2845 = vld [vmem:[%s2829 + $0x78] sm:$0xff]
    %s2846 = scalar_lea.vmem %s3, 6
    %v2847 = vld [vmem:[%s2846] sm:$0x3]
    %v2849 = vlaneseq
    %v2850 = vshrl.u32 %v2849, 7
    %v2851 = vsub.s32 0, %v2850
    %v2852 = vrot.slane %v2847, %v2851
    %v2853 = vlaneseq
    %v2854 = vshrl.u32 %v2853, 7
    %v2855 = vsub.s32 1, %v2854
    %v2856 = vrot.slane %v2847, %v2855
    %v2860 = vsel %vm72, %v2822, 0
    %v2863 = vsel %vm72, %v2823, 0
    %v2866 = vsel %vm72, %v2824, 0
    %v2869 = vsel %vm72, %v2825, 0
    %v2872 = vsel %vm72, %v2826, 0
    %v2875 = vsel %vm72, %v2827, 0
    %v2878 = vsel %vm72, %v2828, 0
    %2880 = vmatprep.subr.mxu0 %v2831
    %2881 = vmatpush1.msra.mxu0 %v2830
    %2882 = vmatprep.subr.mxu0 %v2833
    %2883 = vmatpush1.msra.mxu0 %v2832
    %2884 = vmatprep.subr.mxu0 %v2835
    %2885 = vmatpush1.msra.mxu0 %v2834
    %2886 = vmatprep.subr.mxu0 %v2837
    %2887 = vmatpush1.msra.mxu0 %v2836
    %2888 = vmatprep.subr.mxu0 %v2839
    %2889 = vmatpush1.msra.mxu0 %v2838
    %2890 = vmatprep.subr.mxu0 %v2841
    %2891 = vmatpush1.msra.mxu0 %v2840
    %2892 = vmatprep.subr.mxu0 %v2843
    %2893 = vmatpush1.msra.mxu0 %v2842
    %2894 = vmatprep.subr.mxu0 %v2845
    %2895 = vmatpush1.msra.mxu0 %v2844
    %2896 = vmatprep.subr.mxu0 0.0
    %2897 = vmatpush1.msra.mxu0 0.0
    %2898 = vmatprep.subr.mxu0 0.0
    %2899 = vmatpush1.msra.mxu0 0.0
    %2900 = vmatprep.subr.mxu0 0.0
    %2901 = vmatpush1.msra.mxu0 0.0
    %2902 = vmatprep.subr.mxu0 0.0
    %2903 = vmatpush1.msra.mxu0 0.0
    %2904 = vmatprep.subr.mxu0 0.0
    %2905 = vmatpush1.msra.mxu0 0.0
    %2906 = vmatprep.subr.mxu0 0.0
    %2907 = vmatpush1.msra.mxu0 0.0
    %2908 = vmatprep.subr.mxu0 0.0
    %2909 = vmatpush1.msra.mxu0 0.0
    %2910 = vmatprep.subr.mxu0 0.0
    %2911 = vmatpush1.msra.mxu0 0.0
    %2912 = vmatprep.subr.mxu0 0.0
    %2913 = vmatpush1.msra.mxu0 0.0
    %2914 = vmatprep.subr.mxu0 0.0
    %2915 = vmatpush1.msra.mxu0 0.0
    %2916 = vmatprep.subr.mxu0 0.0
    %2917 = vmatpush1.msra.mxu0 0.0
    %2918 = vmatprep.subr.mxu0 0.0
    %2919 = vmatpush1.msra.mxu0 0.0
    %2920 = vmatprep.subr.mxu0 0.0
    %2921 = vmatpush1.msra.mxu0 0.0
    %2922 = vmatprep.subr.mxu0 0.0
    %2923 = vmatpush1.msra.mxu0 0.0
    %2924 = vmatprep.subr.mxu0 0.0
    %2925 = vmatpush1.msra.mxu0 0.0
    %2926 = vmatprep.subr.mxu0 0.0
    %2927 = vmatpush1.msra.mxu0 0.0
    %2928 = vmatprep.subr.mxu0 0.0
    %2929 = vmatpush1.msra.mxu0 0.0
    %2930 = vmatprep.subr.mxu0 0.0
    %2931 = vmatpush1.msra.mxu0 0.0
    %2932 = vmatprep.subr.mxu0 0.0
    %2933 = vmatpush1.msra.mxu0 0.0
    %2934 = vmatprep.subr.mxu0 0.0
    %2935 = vmatpush1.msra.mxu0 0.0
    %2936 = vmatprep.subr.mxu0 0.0
    %2937 = vmatpush1.msra.mxu0 0.0
    %2938 = vmatprep.subr.mxu0 0.0
    %2939 = vmatpush1.msra.mxu0 0.0
    %2940 = vmatprep.subr.mxu0 0.0
    %2941 = vmatpush1.msra.mxu0 0.0
    %2942 = vmatprep.subr.mxu0 0.0
    %2943 = vmatpush1.msra.mxu0 0.0
    %2944 = vmatprep.mubr.f32.mxu0 0.0
    %2945 = vmatmul.mubr.f32.gmra.mrb[0].mxu0 %v2860
    %v2946 = vpop.f32.mrb[0].mxu0
    %v2947 = vadd.f32 %v2852, %v2946
    %v2948 = vpop.f32.mrb[0].mxu0
    %v2949 = vadd.f32 %v2856, %v2948
    %2950 = vmatprep.mubr.f32.mxu0 0.0
    %2951 = vmatmul.mubr.f32.gmra.mrb[0].mxu0 %v2863
    %v2952 = vpop.f32.mrb[0].mxu0
    %v2953 = vadd.f32 %v2852, %v2952
    %v2954 = vpop.f32.mrb[0].mxu0
    %v2955 = vadd.f32 %v2856, %v2954
    %2956 = vmatprep.mubr.f32.mxu0 0.0
    %2957 = vmatmul.mubr.f32.gmra.mrb[0].mxu0 %v2866
    %v2958 = vpop.f32.mrb[0].mxu0
    %v2959 = vadd.f32 %v2852, %v2958
    %v2960 = vpop.f32.mrb[0].mxu0
    %v2961 = vadd.f32 %v2856, %v2960
    %2962 = vmatprep.mubr.f32.mxu0 0.0
    %2963 = vmatmul.mubr.f32.gmra.mrb[0].mxu0 %v2869
    %v2964 = vpop.f32.mrb[0].mxu0
    %v2965 = vadd.f32 %v2852, %v2964
    %v2966 = vpop.f32.mrb[0].mxu0
    %v2967 = vadd.f32 %v2856, %v2966
    %2968 = vmatprep.mubr.f32.mxu0 0.0
    %2969 = vmatmul.mubr.f32.gmra.mrb[0].mxu0 %v2872
    %v2970 = vpop.f32.mrb[0].mxu0
    %v2971 = vadd.f32 %v2852, %v2970
    %v2972 = vpop.f32.mrb[0].mxu0
    %v2973 = vadd.f32 %v2856, %v2972
    %2974 = vmatprep.mubr.f32.mxu0 0.0
    %2975 = vmatmul.mubr.f32.gmra.mrb[0].mxu0 %v2875
    %v2976 = vpop.f32.mrb[0].mxu0
    %v2977 = vadd.f32 %v2852, %v2976
    %v2978 = vpop.f32.mrb[0].mxu0
    %v2979 = vadd.f32 %v2856, %v2978
    %2980 = vmatprep.mubr.f32.mxu0 0.0
    %2981 = vmatmul.mubr.f32.gmra.mrb[0].mxu0 %v2878
    %v2982 = vpop.f32.mrb[0].mxu0
    %v2983 = vadd.f32 %v2852, %v2982
    %v2984 = vpop.f32.mrb[0].mxu0
    %v2985 = vadd.f32 %v2856, %v2984
    %2986 = vdwg.mxu0
    %s2987 = scalar_lea.vmem %s2, 384
    %v2988 = vld [vmem:[%s2987] sm:$0xff]
    %v2989 = vld [vmem:[%s2987 + $0x8] sm:$0xff]
    %v2990 = vld [vmem:[%s2987 + $0x10] sm:$0xff]
    %v2991 = vld [vmem:[%s2987 + $0x18] sm:$0xff]
    %v2992 = vld [vmem:[%s2987 + $0x20] sm:$0xff]
    %v2993 = vld [vmem:[%s2987 + $0x28] sm:$0xff]
    %v2994 = vld [vmem:[%s2987 + $0x30] sm:$0xff]
    %v2995 = vld [vmem:[%s2987 + $0x38] sm:$0xff]
    %v2996 = vld [vmem:[%s2987 + $0x40] sm:$0xff]
    %v2997 = vld [vmem:[%s2987 + $0x48] sm:$0xff]
    %v2998 = vld [vmem:[%s2987 + $0x50] sm:$0xff]
    %v2999 = vld [vmem:[%s2987 + $0x58] sm:$0xff]
    %v3000 = vld [vmem:[%s2987 + $0x60] sm:$0xff]
    %v3001 = vld [vmem:[%s2987 + $0x68] sm:$0xff]
    %v3002 = vld [vmem:[%s2987 + $0x70] sm:$0xff]
    %v3003 = vld [vmem:[%s2987 + $0x78] sm:$0xff]
    %3004 = vmatprep.subr.mxu0 %v2989
    %3005 = vmatpush1.msra.mxu0 %v2988
    %3006 = vmatprep.subr.mxu0 %v2991
    %3007 = vmatpush1.msra.mxu0 %v2990
    %3008 = vmatprep.subr.mxu0 %v2993
    %3009 = vmatpush1.msra.mxu0 %v2992
    %3010 = vmatprep.subr.mxu0 %v2995
    %3011 = vmatpush1.msra.mxu0 %v2994
    %3012 = vmatprep.subr.mxu0 %v2997
    %3013 = vmatpush1.msra.mxu0 %v2996
    %3014 = vmatprep.subr.mxu0 %v2999
    %3015 = vmatpush1.msra.mxu0 %v2998
    %3016 = vmatprep.subr.mxu0 %v3001
    %3017 = vmatpush1.msra.mxu0 %v3000
    %3018 = vmatprep.subr.mxu0 %v3003
    %3019 = vmatpush1.msra.mxu0 %v3002
    %3020 = vmatprep.subr.mxu0 0.0
    %3021 = vmatpush1.msra.mxu0 0.0
    %3022 = vmatprep.subr.mxu0 0.0
    %3023 = vmatpush1.msra.mxu0 0.0
    %3024 = vmatprep.subr.mxu0 0.0
    %3025 = vmatpush1.msra.mxu0 0.0
    %3026 = vmatprep.subr.mxu0 0.0
    %3027 = vmatpush1.msra.mxu0 0.0
    %3028 = vmatprep.subr.mxu0 0.0
    %3029 = vmatpush1.msra.mxu0 0.0
    %3030 = vmatprep.subr.mxu0 0.0
    %3031 = vmatpush1.msra.mxu0 0.0
    %3032 = vmatprep.subr.mxu0 0.0
    %3033 = vmatpush1.msra.mxu0 0.0
    %3034 = vmatprep.subr.mxu0 0.0
    %3035 = vmatpush1.msra.mxu0 0.0
    %3036 = vmatprep.subr.mxu0 0.0
    %3037 = vmatpush1.msra.mxu0 0.0
    %3038 = vmatprep.subr.mxu0 0.0
    %3039 = vmatpush1.msra.mxu0 0.0
    %3040 = vmatprep.subr.mxu0 0.0
    %3041 = vmatpush1.msra.mxu0 0.0
    %3042 = vmatprep.subr.mxu0 0.0
    %3043 = vmatpush1.msra.mxu0 0.0
    %3044 = vmatprep.subr.mxu0 0.0
    %3045 = vmatpush1.msra.mxu0 0.0
    %3046 = vmatprep.subr.mxu0 0.0
    %3047 = vmatpush1.msra.mxu0 0.0
    %3048 = vmatprep.subr.mxu0 0.0
    %3049 = vmatpush1.msra.mxu0 0.0
    %3050 = vmatprep.subr.mxu0 0.0
    %3051 = vmatpush1.msra.mxu0 0.0
    %3052 = vmatprep.subr.mxu0 0.0
    %3053 = vmatpush1.msra.mxu0 0.0
    %3054 = vmatprep.subr.mxu0 0.0
    %3055 = vmatpush1.msra.mxu0 0.0
    %3056 = vmatprep.subr.mxu0 0.0
    %3057 = vmatpush1.msra.mxu0 0.0
    %3058 = vmatprep.subr.mxu0 0.0
    %3059 = vmatpush1.msra.mxu0 0.0
    %3060 = vmatprep.subr.mxu0 0.0
    %3061 = vmatpush1.msra.mxu0 0.0
    %3062 = vmatprep.subr.mxu0 0.0
    %3063 = vmatpush1.msra.mxu0 0.0
    %3064 = vmatprep.subr.mxu0 0.0
    %3065 = vmatpush1.msra.mxu0 0.0
    %3066 = vmatprep.subr.mxu0 0.0
    %3067 = vmatpush1.msra.mxu0 0.0
    %3068 = vmatprep.mubr.f32.mxu0 0.0
    %3069 = vmatmul.mubr.f32.gmra.mrb[0].mxu0 %v218
    %v3070 = vpop.f32.mrb[0].mxu0
    %v3071 = vadd.f32 0.0, %v3070
    %v3072 = vpop.f32.mrb[0].mxu0
    %v3073 = vadd.f32 0.0, %v3072
    %3074 = vdwg.mxu0
    %v3075 = vadd.f32 %v2947, %v3071
    %v3076 = vadd.f32 %v2949, %v3073
    %v3077 = vxor.u32 %v3075, 2147483648
    %v3078 = vxor.u32 %v3076, 2147483648
    %v3079 = vmul.f32 %v3077, 1.442695
    %v3080 = vpow.pop %v3079
    %v3081 = vmul.f32 %v3078, 1.442695
    %v3082 = vpow.pop %v3081
    %v3083 = vadd.f32 %v3080, 1.0
    %v3084 = vadd.f32 %v3082, 1.0
    %v3085 = vrcp.pop %v3083
    %v3086 = vmul.f32 1.0, %v3085
    %v3087 = vrcp.pop %v3084
    %v3088 = vmul.f32 1.0, %v3087
    %v3089 = vtanh.pop %v3076
    %v3090 = vmul.f32 %v3086, 0.0
    %3092 = vrot.lane.b32.xlu0 %v3089, 64
    %v3093 = vpop.permute.xlu0 %3092
    %v3095 = vmul.f32 %v3086, %v3093
    %3097 = vrot.lane.b32.xlu0 %v3095, 64
    %v3098 = vpop.permute.xlu0 %3097
    %v3100 = vadd.f32 %v3090, %v3098
    %v3101 = vtanh.pop %v3100
    %3103 = vrot.lane.b32.xlu0 %v3101, 64
    %v3104 = vpop.permute.xlu0 %3103
    %v3106 = vmul.f32 %v3088, %v3104
    %v3108 = vsel %vm72, %v3106, 0
    %3110 = vmatprep.subr.mxu0 %v2989
    %3111 = vmatpush1.msra.mxu0 %v2988
    %3112 = vmatprep.subr.mxu0 %v2991
    %3113 = vmatpush1.msra.mxu0 %v2990
    %3114 = vmatprep.subr.mxu0 %v2993
    %3115 = vmatpush1.msra.mxu0 %v2992
    %3116 = vmatprep.subr.mxu0 %v2995
    %3117 = vmatpush1.msra.mxu0 %v2994
    %3118 = vmatprep.subr.mxu0 %v2997
    %3119 = vmatpush1.msra.mxu0 %v2996
    %3120 = vmatprep.subr.mxu0 %v2999
    %3121 = vmatpush1.msra.mxu0 %v2998
    %3122 = vmatprep.subr.mxu0 %v3001
    %3123 = vmatpush1.msra.mxu0 %v3000
    %3124 = vmatprep.subr.mxu0 %v3003
    %3125 = vmatpush1.msra.mxu0 %v3002
    %3126 = vmatprep.subr.mxu0 0.0
    %3127 = vmatpush1.msra.mxu0 0.0
    %3128 = vmatprep.subr.mxu0 0.0
    %3129 = vmatpush1.msra.mxu0 0.0
    %3130 = vmatprep.subr.mxu0 0.0
    %3131 = vmatpush1.msra.mxu0 0.0
    %3132 = vmatprep.subr.mxu0 0.0
    %3133 = vmatpush1.msra.mxu0 0.0
    %3134 = vmatprep.subr.mxu0 0.0
    %3135 = vmatpush1.msra.mxu0 0.0
    %3136 = vmatprep.subr.mxu0 0.0
    %3137 = vmatpush1.msra.mxu0 0.0
    %3138 = vmatprep.subr.mxu0 0.0
    %3139 = vmatpush1.msra.mxu0 0.0
    %3140 = vmatprep.subr.mxu0 0.0
    %3141 = vmatpush1.msra.mxu0 0.0
    %3142 = vmatprep.subr.mxu0 0.0
    %3143 = vmatpush1.msra.mxu0 0.0
    %3144 = vmatprep.subr.mxu0 0.0
    %3145 = vmatpush1.msra.mxu0 0.0
    %3146 = vmatprep.subr.mxu0 0.0
    %3147 = vmatpush1.msra.mxu0 0.0
    %3148 = vmatprep.subr.mxu0 0.0
    %3149 = vmatpush1.msra.mxu0 0.0
    %3150 = vmatprep.subr.mxu0 0.0
    %3151 = vmatpush1.msra.mxu0 0.0
    %3152 = vmatprep.subr.mxu0 0.0
    %3153 = vmatpush1.msra.mxu0 0.0
    %3154 = vmatprep.subr.mxu0 0.0
    %3155 = vmatpush1.msra.mxu0 0.0
    %3156 = vmatprep.subr.mxu0 0.0
    %3157 = vmatpush1.msra.mxu0 0.0
    %3158 = vmatprep.subr.mxu0 0.0
    %3159 = vmatpush1.msra.mxu0 0.0
    %3160 = vmatprep.subr.mxu0 0.0
    %3161 = vmatpush1.msra.mxu0 0.0
    %3162 = vmatprep.subr.mxu0 0.0
    %3163 = vmatpush1.msra.mxu0 0.0
    %3164 = vmatprep.subr.mxu0 0.0
    %3165 = vmatpush1.msra.mxu0 0.0
    %3166 = vmatprep.subr.mxu0 0.0
    %3167 = vmatpush1.msra.mxu0 0.0
    %3168 = vmatprep.subr.mxu0 0.0
    %3169 = vmatpush1.msra.mxu0 0.0
    %3170 = vmatprep.subr.mxu0 0.0
    %3171 = vmatpush1.msra.mxu0 0.0
    %3172 = vmatprep.subr.mxu0 0.0
    %3173 = vmatpush1.msra.mxu0 0.0
    %3174 = vmatprep.mubr.f32.mxu0 0.0
    %3175 = vmatmul.mubr.f32.gmra.mrb[0].mxu0 %v3108
    %v3176 = vpop.f32.mrb[0].mxu0
    %v3177 = vadd.f32 0.0, %v3176
    %v3178 = vpop.f32.mrb[0].mxu0
    %v3179 = vadd.f32 0.0, %v3178
    %3180 = vdwg.mxu0
    %v3181 = vadd.f32 %v2953, %v3177
    %v3182 = vadd.f32 %v2955, %v3179
    %v3183 = vxor.u32 %v3181, 2147483648
    %v3184 = vxor.u32 %v3182, 2147483648
    %v3185 = vmul.f32 %v3183, 1.442695
    %v3186 = vpow.pop %v3185
    %v3187 = vmul.f32 %v3184, 1.442695
    %v3188 = vpow.pop %v3187
    %v3189 = vadd.f32 %v3186, 1.0
    %v3190 = vadd.f32 %v3188, 1.0
    %v3191 = vrcp.pop %v3189
    %v3192 = vmul.f32 1.0, %v3191
    %v3193 = vrcp.pop %v3190
    %v3194 = vmul.f32 1.0, %v3193
    %v3195 = vtanh.pop %v3182
    %v3196 = vmul.f32 %v3192, %v3100
    %3198 = vrot.lane.b32.xlu0 %v3195, 64
    %v3199 = vpop.permute.xlu0 %3198
    %v3201 = vmul.f32 %v3192, %v3199
    %3203 = vrot.lane.b32.xlu0 %v3201, 64
    %v3204 = vpop.permute.xlu0 %3203
    %v3206 = vadd.f32 %v3196, %v3204
    %v3207 = vtanh.pop %v3206
    %3209 = vrot.lane.b32.xlu0 %v3207, 64
    %v3210 = vpop.permute.xlu0 %3209
    %v3212 = vmul.f32 %v3194, %v3210
    %v3214 = vsel %vm72, %v3212, 0
    %3216 = vmatprep.subr.mxu0 %v2989
    %3217 = vmatpush1.msra.mxu0 %v2988
    %3218 = vmatprep.subr.mxu0 %v2991
    %3219 = vmatpush1.msra.mxu0 %v2990
    %3220 = vmatprep.subr.mxu0 %v2993
    %3221 = vmatpush1.msra.mxu0 %v2992
    %3222 = vmatprep.subr.mxu0 %v2995
    %3223 = vmatpush1.msra.mxu0 %v2994
    %3224 = vmatprep.subr.mxu0 %v2997
    %3225 = vmatpush1.msra.mxu0 %v2996
    %3226 = vmatprep.subr.mxu0 %v2999
    %3227 = vmatpush1.msra.mxu0 %v2998
    %3228 = vmatprep.subr.mxu0 %v3001
    %3229 = vmatpush1.msra.mxu0 %v3000
    %3230 = vmatprep.subr.mxu0 %v3003
    %3231 = vmatpush1.msra.mxu0 %v3002
    %3232 = vmatprep.subr.mxu0 0.0
    %3233 = vmatpush1.msra.mxu0 0.0
    %3234 = vmatprep.subr.mxu0 0.0
    %3235 = vmatpush1.msra.mxu0 0.0
    %3236 = vmatprep.subr.mxu0 0.0
    %3237 = vmatpush1.msra.mxu0 0.0
    %3238 = vmatprep.subr.mxu0 0.0
    %3239 = vmatpush1.msra.mxu0 0.0
    %3240 = vmatprep.subr.mxu0 0.0
    %3241 = vmatpush1.msra.mxu0 0.0
    %3242 = vmatprep.subr.mxu0 0.0
    %3243 = vmatpush1.msra.mxu0 0.0
    %3244 = vmatprep.subr.mxu0 0.0
    %3245 = vmatpush1.msra.mxu0 0.0
    %3246 = vmatprep.subr.mxu0 0.0
    %3247 = vmatpush1.msra.mxu0 0.0
    %3248 = vmatprep.subr.mxu0 0.0
    %3249 = vmatpush1.msra.mxu0 0.0
    %3250 = vmatprep.subr.mxu0 0.0
    %3251 = vmatpush1.msra.mxu0 0.0
    %3252 = vmatprep.subr.mxu0 0.0
    %3253 = vmatpush1.msra.mxu0 0.0
    %3254 = vmatprep.subr.mxu0 0.0
    %3255 = vmatpush1.msra.mxu0 0.0
    %3256 = vmatprep.subr.mxu0 0.0
    %3257 = vmatpush1.msra.mxu0 0.0
    %3258 = vmatprep.subr.mxu0 0.0
    %3259 = vmatpush1.msra.mxu0 0.0
    %3260 = vmatprep.subr.mxu0 0.0
    %3261 = vmatpush1.msra.mxu0 0.0
    %3262 = vmatprep.subr.mxu0 0.0
    %3263 = vmatpush1.msra.mxu0 0.0
    %3264 = vmatprep.subr.mxu0 0.0
    %3265 = vmatpush1.msra.mxu0 0.0
    %3266 = vmatprep.subr.mxu0 0.0
    %3267 = vmatpush1.msra.mxu0 0.0
    %3268 = vmatprep.subr.mxu0 0.0
    %3269 = vmatpush1.msra.mxu0 0.0
    %3270 = vmatprep.subr.mxu0 0.0
    %3271 = vmatpush1.msra.mxu0 0.0
    %3272 = vmatprep.subr.mxu0 0.0
    %3273 = vmatpush1.msra.mxu0 0.0
    %3274 = vmatprep.subr.mxu0 0.0
    %3275 = vmatpush1.msra.mxu0 0.0
    %3276 = vmatprep.subr.mxu0 0.0
    %3277 = vmatpush1.msra.mxu0 0.0
    %3278 = vmatprep.subr.mxu0 0.0
    %3279 = vmatpush1.msra.mxu0 0.0
    %3280 = vmatprep.mubr.f32.mxu0 0.0
    %3281 = vmatmul.mubr.f32.gmra.mrb[0].mxu0 %v3214
    %v3282 = vpop.f32.mrb[0].mxu0
    %v3283 = vadd.f32 0.0, %v3282
    %v3284 = vpop.f32.mrb[0].mxu0
    %v3285 = vadd.f32 0.0, %v3284
    %3286 = vdwg.mxu0
    %v3287 = vadd.f32 %v2959, %v3283
    %v3288 = vadd.f32 %v2961, %v3285
    %v3289 = vxor.u32 %v3287, 2147483648
    %v3290 = vxor.u32 %v3288, 2147483648
    %v3291 = vmul.f32 %v3289, 1.442695
    %v3292 = vpow.pop %v3291
    %v3293 = vmul.f32 %v3290, 1.442695
    %v3294 = vpow.pop %v3293
    %v3295 = vadd.f32 %v3292, 1.0
    %v3296 = vadd.f32 %v3294, 1.0
    %v3297 = vrcp.pop %v3295
    %v3298 = vmul.f32 1.0, %v3297
    %v3299 = vrcp.pop %v3296
    %v3300 = vmul.f32 1.0, %v3299
    %v3301 = vtanh.pop %v3288
    %v3302 = vmul.f32 %v3298, %v3206
    %3304 = vrot.lane.b32.xlu0 %v3301, 64
    %v3305 = vpop.permute.xlu0 %3304
    %v3307 = vmul.f32 %v3298, %v3305
    %3309 = vrot.lane.b32.xlu0 %v3307, 64
    %v3310 = vpop.permute.xlu0 %3309
    %v3312 = vadd.f32 %v3302, %v3310
    %v3313 = vtanh.pop %v3312
    %3315 = vrot.lane.b32.xlu0 %v3313, 64
    %v3316 = vpop.permute.xlu0 %3315
    %v3318 = vmul.f32 %v3300, %v3316
    %v3320 = vsel %vm72, %v3318, 0
    %3322 = vmatprep.subr.mxu0 %v2989
    %3323 = vmatpush1.msra.mxu0 %v2988
    %3324 = vmatprep.subr.mxu0 %v2991
    %3325 = vmatpush1.msra.mxu0 %v2990
    %3326 = vmatprep.subr.mxu0 %v2993
    %3327 = vmatpush1.msra.mxu0 %v2992
    %3328 = vmatprep.subr.mxu0 %v2995
    %3329 = vmatpush1.msra.mxu0 %v2994
    %3330 = vmatprep.subr.mxu0 %v2997
    %3331 = vmatpush1.msra.mxu0 %v2996
    %3332 = vmatprep.subr.mxu0 %v2999
    %3333 = vmatpush1.msra.mxu0 %v2998
    %3334 = vmatprep.subr.mxu0 %v3001
    %3335 = vmatpush1.msra.mxu0 %v3000
    %3336 = vmatprep.subr.mxu0 %v3003
    %3337 = vmatpush1.msra.mxu0 %v3002
    %3338 = vmatprep.subr.mxu0 0.0
    %3339 = vmatpush1.msra.mxu0 0.0
    %3340 = vmatprep.subr.mxu0 0.0
    %3341 = vmatpush1.msra.mxu0 0.0
    %3342 = vmatprep.subr.mxu0 0.0
    %3343 = vmatpush1.msra.mxu0 0.0
    %3344 = vmatprep.subr.mxu0 0.0
    %3345 = vmatpush1.msra.mxu0 0.0
    %3346 = vmatprep.subr.mxu0 0.0
    %3347 = vmatpush1.msra.mxu0 0.0
    %3348 = vmatprep.subr.mxu0 0.0
    %3349 = vmatpush1.msra.mxu0 0.0
    %3350 = vmatprep.subr.mxu0 0.0
    %3351 = vmatpush1.msra.mxu0 0.0
    %3352 = vmatprep.subr.mxu0 0.0
    %3353 = vmatpush1.msra.mxu0 0.0
    %3354 = vmatprep.subr.mxu0 0.0
    %3355 = vmatpush1.msra.mxu0 0.0
    %3356 = vmatprep.subr.mxu0 0.0
    %3357 = vmatpush1.msra.mxu0 0.0
    %3358 = vmatprep.subr.mxu0 0.0
    %3359 = vmatpush1.msra.mxu0 0.0
    %3360 = vmatprep.subr.mxu0 0.0
    %3361 = vmatpush1.msra.mxu0 0.0
    %3362 = vmatprep.subr.mxu0 0.0
    %3363 = vmatpush1.msra.mxu0 0.0
    %3364 = vmatprep.subr.mxu0 0.0
    %3365 = vmatpush1.msra.mxu0 0.0
    %3366 = vmatprep.subr.mxu0 0.0
    %3367 = vmatpush1.msra.mxu0 0.0
    %3368 = vmatprep.subr.mxu0 0.0
    %3369 = vmatpush1.msra.mxu0 0.0
    %3370 = vmatprep.subr.mxu0 0.0
    %3371 = vmatpush1.msra.mxu0 0.0
    %3372 = vmatprep.subr.mxu0 0.0
    %3373 = vmatpush1.msra.mxu0 0.0
    %3374 = vmatprep.subr.mxu0 0.0
    %3375 = vmatpush1.msra.mxu0 0.0
    %3376 = vmatprep.subr.mxu0 0.0
    %3377 = vmatpush1.msra.mxu0 0.0
    %3378 = vmatprep.subr.mxu0 0.0
    %3379 = vmatpush1.msra.mxu0 0.0
    %3380 = vmatprep.subr.mxu0 0.0
    %3381 = vmatpush1.msra.mxu0 0.0
    %3382 = vmatprep.subr.mxu0 0.0
    %3383 = vmatpush1.msra.mxu0 0.0
    %3384 = vmatprep.subr.mxu0 0.0
    %3385 = vmatpush1.msra.mxu0 0.0
    %3386 = vmatprep.mubr.f32.mxu0 0.0
    %3387 = vmatmul.mubr.f32.gmra.mrb[0].mxu0 %v3320
    %v3388 = vpop.f32.mrb[0].mxu0
    %v3389 = vadd.f32 0.0, %v3388
    %v3390 = vpop.f32.mrb[0].mxu0
    %v3391 = vadd.f32 0.0, %v3390
    %3392 = vdwg.mxu0
    %v3393 = vadd.f32 %v2965, %v3389
    %v3394 = vadd.f32 %v2967, %v3391
    %v3395 = vxor.u32 %v3393, 2147483648
    %v3396 = vxor.u32 %v3394, 2147483648
    %v3397 = vmul.f32 %v3395, 1.442695
    %v3398 = vpow.pop %v3397
    %v3399 = vmul.f32 %v3396, 1.442695
    %v3400 = vpow.pop %v3399
    %v3401 = vadd.f32 %v3398, 1.0
    %v3402 = vadd.f32 %v3400, 1.0
    %v3403 = vrcp.pop %v3401
    %v3404 = vmul.f32 1.0, %v3403
    %v3405 = vrcp.pop %v3402
    %v3406 = vmul.f32 1.0, %v3405
    %v3407 = vtanh.pop %v3394
    %v3408 = vmul.f32 %v3404, %v3312
    %3410 = vrot.lane.b32.xlu0 %v3407, 64
    %v3411 = vpop.permute.xlu0 %3410
    %v3413 = vmul.f32 %v3404, %v3411
    %3415 = vrot.lane.b32.xlu0 %v3413, 64
    %v3416 = vpop.permute.xlu0 %3415
    %v3418 = vadd.f32 %v3408, %v3416
    %v3419 = vtanh.pop %v3418
    %3421 = vrot.lane.b32.xlu0 %v3419, 64
    %v3422 = vpop.permute.xlu0 %3421
    %v3424 = vmul.f32 %v3406, %v3422
    %v3426 = vsel %vm72, %v3424, 0
    %3428 = vmatprep.subr.mxu0 %v2989
    %3429 = vmatpush1.msra.mxu0 %v2988
    %3430 = vmatprep.subr.mxu0 %v2991
    %3431 = vmatpush1.msra.mxu0 %v2990
    %3432 = vmatprep.subr.mxu0 %v2993
    %3433 = vmatpush1.msra.mxu0 %v2992
    %3434 = vmatprep.subr.mxu0 %v2995
    %3435 = vmatpush1.msra.mxu0 %v2994
    %3436 = vmatprep.subr.mxu0 %v2997
    %3437 = vmatpush1.msra.mxu0 %v2996
    %3438 = vmatprep.subr.mxu0 %v2999
    %3439 = vmatpush1.msra.mxu0 %v2998
    %3440 = vmatprep.subr.mxu0 %v3001
    %3441 = vmatpush1.msra.mxu0 %v3000
    %3442 = vmatprep.subr.mxu0 %v3003
    %3443 = vmatpush1.msra.mxu0 %v3002
    %3444 = vmatprep.subr.mxu0 0.0
    %3445 = vmatpush1.msra.mxu0 0.0
    %3446 = vmatprep.subr.mxu0 0.0
    %3447 = vmatpush1.msra.mxu0 0.0
    %3448 = vmatprep.subr.mxu0 0.0
    %3449 = vmatpush1.msra.mxu0 0.0
    %3450 = vmatprep.subr.mxu0 0.0
    %3451 = vmatpush1.msra.mxu0 0.0
    %3452 = vmatprep.subr.mxu0 0.0
    %3453 = vmatpush1.msra.mxu0 0.0
    %3454 = vmatprep.subr.mxu0 0.0
    %3455 = vmatpush1.msra.mxu0 0.0
    %3456 = vmatprep.subr.mxu0 0.0
    %3457 = vmatpush1.msra.mxu0 0.0
    %3458 = vmatprep.subr.mxu0 0.0
    %3459 = vmatpush1.msra.mxu0 0.0
    %3460 = vmatprep.subr.mxu0 0.0
    %3461 = vmatpush1.msra.mxu0 0.0
    %3462 = vmatprep.subr.mxu0 0.0
    %3463 = vmatpush1.msra.mxu0 0.0
    %3464 = vmatprep.subr.mxu0 0.0
    %3465 = vmatpush1.msra.mxu0 0.0
    %3466 = vmatprep.subr.mxu0 0.0
    %3467 = vmatpush1.msra.mxu0 0.0
    %3468 = vmatprep.subr.mxu0 0.0
    %3469 = vmatpush1.msra.mxu0 0.0
    %3470 = vmatprep.subr.mxu0 0.0
    %3471 = vmatpush1.msra.mxu0 0.0
    %3472 = vmatprep.subr.mxu0 0.0
    %3473 = vmatpush1.msra.mxu0 0.0
    %3474 = vmatprep.subr.mxu0 0.0
    %3475 = vmatpush1.msra.mxu0 0.0
    %3476 = vmatprep.subr.mxu0 0.0
    %3477 = vmatpush1.msra.mxu0 0.0
    %3478 = vmatprep.subr.mxu0 0.0
    %3479 = vmatpush1.msra.mxu0 0.0
    %3480 = vmatprep.subr.mxu0 0.0
    %3481 = vmatpush1.msra.mxu0 0.0
    %3482 = vmatprep.subr.mxu0 0.0
    %3483 = vmatpush1.msra.mxu0 0.0
    %3484 = vmatprep.subr.mxu0 0.0
    %3485 = vmatpush1.msra.mxu0 0.0
    %3486 = vmatprep.subr.mxu0 0.0
    %3487 = vmatpush1.msra.mxu0 0.0
    %3488 = vmatprep.subr.mxu0 0.0
    %3489 = vmatpush1.msra.mxu0 0.0
    %3490 = vmatprep.subr.mxu0 0.0
    %3491 = vmatpush1.msra.mxu0 0.0
    %3492 = vmatprep.mubr.f32.mxu0 0.0
    %3493 = vmatmul.mubr.f32.gmra.mrb[0].mxu0 %v3426
    %v3494 = vpop.f32.mrb[0].mxu0
    %v3495 = vadd.f32 0.0, %v3494
    %v3496 = vpop.f32.mrb[0].mxu0
    %v3497 = vadd.f32 0.0, %v3496
    %3498 = vdwg.mxu0
    %v3499 = vadd.f32 %v2971, %v3495
    %v3500 = vadd.f32 %v2973, %v3497
    %v3501 = vxor.u32 %v3499, 2147483648
    %v3502 = vxor.u32 %v3500, 2147483648
    %v3503 = vmul.f32 %v3501, 1.442695
    %v3504 = vpow.pop %v3503
    %v3505 = vmul.f32 %v3502, 1.442695
    %v3506 = vpow.pop %v3505
    %v3507 = vadd.f32 %v3504, 1.0
    %v3508 = vadd.f32 %v3506, 1.0
    %v3509 = vrcp.pop %v3507
    %v3510 = vmul.f32 1.0, %v3509
    %v3511 = vrcp.pop %v3508
    %v3512 = vmul.f32 1.0, %v3511
    %v3513 = vtanh.pop %v3500
    %v3514 = vmul.f32 %v3510, %v3418
    %3516 = vrot.lane.b32.xlu0 %v3513, 64
    %v3517 = vpop.permute.xlu0 %3516
    %v3519 = vmul.f32 %v3510, %v3517
    %3521 = vrot.lane.b32.xlu0 %v3519, 64
    %v3522 = vpop.permute.xlu0 %3521
    %v3524 = vadd.f32 %v3514, %v3522
    %v3525 = vtanh.pop %v3524
    %3527 = vrot.lane.b32.xlu0 %v3525, 64
    %v3528 = vpop.permute.xlu0 %3527
    %v3530 = vmul.f32 %v3512, %v3528
    %v3532 = vsel %vm72, %v3530, 0
    %3534 = vmatprep.subr.mxu0 %v2989
    %3535 = vmatpush1.msra.mxu0 %v2988
    %3536 = vmatprep.subr.mxu0 %v2991
    %3537 = vmatpush1.msra.mxu0 %v2990
    %3538 = vmatprep.subr.mxu0 %v2993
    %3539 = vmatpush1.msra.mxu0 %v2992
    %3540 = vmatprep.subr.mxu0 %v2995
    %3541 = vmatpush1.msra.mxu0 %v2994
    %3542 = vmatprep.subr.mxu0 %v2997
    %3543 = vmatpush1.msra.mxu0 %v2996
    %3544 = vmatprep.subr.mxu0 %v2999
    %3545 = vmatpush1.msra.mxu0 %v2998
    %3546 = vmatprep.subr.mxu0 %v3001
    %3547 = vmatpush1.msra.mxu0 %v3000
    %3548 = vmatprep.subr.mxu0 %v3003
    %3549 = vmatpush1.msra.mxu0 %v3002
    %3550 = vmatprep.subr.mxu0 0.0
    %3551 = vmatpush1.msra.mxu0 0.0
    %3552 = vmatprep.subr.mxu0 0.0
    %3553 = vmatpush1.msra.mxu0 0.0
    %3554 = vmatprep.subr.mxu0 0.0
    %3555 = vmatpush1.msra.mxu0 0.0
    %3556 = vmatprep.subr.mxu0 0.0
    %3557 = vmatpush1.msra.mxu0 0.0
    %3558 = vmatprep.subr.mxu0 0.0
    %3559 = vmatpush1.msra.mxu0 0.0
    %3560 = vmatprep.subr.mxu0 0.0
    %3561 = vmatpush1.msra.mxu0 0.0
    %3562 = vmatprep.subr.mxu0 0.0
    %3563 = vmatpush1.msra.mxu0 0.0
    %3564 = vmatprep.subr.mxu0 0.0
    %3565 = vmatpush1.msra.mxu0 0.0
    %3566 = vmatprep.subr.mxu0 0.0
    %3567 = vmatpush1.msra.mxu0 0.0
    %3568 = vmatprep.subr.mxu0 0.0
    %3569 = vmatpush1.msra.mxu0 0.0
    %3570 = vmatprep.subr.mxu0 0.0
    %3571 = vmatpush1.msra.mxu0 0.0
    %3572 = vmatprep.subr.mxu0 0.0
    %3573 = vmatpush1.msra.mxu0 0.0
    %3574 = vmatprep.subr.mxu0 0.0
    %3575 = vmatpush1.msra.mxu0 0.0
    %3576 = vmatprep.subr.mxu0 0.0
    %3577 = vmatpush1.msra.mxu0 0.0
    %3578 = vmatprep.subr.mxu0 0.0
    %3579 = vmatpush1.msra.mxu0 0.0
    %3580 = vmatprep.subr.mxu0 0.0
    %3581 = vmatpush1.msra.mxu0 0.0
    %3582 = vmatprep.subr.mxu0 0.0
    %3583 = vmatpush1.msra.mxu0 0.0
    %3584 = vmatprep.subr.mxu0 0.0
    %3585 = vmatpush1.msra.mxu0 0.0
    %3586 = vmatprep.subr.mxu0 0.0
    %3587 = vmatpush1.msra.mxu0 0.0
    %3588 = vmatprep.subr.mxu0 0.0
    %3589 = vmatpush1.msra.mxu0 0.0
    %3590 = vmatprep.subr.mxu0 0.0
    %3591 = vmatpush1.msra.mxu0 0.0
    %3592 = vmatprep.subr.mxu0 0.0
    %3593 = vmatpush1.msra.mxu0 0.0
    %3594 = vmatprep.subr.mxu0 0.0
    %3595 = vmatpush1.msra.mxu0 0.0
    %3596 = vmatprep.subr.mxu0 0.0
    %3597 = vmatpush1.msra.mxu0 0.0
    %3598 = vmatprep.mubr.f32.mxu0 0.0
    %3599 = vmatmul.mubr.f32.gmra.mrb[0].mxu0 %v3532
    %v3600 = vpop.f32.mrb[0].mxu0
    %v3601 = vadd.f32 0.0, %v3600
    %v3602 = vpop.f32.mrb[0].mxu0
    %v3603 = vadd.f32 0.0, %v3602
    %3604 = vdwg.mxu0
    %v3605 = vadd.f32 %v2977, %v3601
    %v3606 = vadd.f32 %v2979, %v3603
    %v3607 = vxor.u32 %v3605, 2147483648
    %v3608 = vxor.u32 %v3606, 2147483648
    %v3609 = vmul.f32 %v3607, 1.442695
    %v3610 = vpow.pop %v3609
    %v3611 = vmul.f32 %v3608, 1.442695
    %v3612 = vpow.pop %v3611
    %v3613 = vadd.f32 %v3610, 1.0
    %v3614 = vadd.f32 %v3612, 1.0
    %v3615 = vrcp.pop %v3613
    %v3616 = vmul.f32 1.0, %v3615
    %v3617 = vrcp.pop %v3614
    %v3618 = vmul.f32 1.0, %v3617
    %v3619 = vtanh.pop %v3606
    %v3620 = vmul.f32 %v3616, %v3524
    %3622 = vrot.lane.b32.xlu0 %v3619, 64
    %v3623 = vpop.permute.xlu0 %3622
    %v3625 = vmul.f32 %v3616, %v3623
    %3627 = vrot.lane.b32.xlu0 %v3625, 64
    %v3628 = vpop.permute.xlu0 %3627
    %v3630 = vadd.f32 %v3620, %v3628
    %v3631 = vtanh.pop %v3630
    %3633 = vrot.lane.b32.xlu0 %v3631, 64
    %v3634 = vpop.permute.xlu0 %3633
    %v3636 = vmul.f32 %v3618, %v3634
    %v3638 = vsel %vm72, %v3636, 0
    %3640 = vmatprep.subr.mxu0 %v2989
    %3641 = vmatpush1.msra.mxu0 %v2988
    %3642 = vmatprep.subr.mxu0 %v2991
    %3643 = vmatpush1.msra.mxu0 %v2990
    %3644 = vmatprep.subr.mxu0 %v2993
    %3645 = vmatpush1.msra.mxu0 %v2992
    %3646 = vmatprep.subr.mxu0 %v2995
    %3647 = vmatpush1.msra.mxu0 %v2994
    %3648 = vmatprep.subr.mxu0 %v2997
    %3649 = vmatpush1.msra.mxu0 %v2996
    %3650 = vmatprep.subr.mxu0 %v2999
    %3651 = vmatpush1.msra.mxu0 %v2998
    %3652 = vmatprep.subr.mxu0 %v3001
    %3653 = vmatpush1.msra.mxu0 %v3000
    %3654 = vmatprep.subr.mxu0 %v3003
    %3655 = vmatpush1.msra.mxu0 %v3002
    %3656 = vmatprep.subr.mxu0 0.0
    %3657 = vmatpush1.msra.mxu0 0.0
    %3658 = vmatprep.subr.mxu0 0.0
    %3659 = vmatpush1.msra.mxu0 0.0
    %3660 = vmatprep.subr.mxu0 0.0
    %3661 = vmatpush1.msra.mxu0 0.0
    %3662 = vmatprep.subr.mxu0 0.0
    %3663 = vmatpush1.msra.mxu0 0.0
    %3664 = vmatprep.subr.mxu0 0.0
    %3665 = vmatpush1.msra.mxu0 0.0
    %3666 = vmatprep.subr.mxu0 0.0
    %3667 = vmatpush1.msra.mxu0 0.0
    %3668 = vmatprep.subr.mxu0 0.0
    %3669 = vmatpush1.msra.mxu0 0.0
    %3670 = vmatprep.subr.mxu0 0.0
    %3671 = vmatpush1.msra.mxu0 0.0
    %3672 = vmatprep.subr.mxu0 0.0
    %3673 = vmatpush1.msra.mxu0 0.0
    %3674 = vmatprep.subr.mxu0 0.0
    %3675 = vmatpush1.msra.mxu0 0.0
    %3676 = vmatprep.subr.mxu0 0.0
    %3677 = vmatpush1.msra.mxu0 0.0
    %3678 = vmatprep.subr.mxu0 0.0
    %3679 = vmatpush1.msra.mxu0 0.0
    %3680 = vmatprep.subr.mxu0 0.0
    %3681 = vmatpush1.msra.mxu0 0.0
    %3682 = vmatprep.subr.mxu0 0.0
    %3683 = vmatpush1.msra.mxu0 0.0
    %3684 = vmatprep.subr.mxu0 0.0
    %3685 = vmatpush1.msra.mxu0 0.0
    %3686 = vmatprep.subr.mxu0 0.0
    %3687 = vmatpush1.msra.mxu0 0.0
    %3688 = vmatprep.subr.mxu0 0.0
    %3689 = vmatpush1.msra.mxu0 0.0
    %3690 = vmatprep.subr.mxu0 0.0
    %3691 = vmatpush1.msra.mxu0 0.0
    %3692 = vmatprep.subr.mxu0 0.0
    %3693 = vmatpush1.msra.mxu0 0.0
    %3694 = vmatprep.subr.mxu0 0.0
    %3695 = vmatpush1.msra.mxu0 0.0
    %3696 = vmatprep.subr.mxu0 0.0
    %3697 = vmatpush1.msra.mxu0 0.0
    %3698 = vmatprep.subr.mxu0 0.0
    %3699 = vmatpush1.msra.mxu0 0.0
    %3700 = vmatprep.subr.mxu0 0.0
    %3701 = vmatpush1.msra.mxu0 0.0
    %3702 = vmatprep.subr.mxu0 0.0
    %3703 = vmatpush1.msra.mxu0 0.0
    %3704 = vmatprep.mubr.f32.mxu0 0.0
    %3705 = vmatmul.mubr.f32.gmra.mrb[0].mxu0 %v3638
    %v3706 = vpop.f32.mrb[0].mxu0
    %v3707 = vadd.f32 0.0, %v3706
    %v3708 = vpop.f32.mrb[0].mxu0
    %v3709 = vadd.f32 0.0, %v3708
    %3710 = vdwg.mxu0
    %v3711 = vadd.f32 %v2983, %v3707
    %v3712 = vadd.f32 %v2985, %v3709
    %v3713 = vxor.u32 %v3711, 2147483648
    %v3714 = vxor.u32 %v3712, 2147483648
    %v3715 = vmul.f32 %v3713, 1.442695
    %v3716 = vpow.pop %v3715
    %v3717 = vmul.f32 %v3714, 1.442695
    %v3718 = vpow.pop %v3717
    %v3719 = vadd.f32 %v3716, 1.0
    %v3720 = vadd.f32 %v3718, 1.0
    %v3721 = vrcp.pop %v3719
    %v3722 = vmul.f32 1.0, %v3721
    %v3723 = vrcp.pop %v3720
    %v3724 = vmul.f32 1.0, %v3723
    %v3725 = vtanh.pop %v3712
    %v3726 = vmul.f32 %v3722, %v3630
    %3728 = vrot.lane.b32.xlu0 %v3725, 64
    %v3729 = vpop.permute.xlu0 %3728
    %v3731 = vmul.f32 %v3722, %v3729
    %3733 = vrot.lane.b32.xlu0 %v3731, 64
    %v3734 = vpop.permute.xlu0 %3733
    %v3736 = vadd.f32 %v3726, %v3734
    %v3737 = vtanh.pop %v3736
    %3739 = vrot.lane.b32.xlu0 %v3737, 64
    %v3740 = vpop.permute.xlu0 %3739
    %v3742 = vmul.f32 %v3724, %v3740
    %v3743 = vld [vmem:[#allocation4] sm:$0x1]
    %v3745 = vlaneseq
    %v3746 = vshrl.u32 %v3745, 7
    %v3747 = vsub.s32 0, %v3746
    %v3748 = vrot.slane %v3743, %v3747
    %v3750 = vmul.f32 %v3742, %v3748
    %v3751 = vsel %vm72, %v3750, 0.0
    %3752 = vadd.xlane.f32.xlu0 %v3751
    %v3753 = vpop.xlane.xlu0 %3752
    %v3754 = vld [vmem:[#allocation3] sm:$0x1]
    %v3756 = vlaneseq
    %v3757 = vshrl.u32 %v3756, 7
    %v3758 = vsub.s32 0, %v3757
    %v3759 = vrot.slane %v3754, %v3758
    %v3761 = vadd.f32 %v3753, %v3759
    %v3762 = vxor.u32 %v3761, 2147483648
    %v3763 = vmul.f32 %v3762, 1.442695
    %v3764 = vpow.pop %v3763
    %v3765 = vadd.f32 %v3764, 1.0
    %v3766 = vrcp.pop %v3765
    %v3767 = vmul.f32 1.0, %v3766
    %vm3768 = vcmask 1024
    %3769 = vst.msk [vmem:[%s6] sm:$0x3] %vm3768, %v3767
    // Predicated region
    $region30: #{model_forward.3} parent=1 // pred_check
      _
    $region31: #{model_forward.3} parent=1 // pred_check_branch
      %3771 = sbr.rel (0) target = $region33
    $region32: #{model_forward.3} parent=1 // pred_region
      _
    $region33: #{model_forward.3} parent=1 // pred_fallthru
      _
    // Predicated region
    $region34: #{model_forward.3} parent=1 // pred_check
      _
    $region35: #{model_forward.3} parent=1 // pred_check_branch
      %3773 = sbr.rel (0) target = $region37
    $region36: #{model_forward.3} parent=1 // pred_region
      _
    $region37: #{model_forward.3} parent=1 // pred_fallthru
      _
    %3774 = vsyncpa [#allocation5], 1

</llo_original>
